<compile_context>
chip_gen: v7x
topology: tpu7x:2x2x1
jax: 0.10.0
libtpu: 0.0.40
codegen_flags: <defaults>
</compile_context>

<pallas_src>
import functools
import math
from types import SimpleNamespace

import jax
import jax.numpy as jnp
from jax.experimental import pallas as pl
from jax.experimental.pallas import tpu as pltpu


LANE = 128


def _round_up(x, m):
    return (x + m - 1) // m * m


# ----------------------------------------------------------------------------
# In-kernel math helpers (operate on values, not refs)
# ----------------------------------------------------------------------------

def _gelu(x):
    # tanh-approximation GELU (Mosaic-friendly; erf path avoided).
    c = jnp.float32(math.sqrt(2.0 / math.pi))
    return 0.5 * x * (1.0 + jnp.tanh(c * (x + 0.044715 * x * x * x)))


def _layernorm(x, g, b, eps=1e-5):
    mu = jnp.mean(x, axis=-1, keepdims=True)
    xc = x - mu
    var = jnp.mean(xc * xc, axis=-1, keepdims=True)
    return xc * jax.lax.rsqrt(var + eps) * g + b


# ----------------------------------------------------------------------------
# One fused Pallas kernel = whole Network forward (encoder + DINO head)
# ----------------------------------------------------------------------------

def _network_kernel(x_ref, w_ref, v_ref, o_ref, *, w_layout, v_layout, meta):
    dim = meta["dim"]
    H = meta["n_heads"]
    Dh = meta["head_dim"]
    n_layers = meta["n_layers"]
    hnl = meta["head_nlayers"]
    N = x_ref.shape[0]
    scale = 1.0 / math.sqrt(Dh)

    def W(name):
        off, rows, cols = w_layout[name]       # static ints -> static ref slice
        return w_ref[off:off + rows, :cols]

    def V(name):
        idx, n = v_layout[name]                # (1, n) row; broadcasts over N
        return v_ref[idx:idx + 1, :n]

    # --- embedding ---
    x = x_ref[...].astype(jnp.float32)
    h = jnp.dot(x, W("embed_w"), preferred_element_type=jnp.float32) + V("embed_b")

    # --- transformer blocks (pre-LN), fully fused, no VMEM scratch ---
    for l in range(n_layers):
        p = f"blk{l}_"
        y = _layernorm(h, V(p + "ln1_g"), V(p + "ln1_b"))
        z = jnp.dot(y, W(p + "qkv_w"), preferred_element_type=jnp.float32) + V(p + "qkv_b")

        heads = []
        for hh in range(H):
            lo = hh * Dh
            q = z[:, lo:lo + Dh]
            k = z[:, dim + lo:dim + lo + Dh]
            v = z[:, 2 * dim + lo:2 * dim + lo + Dh]
            # s = q @ k^T (contract head_dim of both operands)
            s = jax.lax.dot_general(q, k, (((1,), (1,)), ((), ())),
                                    preferred_element_type=jnp.float32) * scale
            s = s - jnp.max(s, axis=-1, keepdims=True)
            e = jnp.exp(s)
            pr = e * pl.reciprocal(jnp.sum(e, axis=-1, keepdims=True), approx=False)
            heads.append(jnp.dot(pr, v, preferred_element_type=jnp.float32))
        attn = jnp.concatenate(heads, axis=-1)          # values only, no masked stores

        # output projection + fused residual
        h = h + jnp.dot(attn, W(p + "proj_w"),
                        preferred_element_type=jnp.float32) + V(p + "proj_b")
        # MLP + fused residual
        y = _layernorm(h, V(p + "ln2_g"), V(p + "ln2_b"))
        y = _gelu(jnp.dot(y, W(p + "fc1_w"),
                          preferred_element_type=jnp.float32) + V(p + "fc1_b"))
        h = h + jnp.dot(y, W(p + "fc2_w"),
                        preferred_element_type=jnp.float32) + V(p + "fc2_b")

    # --- final encoder layernorm ---
    h = _layernorm(h, V("norm_g"), V("norm_b"))

    # --- DINO head: MLP -> bottleneck -> L2-normalize -> weight-normed last ---
    for i in range(hnl):
        h = jnp.dot(h, W(f"head{i}_w"),
                    preferred_element_type=jnp.float32) + V(f"head{i}_b")
        if i < hnl - 1:
            h = _gelu(h)

    # exact L2-normalize via a single rsqrt (no approx reciprocal on outputs)
    h = h * jax.lax.rsqrt(jnp.sum(h * h, axis=-1, keepdims=True) + 1e-12)

    # last layer's weight is zero-padded to 128 lanes -> unmasked, lane-dense store
    o_ref[...] = jnp.dot(h, W("last_w"),
                         preferred_element_type=jnp.float32).astype(o_ref.dtype)


def network_forward(w_stack, v_stack, x, layout):
    """Forward of B stacked networks (student/teacher) in one pallas_call."""
    w_layout, v_layout, meta = layout
    B, R, L = w_stack.shape
    _, Vr, _ = v_stack.shape
    N, F = x.shape
    odp = meta["out_dim_padded"]

    # Advisory cost estimate so XLA can schedule surrounding ops around us.
    flops = B * (sum(2 * N * rows * cols for (_, rows, cols) in w_layout.values())
                 + meta["n_layers"] * meta["n_heads"] * 4 * N * N * meta["head_dim"])
    trans = B * N * (meta["n_layers"] * (meta["n_heads"] * N + 4 * meta["dim"])
                     + 4 * meta["dim"])
    bytes_accessed = 4 * (x.size + w_stack.size + v_stack.size + B * N * odp)

    kernel = functools.partial(_network_kernel,
                               w_layout=w_layout, v_layout=v_layout, meta=meta)

    out = pl.pallas_call(
        kernel,
        grid=(B,),
        in_specs=[
            # x shared by every network in the stack (default memory space: VMEM)
            pl.BlockSpec((N, F), lambda i: (0, 0)),
            # per-network packed weight slab
            pl.BlockSpec((None, R, L), lambda i: (i, 0, 0)),
            # per-network packed bias / LN vector slab
            pl.BlockSpec((None, Vr, L), lambda i: (i, 0, 0)),
        ],
        out_specs=pl.BlockSpec((None, N, odp), lambda i: (i, 0, 0)),
        out_shape=jax.ShapeDtypeStruct((B, N, odp), jnp.float32),
        compiler_params=pltpu.CompilerParams(dimension_semantics=("parallel",)),
        cost_estimate=pl.CostEstimate(flops=int(flops), transcendentals=int(trans),
                                      bytes_accessed=int(bytes_accessed)),
    )(x, w_stack, v_stack)
    return out[..., :meta["out_dim"]]


# ----------------------------------------------------------------------------
# Parameter packing: two slabs per network + static layout
# ----------------------------------------------------------------------------

class _Packer:
    def __init__(self, lane=LANE):
        self.lane = lane
        self.w_parts, self.w_layout, self.w_off = [], {}, 0
        self.v_parts, self.v_layout = [], {}

    def add_w(self, name, w):
        w = jnp.asarray(w, jnp.float32)
        rows, cols = w.shape
        assert cols <= self.lane, "TODO(synk): multi-lane-tile packing for larger dims"
        rows_p = _round_up(rows, 8)
        slab = jnp.zeros((rows_p, self.lane), jnp.float32).at[:rows, :cols].set(w)
        self.w_parts.append(slab)
        self.w_layout[name] = (self.w_off, rows, cols)
        self.w_off += rows_p

    def add_v(self, name, v):
        v = jnp.asarray(v, jnp.float32)
        n = v.shape[0]
        assert n <= self.lane
        row = jnp.zeros((self.lane,), jnp.float32).at[:n].set(v)
        self.v_layout[name] = (len(self.v_parts), n)
        self.v_parts.append(row)

    def finalize(self):
        w_slab = jnp.concatenate(self.w_parts, axis=0)
        v_slab = jnp.stack(self.v_parts, axis=0)
        vr = v_slab.shape[0]
        vr_p = _round_up(vr, 8)
        if vr_p != vr:
            v_slab = jnp.concatenate(
                [v_slab, jnp.zeros((vr_p - vr, self.lane), jnp.float32)], axis=0)
        return w_slab, v_slab, self.w_layout, self.v_layout


def init_packed_network(config, key, in_features):
    enc, head = config["encoder"], config["head"]
    dim = enc["dim"]
    n_layers = enc["n_layers"]
    hid = dim * enc["mlp_ratio"]
    hdim, bdim = head["hidden_dim"], head["bottleneck_dim"]
    odim, hnl = head["out_dim"], head["n_layers"]

    keys = iter(jax.random.split(key, 64))
    packer = _Packer()

    def dense(din, dout, std=0.02):
        w = std * jax.random.normal(next(keys), (din, dout), jnp.float32)
        return w, jnp.zeros((dout,), jnp.float32)

    w, b = dense(in_features, dim)
    packer.add_w("embed_w", w)
    packer.add_v("embed_b", b)

    for l in range(n_layers):
        p = f"blk{l}_"
        packer.add_v(p + "ln1_g", jnp.ones((dim,), jnp.float32))
        packer.add_v(p + "ln1_b", jnp.zeros((dim,), jnp.float32))
        w, b = dense(dim, 3 * dim)
        packer.add_w(p + "qkv_w", w); packer.add_v(p + "qkv_b", b)
        w, b = dense(dim, dim)
        packer.add_w(p + "proj_w", w); packer.add_v(p + "proj_b", b)
        packer.add_v(p + "ln2_g", jnp.ones((dim,), jnp.float32))
        packer.add_v(p + "ln2_b", jnp.zeros((dim,), jnp.float32))
        w, b = dense(dim, hid)
        packer.add_w(p + "fc1_w", w); packer.add_v(p + "fc1_b", b)
        w, b = dense(hid, dim)
        packer.add_w(p + "fc2_w", w); packer.add_v(p + "fc2_b", b)

    packer.add_v("norm_g", jnp.ones((dim,), jnp.float32))
    packer.add_v("norm_b", jnp.zeros((dim,), jnp.float32))

    # DINO head MLP (use_bn=False), GELU between hidden layers only
    if hnl == 1:
        dims = [(dim, bdim)]
    else:
        dims = [(dim, hdim)] + [(hdim, hdim)] * (hnl - 2) + [(hdim, bdim)]
    for i, (din, dout) in enumerate(dims):
        w, b = dense(din, dout)
        packer.add_w(f"head{i}_w", w)
        packer.add_v(f"head{i}_b", b)

    # weight-normalized last layer: w = g * v / ||v||_row, g fixed to 1.
    v = 0.02 * jax.random.normal(next(keys), (odim, bdim), jnp.float32)
    v = v / jnp.sqrt(jnp.sum(v * v, axis=1, keepdims=True) + 1e-12)
    last_w = v.T                                   # [bottleneck, out_dim]
    odim_p = _round_up(odim, LANE)                 # zero-pad for lane-dense output
    if odim_p != odim:
        last_w = jnp.concatenate(
            [last_w, jnp.zeros((bdim, odim_p - odim), jnp.float32)], axis=1)
    packer.add_w("last_w", last_w)

    w_slab, v_slab, w_layout, v_layout = packer.finalize()
    meta = dict(n_layers=n_layers, n_heads=enc["n_heads"],
                head_dim=dim // enc["n_heads"], dim=dim, head_nlayers=hnl,
                out_dim=odim, out_dim_padded=odim_p)
    return {"w": w_slab, "v": v_slab}, (w_layout, v_layout, meta)


# ----------------------------------------------------------------------------
# DINO wrapper (student / teacher)
# ----------------------------------------------------------------------------

def cosine_increase_law(init, final, n):
    k = jnp.arange(int(n), dtype=jnp.float32)
    return final - (final - init) * (jnp.cos(jnp.pi * k / jnp.maximum(n - 1.0, 1.0)) + 1.0) / 2.0


class DINO:
    def __init__(self, config, key, in_features):
        self.config = config
        params, layout = init_packed_network(config, key, in_features)
        self.layout = layout
        self.student = params
        # teacher initialized as an exact copy of the student (no grads in this port)
        self.teacher = jax.tree_util.tree_map(lambda p: p, params)
        self.tau_lut = cosine_increase_law(
            config["training"]["init_momentum"],
            config["training"]["final_momentum"],
            float(config["training"]["n_steps"]) + 1,
        )

        lay = layout  # captured statically by the jitted closures

        def fwd_single(w, v, x):
            return network_forward(w[None], v[None], x, lay)[0]

        def fwd_pair(sw, sv, tw, tv, x):
            ws = jnp.stack([sw, tw])
            vs = jnp.stack([sv, tv])
            out = network_forward(ws, vs, x, lay)
            return out[0], out[1]

        self._fwd_single = jax.jit(fwd_single)
        self._fwd_pair = jax.jit(fwd_pair)

    def update_teacher(self, step):
        tau = self.tau_lut[step - 1]
        self.teacher = jax.tree_util.tree_map(
            lambda t, s: tau * t + (1.0 - tau) * s, self.teacher, self.student
        )

    def __call__(self, data, mode="student"):
        # TODO(synk): data.edge_index / data.edge_attr unused (graph
        # connectivity not modeled; Encoder source unavailable).
        p = self.student if mode == "student" else self.teacher
        return self._fwd_single(p["w"], p["v"], data.x)

    def forward_both(self, data):
        """Student + teacher forwards fused into one grid-parallel kernel."""
        return self._fwd_pair(self.student["w"], self.student["v"],
                              self.teacher["w"], self.teacher["v"], data.x)


# ----------------------------------------------------------------------------
# Main
# ----------------------------------------------------------------------------

CONFIG = {
    "model": "graph_transformer",
    "dataset": "synthetic",
    "embedding": "linear",
    "encoder": {
        "layer": "transformer", "dim": 32, "n_layers": 2, "n_heads": 4,
        "mlp_ratio": 2, "drop_rate": 0.0, "attn_drop_rate": 0.0,
        "norm_layer": "layernorm", "act_layer": "gelu",
    },
    "head": {
        "out_dim": 64, "use_bn": False, "norm_last_layer": True,
        "n_layers": 3, "hidden_dim": 64, "bottleneck_dim": 16,
    },
    "loader": {"batch_size": 2},
    "training": {"init_momentum": 0.996, "final_momentum": 1.0, "n_steps": 100},
}

if __name__ == "__main__":
    key = jax.random.PRNGKey(0)
    k_x, k_e, k_a, k_p = jax.random.split(key, 4)

    N_NODES, IN_FEATURES, N_EDGES = 8, 4, 16
    x = jax.random.normal(k_x, (N_NODES, IN_FEATURES), jnp.float32)
    edge_index = jax.random.randint(k_e, (2, N_EDGES), 0, N_NODES, jnp.int32)
    edge_attr = jax.random.normal(k_a, (N_EDGES, 1), jnp.float32)
    data = SimpleNamespace(x=x, edge_index=edge_index, edge_attr=edge_attr)

    model = DINO(CONFIG, k_p, IN_FEATURES)

    student_out = model(data, mode="student")
    teacher_out = model(data, mode="teacher")
    both_s, both_t = model.forward_both(data)       # fused 2-network grid call
    jax.block_until_ready((student_out, teacher_out, both_s, both_t))

    out_dim = CONFIG["head"]["out_dim"]
    assert student_out.shape == (N_NODES, out_dim)
    assert teacher_out.shape == (N_NODES, out_dim)
    assert both_s.shape == (N_NODES, out_dim) and both_t.shape == (N_NODES, out_dim)
    assert bool(jnp.all(jnp.isfinite(student_out)))
    assert bool(jnp.all(jnp.isfinite(teacher_out)))
    # teacher starts as an exact copy of the student -> identical outputs.
    assert bool(jnp.allclose(student_out, teacher_out))
    # fused (grid=(2,)) call matches the individual calls.
    assert bool(jnp.allclose(student_out, both_s, atol=1e-5))
    assert bool(jnp.allclose(teacher_out, both_t, atol=1e-5))

    print("KERNEL_OK")
</pallas_src>

<mosaic_0001>
module attributes {stable_mosaic.version = 11 : i64} {
  func.func @_network_kernel(%arg0: i32, %arg1: memref<8x4xf32, #tpu.memory_space<vmem>>, %arg2: memref<1x504x128xf32, #tpu.memory_space<vmem>>, %arg3: memref<1x24x128xf32, #tpu.memory_space<vmem>>, %arg4: memref<1x8x128xf32, #tpu.memory_space<vmem>>) attributes {dimension_semantics = [#tpu.dimension_semantics<parallel>], iteration_bounds = array<i64: 1>, scalar_prefetch = 0 : i64, scratch_operands = 0 : i64, tpu.core_type = #tpu.core_type<tc>, window_params = [{pipeline_mode = #tpu.pipeline_mode<synchronous>, transform_indices = @transform_0, window_bounds = array<i64: 8, 4>}, {transform_indices = @transform_1, window_bounds = array<i64: 1, 504, 128>}, {transform_indices = @transform_2, window_bounds = array<i64: 1, 24, 128>}, {transform_indices = @transform_3, window_bounds = array<i64: 1, 8, 128>}]} {
    %c0 = arith.constant 0 : index
    %c0_0 = arith.constant 0 : index
    %0 = vector.load %arg1[%c0, %c0_0] : memref<8x4xf32, #tpu.memory_space<vmem>>, vector<8x4xf32>
    %c0_1 = arith.constant 0 : index
    %c0_2 = arith.constant 0 : index
    %c0_3 = arith.constant 0 : index
    %1 = vector.load %arg2[%c0_1, %c0_2, %c0_3] : memref<1x504x128xf32, #tpu.memory_space<vmem>>, vector<1x4x32xf32>
    %2 = vector.shape_cast %1 : vector<1x4x32xf32> to vector<4x32xf32>
    %cst = arith.constant dense<0.000000e+00> : vector<8x32xf32>
    %3 = tpu.matmul %0, %2, %cst {dimension_numbers = #tpu.dot_dimension_numbers<[1], [0], [0], [1], [0, 0, 1, 1], [], []>} : vector<8x4xf32>, vector<4x32xf32>, vector<8x32xf32> -> vector<8x32xf32>
    %c0_4 = arith.constant 0 : index
    %c0_5 = arith.constant 0 : index
    %c0_6 = arith.constant 0 : index
    %4 = vector.load %arg3[%c0_4, %c0_5, %c0_6] : memref<1x24x128xf32, #tpu.memory_space<vmem>>, vector<1x1x32xf32>
    %5 = vector.shape_cast %4 : vector<1x1x32xf32> to vector<1x32xf32>
    %6 = vector.broadcast %5 : vector<1x32xf32> to vector<8x32xf32>
    %7 = arith.addf %3, %6 : vector<8x32xf32>
    %c0_7 = arith.constant 0 : index
    %c1 = arith.constant 1 : index
    %c0_8 = arith.constant 0 : index
    %8 = vector.load %arg3[%c0_7, %c1, %c0_8] : memref<1x24x128xf32, #tpu.memory_space<vmem>>, vector<1x1x32xf32>
    %9 = vector.shape_cast %8 : vector<1x1x32xf32> to vector<1x32xf32>
    %c0_9 = arith.constant 0 : index
    %c2 = arith.constant 2 : index
    %c0_10 = arith.constant 0 : index
    %10 = vector.load %arg3[%c0_9, %c2, %c0_10] : memref<1x24x128xf32, #tpu.memory_space<vmem>>, vector<1x1x32xf32>
    %11 = vector.shape_cast %10 : vector<1x1x32xf32> to vector<1x32xf32>
    %cst_11 = arith.constant dense<0.000000e+00> : vector<8xf32>
    %12 = vector.multi_reduction <add>, %7, %cst_11 [1] : vector<8x32xf32> to vector<8xf32>
    %13 = vector.shape_cast %12 : vector<8xf32> to vector<8x1xf32>
    %cst_12 = arith.constant 3.200000e+01 : f32
    %14 = vector.broadcast %cst_12 : f32 to vector<8x1xf32>
    %15 = arith.divf %13, %14 : vector<8x1xf32>
    %16 = vector.broadcast %15 : vector<8x1xf32> to vector<8x32xf32>
    %17 = arith.subf %7, %16 : vector<8x32xf32>
    %18 = arith.mulf %17, %17 : vector<8x32xf32>
    %cst_13 = arith.constant dense<0.000000e+00> : vector<8xf32>
    %19 = vector.multi_reduction <add>, %18, %cst_13 [1] : vector<8x32xf32> to vector<8xf32>
    %20 = vector.shape_cast %19 : vector<8xf32> to vector<8x1xf32>
    %cst_14 = arith.constant 3.200000e+01 : f32
    %21 = vector.broadcast %cst_14 : f32 to vector<8x1xf32>
    %22 = arith.divf %20, %21 : vector<8x1xf32>
    %cst_15 = arith.constant 9.99999974E-6 : f32
    %23 = vector.broadcast %cst_15 : f32 to vector<8x1xf32>
    %24 = arith.addf %22, %23 : vector<8x1xf32>
    %25 = math.rsqrt %24 : vector<8x1xf32>
    %26 = vector.broadcast %25 : vector<8x1xf32> to vector<8x32xf32>
    %27 = arith.mulf %17, %26 : vector<8x32xf32>
    %28 = vector.broadcast %9 : vector<1x32xf32> to vector<8x32xf32>
    %29 = arith.mulf %27, %28 : vector<8x32xf32>
    %30 = vector.broadcast %11 : vector<1x32xf32> to vector<8x32xf32>
    %31 = arith.addf %29, %30 : vector<8x32xf32>
    %c0_16 = arith.constant 0 : index
    %c8 = arith.constant 8 : index
    %c0_17 = arith.constant 0 : index
    %32 = vector.load %arg2[%c0_16, %c8, %c0_17] : memref<1x504x128xf32, #tpu.memory_space<vmem>>, vector<1x32x96xf32>
    %33 = vector.shape_cast %32 : vector<1x32x96xf32> to vector<32x96xf32>
    %cst_18 = arith.constant dense<0.000000e+00> : vector<8x96xf32>
    %34 = tpu.matmul %31, %33, %cst_18 {dimension_numbers = #tpu.dot_dimension_numbers<[1], [0], [0], [1], [0, 0, 1, 1], [], []>} : vector<8x32xf32>, vector<32x96xf32>, vector<8x96xf32> -> vector<8x96xf32>
    %c0_19 = arith.constant 0 : index
    %c3 = arith.constant 3 : index
    %c0_20 = arith.constant 0 : index
    %35 = vector.load %arg3[%c0_19, %c3, %c0_20] : memref<1x24x128xf32, #tpu.memory_space<vmem>>, vector<1x1x96xf32>
    %36 = vector.shape_cast %35 : vector<1x1x96xf32> to vector<1x96xf32>
    %37 = vector.broadcast %36 : vector<1x96xf32> to vector<8x96xf32>
    %38 = arith.addf %34, %37 : vector<8x96xf32>
    %39 = vector.extract_strided_slice %38 {offsets = [0, 0], sizes = [8, 8], strides = [1, 1]} : vector<8x96xf32> to vector<8x8xf32>
    %40 = vector.extract_strided_slice %38 {offsets = [0, 32], sizes = [8, 8], strides = [1, 1]} : vector<8x96xf32> to vector<8x8xf32>
    %41 = vector.extract_strided_slice %38 {offsets = [0, 64], sizes = [8, 8], strides = [1, 1]} : vector<8x96xf32> to vector<8x8xf32>
    %cst_21 = arith.constant dense<0.000000e+00> : vector<8x8xf32>
    %42 = tpu.matmul %39, %40, %cst_21 {dimension_numbers = #tpu.dot_dimension_numbers<[1], [1], [0], [0], [0, 0, 1, 0], [], []>} : vector<8x8xf32>, vector<8x8xf32>, vector<8x8xf32> -> vector<8x8xf32>
    %cst_22 = arith.constant 0.353553385 : f32
    %43 = vector.broadcast %cst_22 : f32 to vector<8x8xf32>
    %44 = arith.mulf %42, %43 : vector<8x8xf32>
    %cst_23 = arith.constant dense<0xFF800000> : vector<8xf32>
    %45 = vector.multi_reduction <maximumf>, %44, %cst_23 [1] : vector<8x8xf32> to vector<8xf32>
    %46 = vector.shape_cast %45 : vector<8xf32> to vector<8x1xf32>
    %47 = vector.broadcast %46 : vector<8x1xf32> to vector<8x8xf32>
    %48 = arith.subf %44, %47 : vector<8x8xf32>
    %49 = math.exp %48 : vector<8x8xf32>
    %cst_24 = arith.constant dense<0.000000e+00> : vector<8xf32>
    %50 = vector.multi_reduction <add>, %49, %cst_24 [1] : vector<8x8xf32> to vector<8xf32>
    %51 = vector.shape_cast %50 : vector<8xf32> to vector<8x1xf32>
    %52 = tpu.reciprocal %51 : vector<8x1xf32> -> vector<8x1xf32>
    %53 = vector.broadcast %52 : vector<8x1xf32> to vector<8x8xf32>
    %54 = arith.mulf %49, %53 : vector<8x8xf32>
    %cst_25 = arith.constant dense<0.000000e+00> : vector<8x8xf32>
    %55 = tpu.matmul %54, %41, %cst_25 {dimension_numbers = #tpu.dot_dimension_numbers<[1], [0], [0], [1], [0, 0, 1, 1], [], []>} : vector<8x8xf32>, vector<8x8xf32>, vector<8x8xf32> -> vector<8x8xf32>
    %56 = vector.extract_strided_slice %38 {offsets = [0, 8], sizes = [8, 8], strides = [1, 1]} : vector<8x96xf32> to vector<8x8xf32>
    %57 = vector.extract_strided_slice %38 {offsets = [0, 40], sizes = [8, 8], strides = [1, 1]} : vector<8x96xf32> to vector<8x8xf32>
    %58 = vector.extract_strided_slice %38 {offsets = [0, 72], sizes = [8, 8], strides = [1, 1]} : vector<8x96xf32> to vector<8x8xf32>
    %cst_26 = arith.constant dense<0.000000e+00> : vector<8x8xf32>
    %59 = tpu.matmul %56, %57, %cst_26 {dimension_numbers = #tpu.dot_dimension_numbers<[1], [1], [0], [0], [0, 0, 1, 0], [], []>} : vector<8x8xf32>, vector<8x8xf32>, vector<8x8xf32> -> vector<8x8xf32>
    %cst_27 = arith.constant 0.353553385 : f32
    %60 = vector.broadcast %cst_27 : f32 to vector<8x8xf32>
    %61 = arith.mulf %59, %60 : vector<8x8xf32>
    %cst_28 = arith.constant dense<0xFF800000> : vector<8xf32>
    %62 = vector.multi_reduction <maximumf>, %61, %cst_28 [1] : vector<8x8xf32> to vector<8xf32>
    %63 = vector.shape_cast %62 : vector<8xf32> to vector<8x1xf32>
    %64 = vector.broadcast %63 : vector<8x1xf32> to vector<8x8xf32>
    %65 = arith.subf %61, %64 : vector<8x8xf32>
    %66 = math.exp %65 : vector<8x8xf32>
    %cst_29 = arith.constant dense<0.000000e+00> : vector<8xf32>
    %67 = vector.multi_reduction <add>, %66, %cst_29 [1] : vector<8x8xf32> to vector<8xf32>
    %68 = vector.shape_cast %67 : vector<8xf32> to vector<8x1xf32>
    %69 = tpu.reciprocal %68 : vector<8x1xf32> -> vector<8x1xf32>
    %70 = vector.broadcast %69 : vector<8x1xf32> to vector<8x8xf32>
    %71 = arith.mulf %66, %70 : vector<8x8xf32>
    %cst_30 = arith.constant dense<0.000000e+00> : vector<8x8xf32>
    %72 = tpu.matmul %71, %58, %cst_30 {dimension_numbers = #tpu.dot_dimension_numbers<[1], [0], [0], [1], [0, 0, 1, 1], [], []>} : vector<8x8xf32>, vector<8x8xf32>, vector<8x8xf32> -> vector<8x8xf32>
    %73 = vector.extract_strided_slice %38 {offsets = [0, 16], sizes = [8, 8], strides = [1, 1]} : vector<8x96xf32> to vector<8x8xf32>
    %74 = vector.extract_strided_slice %38 {offsets = [0, 48], sizes = [8, 8], strides = [1, 1]} : vector<8x96xf32> to vector<8x8xf32>
    %75 = vector.extract_strided_slice %38 {offsets = [0, 80], sizes = [8, 8], strides = [1, 1]} : vector<8x96xf32> to vector<8x8xf32>
    %cst_31 = arith.constant dense<0.000000e+00> : vector<8x8xf32>
    %76 = tpu.matmul %73, %74, %cst_31 {dimension_numbers = #tpu.dot_dimension_numbers<[1], [1], [0], [0], [0, 0, 1, 0], [], []>} : vector<8x8xf32>, vector<8x8xf32>, vector<8x8xf32> -> vector<8x8xf32>
    %cst_32 = arith.constant 0.353553385 : f32
    %77 = vector.broadcast %cst_32 : f32 to vector<8x8xf32>
    %78 = arith.mulf %76, %77 : vector<8x8xf32>
    %cst_33 = arith.constant dense<0xFF800000> : vector<8xf32>
    %79 = vector.multi_reduction <maximumf>, %78, %cst_33 [1] : vector<8x8xf32> to vector<8xf32>
    %80 = vector.shape_cast %79 : vector<8xf32> to vector<8x1xf32>
    %81 = vector.broadcast %80 : vector<8x1xf32> to vector<8x8xf32>
    %82 = arith.subf %78, %81 : vector<8x8xf32>
    %83 = math.exp %82 : vector<8x8xf32>
    %cst_34 = arith.constant dense<0.000000e+00> : vector<8xf32>
    %84 = vector.multi_reduction <add>, %83, %cst_34 [1] : vector<8x8xf32> to vector<8xf32>
    %85 = vector.shape_cast %84 : vector<8xf32> to vector<8x1xf32>
    %86 = tpu.reciprocal %85 : vector<8x1xf32> -> vector<8x1xf32>
    %87 = vector.broadcast %86 : vector<8x1xf32> to vector<8x8xf32>
    %88 = arith.mulf %83, %87 : vector<8x8xf32>
    %cst_35 = arith.constant dense<0.000000e+00> : vector<8x8xf32>
    %89 = tpu.matmul %88, %75, %cst_35 {dimension_numbers = #tpu.dot_dimension_numbers<[1], [0], [0], [1], [0, 0, 1, 1], [], []>} : vector<8x8xf32>, vector<8x8xf32>, vector<8x8xf32> -> vector<8x8xf32>
    %90 = vector.extract_strided_slice %38 {offsets = [0, 24], sizes = [8, 8], strides = [1, 1]} : vector<8x96xf32> to vector<8x8xf32>
    %91 = vector.extract_strided_slice %38 {offsets = [0, 56], sizes = [8, 8], strides = [1, 1]} : vector<8x96xf32> to vector<8x8xf32>
    %92 = vector.extract_strided_slice %38 {offsets = [0, 88], sizes = [8, 8], strides = [1, 1]} : vector<8x96xf32> to vector<8x8xf32>
    %cst_36 = arith.constant dense<0.000000e+00> : vector<8x8xf32>
    %93 = tpu.matmul %90, %91, %cst_36 {dimension_numbers = #tpu.dot_dimension_numbers<[1], [1], [0], [0], [0, 0, 1, 0], [], []>} : vector<8x8xf32>, vector<8x8xf32>, vector<8x8xf32> -> vector<8x8xf32>
    %cst_37 = arith.constant 0.353553385 : f32
    %94 = vector.broadcast %cst_37 : f32 to vector<8x8xf32>
    %95 = arith.mulf %93, %94 : vector<8x8xf32>
    %cst_38 = arith.constant dense<0xFF800000> : vector<8xf32>
    %96 = vector.multi_reduction <maximumf>, %95, %cst_38 [1] : vector<8x8xf32> to vector<8xf32>
    %97 = vector.shape_cast %96 : vector<8xf32> to vector<8x1xf32>
    %98 = vector.broadcast %97 : vector<8x1xf32> to vector<8x8xf32>
    %99 = arith.subf %95, %98 : vector<8x8xf32>
    %100 = math.exp %99 : vector<8x8xf32>
    %cst_39 = arith.constant dense<0.000000e+00> : vector<8xf32>
    %101 = vector.multi_reduction <add>, %100, %cst_39 [1] : vector<8x8xf32> to vector<8xf32>
    %102 = vector.shape_cast %101 : vector<8xf32> to vector<8x1xf32>
    %103 = tpu.reciprocal %102 : vector<8x1xf32> -> vector<8x1xf32>
    %104 = vector.broadcast %103 : vector<8x1xf32> to vector<8x8xf32>
    %105 = arith.mulf %100, %104 : vector<8x8xf32>
    %cst_40 = arith.constant dense<0.000000e+00> : vector<8x8xf32>
    %106 = tpu.matmul %105, %92, %cst_40 {dimension_numbers = #tpu.dot_dimension_numbers<[1], [0], [0], [1], [0, 0, 1, 1], [], []>} : vector<8x8xf32>, vector<8x8xf32>, vector<8x8xf32> -> vector<8x8xf32>
    %107 = tpu.concatenate %55, %72, %89, %106 in 1 : vector<8x8xf32>, vector<8x8xf32>, vector<8x8xf32>, vector<8x8xf32> -> vector<8x32xf32>
    %c0_41 = arith.constant 0 : index
    %c40 = arith.constant 40 : index
    %c0_42 = arith.constant 0 : index
    %108 = vector.load %arg2[%c0_41, %c40, %c0_42] : memref<1x504x128xf32, #tpu.memory_space<vmem>>, vector<1x32x32xf32>
    %109 = vector.shape_cast %108 : vector<1x32x32xf32> to vector<32x32xf32>
    %cst_43 = arith.constant dense<0.000000e+00> : vector<8x32xf32>
    %110 = tpu.matmul %107, %109, %cst_43 {dimension_numbers = #tpu.dot_dimension_numbers<[1], [0], [0], [1], [0, 0, 1, 1], [], []>} : vector<8x32xf32>, vector<32x32xf32>, vector<8x32xf32> -> vector<8x32xf32>
    %111 = arith.addf %7, %110 : vector<8x32xf32>
    %c0_44 = arith.constant 0 : index
    %c4 = arith.constant 4 : index
    %c0_45 = arith.constant 0 : index
    %112 = vector.load %arg3[%c0_44, %c4, %c0_45] : memref<1x24x128xf32, #tpu.memory_space<vmem>>, vector<1x1x32xf32>
    %113 = vector.shape_cast %112 : vector<1x1x32xf32> to vector<1x32xf32>
    %114 = vector.broadcast %113 : vector<1x32xf32> to vector<8x32xf32>
    %115 = arith.addf %111, %114 : vector<8x32xf32>
    %c0_46 = arith.constant 0 : index
    %c5 = arith.constant 5 : index
    %c0_47 = arith.constant 0 : index
    %116 = vector.load %arg3[%c0_46, %c5, %c0_47] : memref<1x24x128xf32, #tpu.memory_space<vmem>>, vector<1x1x32xf32>
    %117 = vector.shape_cast %116 : vector<1x1x32xf32> to vector<1x32xf32>
    %c0_48 = arith.constant 0 : index
    %c6 = arith.constant 6 : index
    %c0_49 = arith.constant 0 : index
    %118 = vector.load %arg3[%c0_48, %c6, %c0_49] : memref<1x24x128xf32, #tpu.memory_space<vmem>>, vector<1x1x32xf32>
    %119 = vector.shape_cast %118 : vector<1x1x32xf32> to vector<1x32xf32>
    %cst_50 = arith.constant dense<0.000000e+00> : vector<8xf32>
    %120 = vector.multi_reduction <add>, %115, %cst_50 [1] : vector<8x32xf32> to vector<8xf32>
    %121 = vector.shape_cast %120 : vector<8xf32> to vector<8x1xf32>
    %cst_51 = arith.constant 3.200000e+01 : f32
    %122 = vector.broadcast %cst_51 : f32 to vector<8x1xf32>
    %123 = arith.divf %121, %122 : vector<8x1xf32>
    %124 = vector.broadcast %123 : vector<8x1xf32> to vector<8x32xf32>
    %125 = arith.subf %115, %124 : vector<8x32xf32>
    %126 = arith.mulf %125, %125 : vector<8x32xf32>
    %cst_52 = arith.constant dense<0.000000e+00> : vector<8xf32>
    %127 = vector.multi_reduction <add>, %126, %cst_52 [1] : vector<8x32xf32> to vector<8xf32>
    %128 = vector.shape_cast %127 : vector<8xf32> to vector<8x1xf32>
    %cst_53 = arith.constant 3.200000e+01 : f32
    %129 = vector.broadcast %cst_53 : f32 to vector<8x1xf32>
    %130 = arith.divf %128, %129 : vector<8x1xf32>
    %cst_54 = arith.constant 9.99999974E-6 : f32
    %131 = vector.broadcast %cst_54 : f32 to vector<8x1xf32>
    %132 = arith.addf %130, %131 : vector<8x1xf32>
    %133 = math.rsqrt %132 : vector<8x1xf32>
    %134 = vector.broadcast %133 : vector<8x1xf32> to vector<8x32xf32>
    %135 = arith.mulf %125, %134 : vector<8x32xf32>
    %136 = vector.broadcast %117 : vector<1x32xf32> to vector<8x32xf32>
    %137 = arith.mulf %135, %136 : vector<8x32xf32>
    %138 = vector.broadcast %119 : vector<1x32xf32> to vector<8x32xf32>
    %139 = arith.addf %137, %138 : vector<8x32xf32>
    %c0_55 = arith.constant 0 : index
    %c72 = arith.constant 72 : index
    %c0_56 = arith.constant 0 : index
    %140 = vector.load %arg2[%c0_55, %c72, %c0_56] : memref<1x504x128xf32, #tpu.memory_space<vmem>>, vector<1x32x64xf32>
    %141 = vector.shape_cast %140 : vector<1x32x64xf32> to vector<32x64xf32>
    %cst_57 = arith.constant dense<0.000000e+00> : vector<8x64xf32>
    %142 = tpu.matmul %139, %141, %cst_57 {dimension_numbers = #tpu.dot_dimension_numbers<[1], [0], [0], [1], [0, 0, 1, 1], [], []>} : vector<8x32xf32>, vector<32x64xf32>, vector<8x64xf32> -> vector<8x64xf32>
    %c0_58 = arith.constant 0 : index
    %c7 = arith.constant 7 : index
    %c0_59 = arith.constant 0 : index
    %143 = vector.load %arg3[%c0_58, %c7, %c0_59] : memref<1x24x128xf32, #tpu.memory_space<vmem>>, vector<1x1x64xf32>
    %144 = vector.shape_cast %143 : vector<1x1x64xf32> to vector<1x64xf32>
    %145 = vector.broadcast %144 : vector<1x64xf32> to vector<8x64xf32>
    %146 = arith.addf %142, %145 : vector<8x64xf32>
    %cst_60 = arith.constant 5.000000e-01 : f32
    %147 = vector.broadcast %cst_60 : f32 to vector<8x64xf32>
    %148 = arith.mulf %147, %146 : vector<8x64xf32>
    %cst_61 = arith.constant 4.471500e-02 : f32
    %149 = vector.broadcast %cst_61 : f32 to vector<8x64xf32>
    %150 = arith.mulf %149, %146 : vector<8x64xf32>
    %151 = arith.mulf %150, %146 : vector<8x64xf32>
    %152 = arith.mulf %151, %146 : vector<8x64xf32>
    %153 = arith.addf %146, %152 : vector<8x64xf32>
    %cst_62 = arith.constant 0.797884583 : f32
    %154 = vector.broadcast %cst_62 : f32 to vector<8x64xf32>
    %155 = arith.mulf %154, %153 : vector<8x64xf32>
    %156 = math.tanh %155 : vector<8x64xf32>
    %cst_63 = arith.constant 1.000000e+00 : f32
    %157 = vector.broadcast %cst_63 : f32 to vector<8x64xf32>
    %158 = arith.addf %157, %156 : vector<8x64xf32>
    %159 = arith.mulf %148, %158 : vector<8x64xf32>
    %c0_64 = arith.constant 0 : index
    %c104 = arith.constant 104 : index
    %c0_65 = arith.constant 0 : index
    %160 = vector.load %arg2[%c0_64, %c104, %c0_65] : memref<1x504x128xf32, #tpu.memory_space<vmem>>, vector<1x64x32xf32>
    %161 = vector.shape_cast %160 : vector<1x64x32xf32> to vector<64x32xf32>
    %cst_66 = arith.constant dense<0.000000e+00> : vector<8x32xf32>
    %162 = tpu.matmul %159, %161, %cst_66 {dimension_numbers = #tpu.dot_dimension_numbers<[1], [0], [0], [1], [0, 0, 1, 1], [], []>} : vector<8x64xf32>, vector<64x32xf32>, vector<8x32xf32> -> vector<8x32xf32>
    %163 = arith.addf %115, %162 : vector<8x32xf32>
    %c0_67 = arith.constant 0 : index
    %c8_68 = arith.constant 8 : index
    %c0_69 = arith.constant 0 : index
    %164 = vector.load %arg3[%c0_67, %c8_68, %c0_69] : memref<1x24x128xf32, #tpu.memory_space<vmem>>, vector<1x1x32xf32>
    %165 = vector.shape_cast %164 : vector<1x1x32xf32> to vector<1x32xf32>
    %166 = vector.broadcast %165 : vector<1x32xf32> to vector<8x32xf32>
    %167 = arith.addf %163, %166 : vector<8x32xf32>
    %c0_70 = arith.constant 0 : index
    %c9 = arith.constant 9 : index
    %c0_71 = arith.constant 0 : index
    %168 = vector.load %arg3[%c0_70, %c9, %c0_71] : memref<1x24x128xf32, #tpu.memory_space<vmem>>, vector<1x1x32xf32>
    %169 = vector.shape_cast %168 : vector<1x1x32xf32> to vector<1x32xf32>
    %c0_72 = arith.constant 0 : index
    %c10 = arith.constant 10 : index
    %c0_73 = arith.constant 0 : index
    %170 = vector.load %arg3[%c0_72, %c10, %c0_73] : memref<1x24x128xf32, #tpu.memory_space<vmem>>, vector<1x1x32xf32>
    %171 = vector.shape_cast %170 : vector<1x1x32xf32> to vector<1x32xf32>
    %cst_74 = arith.constant dense<0.000000e+00> : vector<8xf32>
    %172 = vector.multi_reduction <add>, %167, %cst_74 [1] : vector<8x32xf32> to vector<8xf32>
    %173 = vector.shape_cast %172 : vector<8xf32> to vector<8x1xf32>
    %cst_75 = arith.constant 3.200000e+01 : f32
    %174 = vector.broadcast %cst_75 : f32 to vector<8x1xf32>
    %175 = arith.divf %173, %174 : vector<8x1xf32>
    %176 = vector.broadcast %175 : vector<8x1xf32> to vector<8x32xf32>
    %177 = arith.subf %167, %176 : vector<8x32xf32>
    %178 = arith.mulf %177, %177 : vector<8x32xf32>
    %cst_76 = arith.constant dense<0.000000e+00> : vector<8xf32>
    %179 = vector.multi_reduction <add>, %178, %cst_76 [1] : vector<8x32xf32> to vector<8xf32>
    %180 = vector.shape_cast %179 : vector<8xf32> to vector<8x1xf32>
    %cst_77 = arith.constant 3.200000e+01 : f32
    %181 = vector.broadcast %cst_77 : f32 to vector<8x1xf32>
    %182 = arith.divf %180, %181 : vector<8x1xf32>
    %cst_78 = arith.constant 9.99999974E-6 : f32
    %183 = vector.broadcast %cst_78 : f32 to vector<8x1xf32>
    %184 = arith.addf %182, %183 : vector<8x1xf32>
    %185 = math.rsqrt %184 : vector<8x1xf32>
    %186 = vector.broadcast %185 : vector<8x1xf32> to vector<8x32xf32>
    %187 = arith.mulf %177, %186 : vector<8x32xf32>
    %188 = vector.broadcast %169 : vector<1x32xf32> to vector<8x32xf32>
    %189 = arith.mulf %187, %188 : vector<8x32xf32>
    %190 = vector.broadcast %171 : vector<1x32xf32> to vector<8x32xf32>
    %191 = arith.addf %189, %190 : vector<8x32xf32>
    %c0_79 = arith.constant 0 : index
    %c168 = arith.constant 168 : index
    %c0_80 = arith.constant 0 : index
    %192 = vector.load %arg2[%c0_79, %c168, %c0_80] : memref<1x504x128xf32, #tpu.memory_space<vmem>>, vector<1x32x96xf32>
    %193 = vector.shape_cast %192 : vector<1x32x96xf32> to vector<32x96xf32>
    %cst_81 = arith.constant dense<0.000000e+00> : vector<8x96xf32>
    %194 = tpu.matmul %191, %193, %cst_81 {dimension_numbers = #tpu.dot_dimension_numbers<[1], [0], [0], [1], [0, 0, 1, 1], [], []>} : vector<8x32xf32>, vector<32x96xf32>, vector<8x96xf32> -> vector<8x96xf32>
    %c0_82 = arith.constant 0 : index
    %c11 = arith.constant 11 : index
    %c0_83 = arith.constant 0 : index
    %195 = vector.load %arg3[%c0_82, %c11, %c0_83] : memref<1x24x128xf32, #tpu.memory_space<vmem>>, vector<1x1x96xf32>
    %196 = vector.shape_cast %195 : vector<1x1x96xf32> to vector<1x96xf32>
    %197 = vector.broadcast %196 : vector<1x96xf32> to vector<8x96xf32>
    %198 = arith.addf %194, %197 : vector<8x96xf32>
    %199 = vector.extract_strided_slice %198 {offsets = [0, 0], sizes = [8, 8], strides = [1, 1]} : vector<8x96xf32> to vector<8x8xf32>
    %200 = vector.extract_strided_slice %198 {offsets = [0, 32], sizes = [8, 8], strides = [1, 1]} : vector<8x96xf32> to vector<8x8xf32>
    %201 = vector.extract_strided_slice %198 {offsets = [0, 64], sizes = [8, 8], strides = [1, 1]} : vector<8x96xf32> to vector<8x8xf32>
    %cst_84 = arith.constant dense<0.000000e+00> : vector<8x8xf32>
    %202 = tpu.matmul %199, %200, %cst_84 {dimension_numbers = #tpu.dot_dimension_numbers<[1], [1], [0], [0], [0, 0, 1, 0], [], []>} : vector<8x8xf32>, vector<8x8xf32>, vector<8x8xf32> -> vector<8x8xf32>
    %cst_85 = arith.constant 0.353553385 : f32
    %203 = vector.broadcast %cst_85 : f32 to vector<8x8xf32>
    %204 = arith.mulf %202, %203 : vector<8x8xf32>
    %cst_86 = arith.constant dense<0xFF800000> : vector<8xf32>
    %205 = vector.multi_reduction <maximumf>, %204, %cst_86 [1] : vector<8x8xf32> to vector<8xf32>
    %206 = vector.shape_cast %205 : vector<8xf32> to vector<8x1xf32>
    %207 = vector.broadcast %206 : vector<8x1xf32> to vector<8x8xf32>
    %208 = arith.subf %204, %207 : vector<8x8xf32>
    %209 = math.exp %208 : vector<8x8xf32>
    %cst_87 = arith.constant dense<0.000000e+00> : vector<8xf32>
    %210 = vector.multi_reduction <add>, %209, %cst_87 [1] : vector<8x8xf32> to vector<8xf32>
    %211 = vector.shape_cast %210 : vector<8xf32> to vector<8x1xf32>
    %212 = tpu.reciprocal %211 : vector<8x1xf32> -> vector<8x1xf32>
    %213 = vector.broadcast %212 : vector<8x1xf32> to vector<8x8xf32>
    %214 = arith.mulf %209, %213 : vector<8x8xf32>
    %cst_88 = arith.constant dense<0.000000e+00> : vector<8x8xf32>
    %215 = tpu.matmul %214, %201, %cst_88 {dimension_numbers = #tpu.dot_dimension_numbers<[1], [0], [0], [1], [0, 0, 1, 1], [], []>} : vector<8x8xf32>, vector<8x8xf32>, vector<8x8xf32> -> vector<8x8xf32>
    %216 = vector.extract_strided_slice %198 {offsets = [0, 8], sizes = [8, 8], strides = [1, 1]} : vector<8x96xf32> to vector<8x8xf32>
    %217 = vector.extract_strided_slice %198 {offsets = [0, 40], sizes = [8, 8], strides = [1, 1]} : vector<8x96xf32> to vector<8x8xf32>
    %218 = vector.extract_strided_slice %198 {offsets = [0, 72], sizes = [8, 8], strides = [1, 1]} : vector<8x96xf32> to vector<8x8xf32>
    %cst_89 = arith.constant dense<0.000000e+00> : vector<8x8xf32>
    %219 = tpu.matmul %216, %217, %cst_89 {dimension_numbers = #tpu.dot_dimension_numbers<[1], [1], [0], [0], [0, 0, 1, 0], [], []>} : vector<8x8xf32>, vector<8x8xf32>, vector<8x8xf32> -> vector<8x8xf32>
    %cst_90 = arith.constant 0.353553385 : f32
    %220 = vector.broadcast %cst_90 : f32 to vector<8x8xf32>
    %221 = arith.mulf %219, %220 : vector<8x8xf32>
    %cst_91 = arith.constant dense<0xFF800000> : vector<8xf32>
    %222 = vector.multi_reduction <maximumf>, %221, %cst_91 [1] : vector<8x8xf32> to vector<8xf32>
    %223 = vector.shape_cast %222 : vector<8xf32> to vector<8x1xf32>
    %224 = vector.broadcast %223 : vector<8x1xf32> to vector<8x8xf32>
    %225 = arith.subf %221, %224 : vector<8x8xf32>
    %226 = math.exp %225 : vector<8x8xf32>
    %cst_92 = arith.constant dense<0.000000e+00> : vector<8xf32>
    %227 = vector.multi_reduction <add>, %226, %cst_92 [1] : vector<8x8xf32> to vector<8xf32>
    %228 = vector.shape_cast %227 : vector<8xf32> to vector<8x1xf32>
    %229 = tpu.reciprocal %228 : vector<8x1xf32> -> vector<8x1xf32>
    %230 = vector.broadcast %229 : vector<8x1xf32> to vector<8x8xf32>
    %231 = arith.mulf %226, %230 : vector<8x8xf32>
    %cst_93 = arith.constant dense<0.000000e+00> : vector<8x8xf32>
    %232 = tpu.matmul %231, %218, %cst_93 {dimension_numbers = #tpu.dot_dimension_numbers<[1], [0], [0], [1], [0, 0, 1, 1], [], []>} : vector<8x8xf32>, vector<8x8xf32>, vector<8x8xf32> -> vector<8x8xf32>
    %233 = vector.extract_strided_slice %198 {offsets = [0, 16], sizes = [8, 8], strides = [1, 1]} : vector<8x96xf32> to vector<8x8xf32>
    %234 = vector.extract_strided_slice %198 {offsets = [0, 48], sizes = [8, 8], strides = [1, 1]} : vector<8x96xf32> to vector<8x8xf32>
    %235 = vector.extract_strided_slice %198 {offsets = [0, 80], sizes = [8, 8], strides = [1, 1]} : vector<8x96xf32> to vector<8x8xf32>
    %cst_94 = arith.constant dense<0.000000e+00> : vector<8x8xf32>
    %236 = tpu.matmul %233, %234, %cst_94 {dimension_numbers = #tpu.dot_dimension_numbers<[1], [1], [0], [0], [0, 0, 1, 0], [], []>} : vector<8x8xf32>, vector<8x8xf32>, vector<8x8xf32> -> vector<8x8xf32>
    %cst_95 = arith.constant 0.353553385 : f32
    %237 = vector.broadcast %cst_95 : f32 to vector<8x8xf32>
    %238 = arith.mulf %236, %237 : vector<8x8xf32>
    %cst_96 = arith.constant dense<0xFF800000> : vector<8xf32>
    %239 = vector.multi_reduction <maximumf>, %238, %cst_96 [1] : vector<8x8xf32> to vector<8xf32>
    %240 = vector.shape_cast %239 : vector<8xf32> to vector<8x1xf32>
    %241 = vector.broadcast %240 : vector<8x1xf32> to vector<8x8xf32>
    %242 = arith.subf %238, %241 : vector<8x8xf32>
    %243 = math.exp %242 : vector<8x8xf32>
    %cst_97 = arith.constant dense<0.000000e+00> : vector<8xf32>
    %244 = vector.multi_reduction <add>, %243, %cst_97 [1] : vector<8x8xf32> to vector<8xf32>
    %245 = vector.shape_cast %244 : vector<8xf32> to vector<8x1xf32>
    %246 = tpu.reciprocal %245 : vector<8x1xf32> -> vector<8x1xf32>
    %247 = vector.broadcast %246 : vector<8x1xf32> to vector<8x8xf32>
    %248 = arith.mulf %243, %247 : vector<8x8xf32>
    %cst_98 = arith.constant dense<0.000000e+00> : vector<8x8xf32>
    %249 = tpu.matmul %248, %235, %cst_98 {dimension_numbers = #tpu.dot_dimension_numbers<[1], [0], [0], [1], [0, 0, 1, 1], [], []>} : vector<8x8xf32>, vector<8x8xf32>, vector<8x8xf32> -> vector<8x8xf32>
    %250 = vector.extract_strided_slice %198 {offsets = [0, 24], sizes = [8, 8], strides = [1, 1]} : vector<8x96xf32> to vector<8x8xf32>
    %251 = vector.extract_strided_slice %198 {offsets = [0, 56], sizes = [8, 8], strides = [1, 1]} : vector<8x96xf32> to vector<8x8xf32>
    %252 = vector.extract_strided_slice %198 {offsets = [0, 88], sizes = [8, 8], strides = [1, 1]} : vector<8x96xf32> to vector<8x8xf32>
    %cst_99 = arith.constant dense<0.000000e+00> : vector<8x8xf32>
    %253 = tpu.matmul %250, %251, %cst_99 {dimension_numbers = #tpu.dot_dimension_numbers<[1], [1], [0], [0], [0, 0, 1, 0], [], []>} : vector<8x8xf32>, vector<8x8xf32>, vector<8x8xf32> -> vector<8x8xf32>
    %cst_100 = arith.constant 0.353553385 : f32
    %254 = vector.broadcast %cst_100 : f32 to vector<8x8xf32>
    %255 = arith.mulf %253, %254 : vector<8x8xf32>
    %cst_101 = arith.constant dense<0xFF800000> : vector<8xf32>
    %256 = vector.multi_reduction <maximumf>, %255, %cst_101 [1] : vector<8x8xf32> to vector<8xf32>
    %257 = vector.shape_cast %256 : vector<8xf32> to vector<8x1xf32>
    %258 = vector.broadcast %257 : vector<8x1xf32> to vector<8x8xf32>
    %259 = arith.subf %255, %258 : vector<8x8xf32>
    %260 = math.exp %259 : vector<8x8xf32>
    %cst_102 = arith.constant dense<0.000000e+00> : vector<8xf32>
    %261 = vector.multi_reduction <add>, %260, %cst_102 [1] : vector<8x8xf32> to vector<8xf32>
    %262 = vector.shape_cast %261 : vector<8xf32> to vector<8x1xf32>
    %263 = tpu.reciprocal %262 : vector<8x1xf32> -> vector<8x1xf32>
    %264 = vector.broadcast %263 : vector<8x1xf32> to vector<8x8xf32>
    %265 = arith.mulf %260, %264 : vector<8x8xf32>
    %cst_103 = arith.constant dense<0.000000e+00> : vector<8x8xf32>
    %266 = tpu.matmul %265, %252, %cst_103 {dimension_numbers = #tpu.dot_dimension_numbers<[1], [0], [0], [1], [0, 0, 1, 1], [], []>} : vector<8x8xf32>, vector<8x8xf32>, vector<8x8xf32> -> vector<8x8xf32>
    %267 = tpu.concatenate %215, %232, %249, %266 in 1 : vector<8x8xf32>, vector<8x8xf32>, vector<8x8xf32>, vector<8x8xf32> -> vector<8x32xf32>
    %c0_104 = arith.constant 0 : index
    %c200 = arith.constant 200 : index
    %c0_105 = arith.constant 0 : index
    %268 = vector.load %arg2[%c0_104, %c200, %c0_105] : memref<1x504x128xf32, #tpu.memory_space<vmem>>, vector<1x32x32xf32>
    %269 = vector.shape_cast %268 : vector<1x32x32xf32> to vector<32x32xf32>
    %cst_106 = arith.constant dense<0.000000e+00> : vector<8x32xf32>
    %270 = tpu.matmul %267, %269, %cst_106 {dimension_numbers = #tpu.dot_dimension_numbers<[1], [0], [0], [1], [0, 0, 1, 1], [], []>} : vector<8x32xf32>, vector<32x32xf32>, vector<8x32xf32> -> vector<8x32xf32>
    %271 = arith.addf %167, %270 : vector<8x32xf32>
    %c0_107 = arith.constant 0 : index
    %c12 = arith.constant 12 : index
    %c0_108 = arith.constant 0 : index
    %272 = vector.load %arg3[%c0_107, %c12, %c0_108] : memref<1x24x128xf32, #tpu.memory_space<vmem>>, vector<1x1x32xf32>
    %273 = vector.shape_cast %272 : vector<1x1x32xf32> to vector<1x32xf32>
    %274 = vector.broadcast %273 : vector<1x32xf32> to vector<8x32xf32>
    %275 = arith.addf %271, %274 : vector<8x32xf32>
    %c0_109 = arith.constant 0 : index
    %c13 = arith.constant 13 : index
    %c0_110 = arith.constant 0 : index
    %276 = vector.load %arg3[%c0_109, %c13, %c0_110] : memref<1x24x128xf32, #tpu.memory_space<vmem>>, vector<1x1x32xf32>
    %277 = vector.shape_cast %276 : vector<1x1x32xf32> to vector<1x32xf32>
    %c0_111 = arith.constant 0 : index
    %c14 = arith.constant 14 : index
    %c0_112 = arith.constant 0 : index
    %278 = vector.load %arg3[%c0_111, %c14, %c0_112] : memref<1x24x128xf32, #tpu.memory_space<vmem>>, vector<1x1x32xf32>
    %279 = vector.shape_cast %278 : vector<1x1x32xf32> to vector<1x32xf32>
    %cst_113 = arith.constant dense<0.000000e+00> : vector<8xf32>
    %280 = vector.multi_reduction <add>, %275, %cst_113 [1] : vector<8x32xf32> to vector<8xf32>
    %281 = vector.shape_cast %280 : vector<8xf32> to vector<8x1xf32>
    %cst_114 = arith.constant 3.200000e+01 : f32
    %282 = vector.broadcast %cst_114 : f32 to vector<8x1xf32>
    %283 = arith.divf %281, %282 : vector<8x1xf32>
    %284 = vector.broadcast %283 : vector<8x1xf32> to vector<8x32xf32>
    %285 = arith.subf %275, %284 : vector<8x32xf32>
    %286 = arith.mulf %285, %285 : vector<8x32xf32>
    %cst_115 = arith.constant dense<0.000000e+00> : vector<8xf32>
    %287 = vector.multi_reduction <add>, %286, %cst_115 [1] : vector<8x32xf32> to vector<8xf32>
    %288 = vector.shape_cast %287 : vector<8xf32> to vector<8x1xf32>
    %cst_116 = arith.constant 3.200000e+01 : f32
    %289 = vector.broadcast %cst_116 : f32 to vector<8x1xf32>
    %290 = arith.divf %288, %289 : vector<8x1xf32>
    %cst_117 = arith.constant 9.99999974E-6 : f32
    %291 = vector.broadcast %cst_117 : f32 to vector<8x1xf32>
    %292 = arith.addf %290, %291 : vector<8x1xf32>
    %293 = math.rsqrt %292 : vector<8x1xf32>
    %294 = vector.broadcast %293 : vector<8x1xf32> to vector<8x32xf32>
    %295 = arith.mulf %285, %294 : vector<8x32xf32>
    %296 = vector.broadcast %277 : vector<1x32xf32> to vector<8x32xf32>
    %297 = arith.mulf %295, %296 : vector<8x32xf32>
    %298 = vector.broadcast %279 : vector<1x32xf32> to vector<8x32xf32>
    %299 = arith.addf %297, %298 : vector<8x32xf32>
    %c0_118 = arith.constant 0 : index
    %c232 = arith.constant 232 : index
    %c0_119 = arith.constant 0 : index
    %300 = vector.load %arg2[%c0_118, %c232, %c0_119] : memref<1x504x128xf32, #tpu.memory_space<vmem>>, vector<1x32x64xf32>
    %301 = vector.shape_cast %300 : vector<1x32x64xf32> to vector<32x64xf32>
    %cst_120 = arith.constant dense<0.000000e+00> : vector<8x64xf32>
    %302 = tpu.matmul %299, %301, %cst_120 {dimension_numbers = #tpu.dot_dimension_numbers<[1], [0], [0], [1], [0, 0, 1, 1], [], []>} : vector<8x32xf32>, vector<32x64xf32>, vector<8x64xf32> -> vector<8x64xf32>
    %c0_121 = arith.constant 0 : index
    %c15 = arith.constant 15 : index
    %c0_122 = arith.constant 0 : index
    %303 = vector.load %arg3[%c0_121, %c15, %c0_122] : memref<1x24x128xf32, #tpu.memory_space<vmem>>, vector<1x1x64xf32>
    %304 = vector.shape_cast %303 : vector<1x1x64xf32> to vector<1x64xf32>
    %305 = vector.broadcast %304 : vector<1x64xf32> to vector<8x64xf32>
    %306 = arith.addf %302, %305 : vector<8x64xf32>
    %cst_123 = arith.constant 5.000000e-01 : f32
    %307 = vector.broadcast %cst_123 : f32 to vector<8x64xf32>
    %308 = arith.mulf %307, %306 : vector<8x64xf32>
    %cst_124 = arith.constant 4.471500e-02 : f32
    %309 = vector.broadcast %cst_124 : f32 to vector<8x64xf32>
    %310 = arith.mulf %309, %306 : vector<8x64xf32>
    %311 = arith.mulf %310, %306 : vector<8x64xf32>
    %312 = arith.mulf %311, %306 : vector<8x64xf32>
    %313 = arith.addf %306, %312 : vector<8x64xf32>
    %cst_125 = arith.constant 0.797884583 : f32
    %314 = vector.broadcast %cst_125 : f32 to vector<8x64xf32>
    %315 = arith.mulf %314, %313 : vector<8x64xf32>
    %316 = math.tanh %315 : vector<8x64xf32>
    %cst_126 = arith.constant 1.000000e+00 : f32
    %317 = vector.broadcast %cst_126 : f32 to vector<8x64xf32>
    %318 = arith.addf %317, %316 : vector<8x64xf32>
    %319 = arith.mulf %308, %318 : vector<8x64xf32>
    %c0_127 = arith.constant 0 : index
    %c264 = arith.constant 264 : index
    %c0_128 = arith.constant 0 : index
    %320 = vector.load %arg2[%c0_127, %c264, %c0_128] : memref<1x504x128xf32, #tpu.memory_space<vmem>>, vector<1x64x32xf32>
    %321 = vector.shape_cast %320 : vector<1x64x32xf32> to vector<64x32xf32>
    %cst_129 = arith.constant dense<0.000000e+00> : vector<8x32xf32>
    %322 = tpu.matmul %319, %321, %cst_129 {dimension_numbers = #tpu.dot_dimension_numbers<[1], [0], [0], [1], [0, 0, 1, 1], [], []>} : vector<8x64xf32>, vector<64x32xf32>, vector<8x32xf32> -> vector<8x32xf32>
    %323 = arith.addf %275, %322 : vector<8x32xf32>
    %c0_130 = arith.constant 0 : index
    %c16 = arith.constant 16 : index
    %c0_131 = arith.constant 0 : index
    %324 = vector.load %arg3[%c0_130, %c16, %c0_131] : memref<1x24x128xf32, #tpu.memory_space<vmem>>, vector<1x1x32xf32>
    %325 = vector.shape_cast %324 : vector<1x1x32xf32> to vector<1x32xf32>
    %326 = vector.broadcast %325 : vector<1x32xf32> to vector<8x32xf32>
    %327 = arith.addf %323, %326 : vector<8x32xf32>
    %c0_132 = arith.constant 0 : index
    %c17 = arith.constant 17 : index
    %c0_133 = arith.constant 0 : index
    %328 = vector.load %arg3[%c0_132, %c17, %c0_133] : memref<1x24x128xf32, #tpu.memory_space<vmem>>, vector<1x1x32xf32>
    %329 = vector.shape_cast %328 : vector<1x1x32xf32> to vector<1x32xf32>
    %c0_134 = arith.constant 0 : index
    %c18 = arith.constant 18 : index
    %c0_135 = arith.constant 0 : index
    %330 = vector.load %arg3[%c0_134, %c18, %c0_135] : memref<1x24x128xf32, #tpu.memory_space<vmem>>, vector<1x1x32xf32>
    %331 = vector.shape_cast %330 : vector<1x1x32xf32> to vector<1x32xf32>
    %cst_136 = arith.constant dense<0.000000e+00> : vector<8xf32>
    %332 = vector.multi_reduction <add>, %327, %cst_136 [1] : vector<8x32xf32> to vector<8xf32>
    %333 = vector.shape_cast %332 : vector<8xf32> to vector<8x1xf32>
    %cst_137 = arith.constant 3.200000e+01 : f32
    %334 = vector.broadcast %cst_137 : f32 to vector<8x1xf32>
    %335 = arith.divf %333, %334 : vector<8x1xf32>
    %336 = vector.broadcast %335 : vector<8x1xf32> to vector<8x32xf32>
    %337 = arith.subf %327, %336 : vector<8x32xf32>
    %338 = arith.mulf %337, %337 : vector<8x32xf32>
    %cst_138 = arith.constant dense<0.000000e+00> : vector<8xf32>
    %339 = vector.multi_reduction <add>, %338, %cst_138 [1] : vector<8x32xf32> to vector<8xf32>
    %340 = vector.shape_cast %339 : vector<8xf32> to vector<8x1xf32>
    %cst_139 = arith.constant 3.200000e+01 : f32
    %341 = vector.broadcast %cst_139 : f32 to vector<8x1xf32>
    %342 = arith.divf %340, %341 : vector<8x1xf32>
    %cst_140 = arith.constant 9.99999974E-6 : f32
    %343 = vector.broadcast %cst_140 : f32 to vector<8x1xf32>
    %344 = arith.addf %342, %343 : vector<8x1xf32>
    %345 = math.rsqrt %344 : vector<8x1xf32>
    %346 = vector.broadcast %345 : vector<8x1xf32> to vector<8x32xf32>
    %347 = arith.mulf %337, %346 : vector<8x32xf32>
    %348 = vector.broadcast %329 : vector<1x32xf32> to vector<8x32xf32>
    %349 = arith.mulf %347, %348 : vector<8x32xf32>
    %350 = vector.broadcast %331 : vector<1x32xf32> to vector<8x32xf32>
    %351 = arith.addf %349, %350 : vector<8x32xf32>
    %c0_141 = arith.constant 0 : index
    %c328 = arith.constant 328 : index
    %c0_142 = arith.constant 0 : index
    %352 = vector.load %arg2[%c0_141, %c328, %c0_142] : memref<1x504x128xf32, #tpu.memory_space<vmem>>, vector<1x32x64xf32>
    %353 = vector.shape_cast %352 : vector<1x32x64xf32> to vector<32x64xf32>
    %cst_143 = arith.constant dense<0.000000e+00> : vector<8x64xf32>
    %354 = tpu.matmul %351, %353, %cst_143 {dimension_numbers = #tpu.dot_dimension_numbers<[1], [0], [0], [1], [0, 0, 1, 1], [], []>} : vector<8x32xf32>, vector<32x64xf32>, vector<8x64xf32> -> vector<8x64xf32>
    %c0_144 = arith.constant 0 : index
    %c19 = arith.constant 19 : index
    %c0_145 = arith.constant 0 : index
    %355 = vector.load %arg3[%c0_144, %c19, %c0_145] : memref<1x24x128xf32, #tpu.memory_space<vmem>>, vector<1x1x64xf32>
    %356 = vector.shape_cast %355 : vector<1x1x64xf32> to vector<1x64xf32>
    %357 = vector.broadcast %356 : vector<1x64xf32> to vector<8x64xf32>
    %358 = arith.addf %354, %357 : vector<8x64xf32>
    %cst_146 = arith.constant 5.000000e-01 : f32
    %359 = vector.broadcast %cst_146 : f32 to vector<8x64xf32>
    %360 = arith.mulf %359, %358 : vector<8x64xf32>
    %cst_147 = arith.constant 4.471500e-02 : f32
    %361 = vector.broadcast %cst_147 : f32 to vector<8x64xf32>
    %362 = arith.mulf %361, %358 : vector<8x64xf32>
    %363 = arith.mulf %362, %358 : vector<8x64xf32>
    %364 = arith.mulf %363, %358 : vector<8x64xf32>
    %365 = arith.addf %358, %364 : vector<8x64xf32>
    %cst_148 = arith.constant 0.797884583 : f32
    %366 = vector.broadcast %cst_148 : f32 to vector<8x64xf32>
    %367 = arith.mulf %366, %365 : vector<8x64xf32>
    %368 = math.tanh %367 : vector<8x64xf32>
    %cst_149 = arith.constant 1.000000e+00 : f32
    %369 = vector.broadcast %cst_149 : f32 to vector<8x64xf32>
    %370 = arith.addf %369, %368 : vector<8x64xf32>
    %371 = arith.mulf %360, %370 : vector<8x64xf32>
    %c0_150 = arith.constant 0 : index
    %c360 = arith.constant 360 : index
    %c0_151 = arith.constant 0 : index
    %372 = vector.load %arg2[%c0_150, %c360, %c0_151] : memref<1x504x128xf32, #tpu.memory_space<vmem>>, vector<1x64x64xf32>
    %373 = vector.shape_cast %372 : vector<1x64x64xf32> to vector<64x64xf32>
    %cst_152 = arith.constant dense<0.000000e+00> : vector<8x64xf32>
    %374 = tpu.matmul %371, %373, %cst_152 {dimension_numbers = #tpu.dot_dimension_numbers<[1], [0], [0], [1], [0, 0, 1, 1], [], []>} : vector<8x64xf32>, vector<64x64xf32>, vector<8x64xf32> -> vector<8x64xf32>
    %c0_153 = arith.constant 0 : index
    %c20 = arith.constant 20 : index
    %c0_154 = arith.constant 0 : index
    %375 = vector.load %arg3[%c0_153, %c20, %c0_154] : memref<1x24x128xf32, #tpu.memory_space<vmem>>, vector<1x1x64xf32>
    %376 = vector.shape_cast %375 : vector<1x1x64xf32> to vector<1x64xf32>
    %377 = vector.broadcast %376 : vector<1x64xf32> to vector<8x64xf32>
    %378 = arith.addf %374, %377 : vector<8x64xf32>
    %cst_155 = arith.constant 5.000000e-01 : f32
    %379 = vector.broadcast %cst_155 : f32 to vector<8x64xf32>
    %380 = arith.mulf %379, %378 : vector<8x64xf32>
    %cst_156 = arith.constant 4.471500e-02 : f32
    %381 = vector.broadcast %cst_156 : f32 to vector<8x64xf32>
    %382 = arith.mulf %381, %378 : vector<8x64xf32>
    %383 = arith.mulf %382, %378 : vector<8x64xf32>
    %384 = arith.mulf %383, %378 : vector<8x64xf32>
    %385 = arith.addf %378, %384 : vector<8x64xf32>
    %cst_157 = arith.constant 0.797884583 : f32
    %386 = vector.broadcast %cst_157 : f32 to vector<8x64xf32>
    %387 = arith.mulf %386, %385 : vector<8x64xf32>
    %388 = math.tanh %387 : vector<8x64xf32>
    %cst_158 = arith.constant 1.000000e+00 : f32
    %389 = vector.broadcast %cst_158 : f32 to vector<8x64xf32>
    %390 = arith.addf %389, %388 : vector<8x64xf32>
    %391 = arith.mulf %380, %390 : vector<8x64xf32>
    %c0_159 = arith.constant 0 : index
    %c424 = arith.constant 424 : index
    %c0_160 = arith.constant 0 : index
    %392 = vector.load %arg2[%c0_159, %c424, %c0_160] : memref<1x504x128xf32, #tpu.memory_space<vmem>>, vector<1x64x16xf32>
    %393 = vector.shape_cast %392 : vector<1x64x16xf32> to vector<64x16xf32>
    %cst_161 = arith.constant dense<0.000000e+00> : vector<8x16xf32>
    %394 = tpu.matmul %391, %393, %cst_161 {dimension_numbers = #tpu.dot_dimension_numbers<[1], [0], [0], [1], [0, 0, 1, 1], [], []>} : vector<8x64xf32>, vector<64x16xf32>, vector<8x16xf32> -> vector<8x16xf32>
    %c0_162 = arith.constant 0 : index
    %c21 = arith.constant 21 : index
    %c0_163 = arith.constant 0 : index
    %395 = vector.load %arg3[%c0_162, %c21, %c0_163] : memref<1x24x128xf32, #tpu.memory_space<vmem>>, vector<1x1x16xf32>
    %396 = vector.shape_cast %395 : vector<1x1x16xf32> to vector<1x16xf32>
    %397 = vector.broadcast %396 : vector<1x16xf32> to vector<8x16xf32>
    %398 = arith.addf %394, %397 : vector<8x16xf32>
    %399 = arith.mulf %398, %398 : vector<8x16xf32>
    %cst_164 = arith.constant dense<0.000000e+00> : vector<8xf32>
    %400 = vector.multi_reduction <add>, %399, %cst_164 [1] : vector<8x16xf32> to vector<8xf32>
    %401 = vector.shape_cast %400 : vector<8xf32> to vector<8x1xf32>
    %cst_165 = arith.constant 9.99999996E-13 : f32
    %402 = vector.broadcast %cst_165 : f32 to vector<8x1xf32>
    %403 = arith.addf %401, %402 : vector<8x1xf32>
    %404 = math.rsqrt %403 : vector<8x1xf32>
    %405 = vector.broadcast %404 : vector<8x1xf32> to vector<8x16xf32>
    %406 = arith.mulf %398, %405 : vector<8x16xf32>
    %c0_166 = arith.constant 0 : index
    %c488 = arith.constant 488 : index
    %c0_167 = arith.constant 0 : index
    %407 = vector.load %arg2[%c0_166, %c488, %c0_167] : memref<1x504x128xf32, #tpu.memory_space<vmem>>, vector<1x16x128xf32>
    %408 = vector.shape_cast %407 : vector<1x16x128xf32> to vector<16x128xf32>
    %cst_168 = arith.constant dense<0.000000e+00> : vector<8x128xf32>
    %409 = tpu.matmul %406, %408, %cst_168 {dimension_numbers = #tpu.dot_dimension_numbers<[1], [0], [0], [1], [0, 0, 1, 1], [], []>} : vector<8x16xf32>, vector<16x128xf32>, vector<8x128xf32> -> vector<8x128xf32>
    %c0_169 = arith.constant 0 : index
    %c0_170 = arith.constant 0 : index
    %c0_171 = arith.constant 0 : index
    %410 = vector.load %arg4[%c0_169, %c0_170, %c0_171] : memref<1x8x128xf32, #tpu.memory_space<vmem>>, vector<1x8x128xf32>
    %411 = vector.shape_cast %410 : vector<1x8x128xf32> to vector<8x128xf32>
    %412 = vector.shape_cast %409 : vector<8x128xf32> to vector<1x8x128xf32>
    tpu.vector_store %arg4[%c0_169, %c0_170, %c0_171], %412 {strides = array<i32>} : memref<1x8x128xf32, #tpu.memory_space<vmem>>, vector<1x8x128xf32>,
    return
  }
  func.func @transform_0(%arg0: i32) -> (i32, i32) {
    %c0_i32 = arith.constant 0 : i32
    %c0_i32_0 = arith.constant 0 : i32
    %c0_i32_1 = arith.constant 0 : i32
    return %c0_i32, %c0_i32_0 : i32, i32
  }
  func.func @transform_1(%arg0: i32) -> (i32, i32, i32) {
    %c0_i32 = arith.constant 0 : i32
    %c0_i32_0 = arith.constant 0 : i32
    %c0_i32_1 = arith.constant 0 : i32
    return %arg0, %c0_i32, %c0_i32_0 : i32, i32, i32
  }
  func.func @transform_2(%arg0: i32) -> (i32, i32, i32) {
    %c0_i32 = arith.constant 0 : i32
    %c0_i32_0 = arith.constant 0 : i32
    %c0_i32_1 = arith.constant 0 : i32
    return %arg0, %c0_i32, %c0_i32_0 : i32, i32, i32
  }
  func.func @transform_3(%arg0: i32) -> (i32, i32, i32) {
    %c0_i32 = arith.constant 0 : i32
    %c0_i32_0 = arith.constant 0 : i32
    %c0_i32_1 = arith.constant 0 : i32
    return %arg0, %c0_i32, %c0_i32_0 : i32, i32, i32
  }
}

</mosaic_0001>

<llo_original>
// kernel: fwd_single.1
$region0: #{fwd_single.1}
  #allocation0 [shape = 'u32[]', space=smem, size = 0x4, offset = 0x4, fixed_abs, tag = 'smem constant byte address 0x4 - core index']
  #allocation1 [shape = 'u32[144,128]{1,0:T(1,128)}', space=vmem, size = 0x12000, scoped, tag = 'internal scratch']
  %s0 = inlined_call_operand.vmem [shape: f32[8,4], index: 0, kind: input, shape index: {}]
  %s1 = inlined_call_operand.hbm [shape: f32[1,504,128], index: 1, kind: input, shape index: {}]
  %s2 = inlined_call_operand.hbm [shape: f32[1,24,128], index: 2, kind: input, shape index: {}]
  %s3 = inlined_call_operand.vmem [shape: f32[1,8,128], index: 3, kind: output, shape index: {}]
  %s4 = sld [smem:[#allocation0]]
  $region30: #{fwd_single.1} parent=0
    _
  %s6 = ssub.s32 1, %s4
  %s7 = scalar_select 0, %s6, %s4
  $region1: #{fwd_single.1} parent=0
    #allocation2 [shape = 'u8[258048]{0}', space=vmem, size = 0x3f000, scoped, tag = 'input window, operand 1, single buffered']
    #allocation3 [shape = 's32[1]{0}', space=sflag, size = 0x4, scoped, tag = 'scoped memory for fwd_single.1']
    #allocation4 [shape = 'u8[12288]{0}', space=vmem, size = 0x3000, scoped, tag = 'input window, operand 2, single buffered']
    #allocation5 [shape = 's32[1]{0}', space=sflag, size = 0x4, scoped, tag = 'scoped memory for fwd_single.1']
    %8 = vsyncpa [#allocation3], 0
    %9 = vsyncpa [#allocation5], 0
    // Predicated region
    $region2: #{fwd_single.1} parent=1 // pred_check
      _
    $region3: #{fwd_single.1} parent=1 // pred_check_branch
      %11 = sbr.rel (0) target = $region5
    $region4: #{fwd_single.1} parent=1 // pred_region
      _
    $region5: #{fwd_single.1} parent=1 // pred_fallthru
      _
    // Predicated region
    $region6: #{fwd_single.1} parent=1 // pred_check
      _
    $region7: #{fwd_single.1} parent=1 // pred_check_branch
      %13 = sbr.rel (0) target = $region9
    $region8: #{fwd_single.1} parent=1 // pred_region
      %s15 = ssub.s32 8064, 8064
      %16 = vsyncadd [#allocation3], %s15
      %s17 = sshll.u32 [#allocation2], 4
      %s18 = int_to_ptr.vmem [resolvable:$true] %s17
      %23 = dma.hbm_to_vmem [thread:$0]  %s1, 8064, %s18, [#allocation3], 128, 128, 8
    $region9: #{fwd_single.1} parent=1 // pred_fallthru
      _
    // Predicated region
    $region10: #{fwd_single.1} parent=1 // pred_check
      _
    $region11: #{fwd_single.1} parent=1 // pred_check_branch
      %25 = sbr.rel (0) target = $region13
    $region12: #{fwd_single.1} parent=1 // pred_region
      %s27 = ssub.s32 384, 384
      %28 = vsyncadd [#allocation5], %s27
      %s29 = sshll.u32 [#allocation4], 4
      %s30 = int_to_ptr.vmem [resolvable:$true] %s29
      %35 = dma.hbm_to_vmem [thread:$0]  %s2, 384, %s30, [#allocation5], 128, 128, 8
    $region13: #{fwd_single.1} parent=1 // pred_fallthru
      _
    // Predicated region
    $region14: #{fwd_single.1} parent=1 // pred_check
      _
    $region15: #{fwd_single.1} parent=1 // pred_check_branch
      %37 = sbr.rel (0) target = $region17
    $region16: #{fwd_single.1} parent=1 // pred_region
      %38 = dma.done [#allocation3], 8064
    $region17: #{fwd_single.1} parent=1 // pred_fallthru
      _
    // Predicated region
    $region18: #{fwd_single.1} parent=1 // pred_check
      _
    $region19: #{fwd_single.1} parent=1 // pred_check_branch
      %40 = sbr.rel (0) target = $region21
    $region20: #{fwd_single.1} parent=1 // pred_region
      %41 = dma.done [#allocation5], 384
    $region21: #{fwd_single.1} parent=1 // pred_fallthru
      _
    %v42 = vld [vmem:[%s0] sm:$0xff]
    %v43 = vld [vmem:[#allocation2] sm:$0xf]
    %v44 = vld [vmem:[#allocation4] sm:$0x1]
    %v45 = vlaneseq
    %v46 = vshrl.u32 %v45, 7
    %v47 = vsub.s32 0, %v46
    %v48 = vrot.slane %v44, %v47
    %vm49 = vcmask 31744
    %v51 = vsel %vm49, %v42, 0
    %vm53 = vcmask 1043456
    %v55 = vsel %vm53, %v43, 0
    %57 = vmatprep.subr.mxu0 0.0
    %58 = vmatpush1.msra.mxu0 %v55
    %59 = vmatprep.subr.mxu0 0.0
    %60 = vmatpush1.msra.mxu0 0.0
    %61 = vmatprep.subr.mxu0 0.0
    %62 = vmatpush1.msra.mxu0 0.0
    %63 = vmatprep.subr.mxu0 0.0
    %64 = vmatpush1.msra.mxu0 0.0
    %65 = vmatprep.subr.mxu0 0.0
    %66 = vmatpush1.msra.mxu0 0.0
    %67 = vmatprep.subr.mxu0 0.0
    %68 = vmatpush1.msra.mxu0 0.0
    %69 = vmatprep.subr.mxu0 0.0
    %70 = vmatpush1.msra.mxu0 0.0
    %71 = vmatprep.subr.mxu0 0.0
    %72 = vmatpush1.msra.mxu0 0.0
    %73 = vmatprep.subr.mxu0 0.0
    %74 = vmatpush1.msra.mxu0 0.0
    %75 = vmatprep.subr.mxu0 0.0
    %76 = vmatpush1.msra.mxu0 0.0
    %77 = vmatprep.subr.mxu0 0.0
    %78 = vmatpush1.msra.mxu0 0.0
    %79 = vmatprep.subr.mxu0 0.0
    %80 = vmatpush1.msra.mxu0 0.0
    %81 = vmatprep.subr.mxu0 0.0
    %82 = vmatpush1.msra.mxu0 0.0
    %83 = vmatprep.subr.mxu0 0.0
    %84 = vmatpush1.msra.mxu0 0.0
    %85 = vmatprep.subr.mxu0 0.0
    %86 = vmatpush1.msra.mxu0 0.0
    %87 = vmatprep.subr.mxu0 0.0
    %88 = vmatpush1.msra.mxu0 0.0
    %89 = vmatprep.subr.mxu0 0.0
    %90 = vmatpush1.msra.mxu0 0.0
    %91 = vmatprep.subr.mxu0 0.0
    %92 = vmatpush1.msra.mxu0 0.0
    %93 = vmatprep.subr.mxu0 0.0
    %94 = vmatpush1.msra.mxu0 0.0
    %95 = vmatprep.subr.mxu0 0.0
    %96 = vmatpush1.msra.mxu0 0.0
    %97 = vmatprep.subr.mxu0 0.0
    %98 = vmatpush1.msra.mxu0 0.0
    %99 = vmatprep.subr.mxu0 0.0
    %100 = vmatpush1.msra.mxu0 0.0
    %101 = vmatprep.subr.mxu0 0.0
    %102 = vmatpush1.msra.mxu0 0.0
    %103 = vmatprep.subr.mxu0 0.0
    %104 = vmatpush1.msra.mxu0 0.0
    %105 = vmatprep.subr.mxu0 0.0
    %106 = vmatpush1.msra.mxu0 0.0
    %107 = vmatprep.subr.mxu0 0.0
    %108 = vmatpush1.msra.mxu0 0.0
    %109 = vmatprep.subr.mxu0 0.0
    %110 = vmatpush1.msra.mxu0 0.0
    %111 = vmatprep.subr.mxu0 0.0
    %112 = vmatpush1.msra.mxu0 0.0
    %113 = vmatprep.subr.mxu0 0.0
    %114 = vmatpush1.msra.mxu0 0.0
    %115 = vmatprep.subr.mxu0 0.0
    %116 = vmatpush1.msra.mxu0 0.0
    %117 = vmatprep.subr.mxu0 0.0
    %118 = vmatpush1.msra.mxu0 0.0
    %119 = vmatprep.subr.mxu0 0.0
    %120 = vmatpush1.msra.mxu0 0.0
    %121 = vmatprep.mubr.f32.mxu0 0.0
    %122 = vmatmul.mubr.f32.gmra.mrb[0].mxu0 %v51
    %v123 = vpop.f32.mrb[0].mxu0
    %v124 = vadd.f32 %v48, %v123
    %v125 = vpop.f32.mrb[0].mxu0
    %126 = vdwg.mxu0
    %v127 = vld [vmem:[#allocation4 + $0x1] sm:$0x1]
    %v128 = vld [vmem:[#allocation4 + $0x2] sm:$0x1]
    %vm129 = vcmask 261120
    %v130 = vsel %vm129, %v124, 0.0
    %131 = vadd.xlane.f32.xlu0 %v130
    %v132 = vpop.xlane.xlu0 %131
    %v133 = vrcp.pop 32.0
    %v134 = vmul.f32 %v132, %v133
    %v135 = vsub.f32 %v124, %v134
    %v136 = vmul.f32 %v135, %v135
    %v137 = vsel %vm129, %v136, 0.0
    %138 = vadd.xlane.f32.xlu0 %v137
    %v139 = vpop.xlane.xlu0 %138
    %v140 = vmul.f32 %v139, %v133
    %v141 = vadd.f32 %v140, 1e-05
    %v142 = vrsqrt.pop %v141
    %v143 = vmul.f32 %v135, %v142
    %v144 = vlaneseq
    %v145 = vshrl.u32 %v144, 7
    %v146 = vsub.s32 0, %v145
    %v147 = vrot.slane %v127, %v146
    %v148 = vmul.f32 %v143, %v147
    %v149 = vlaneseq
    %v150 = vshrl.u32 %v149, 7
    %v151 = vsub.s32 0, %v150
    %v152 = vrot.slane %v128, %v151
    %v153 = vadd.f32 %v148, %v152
    %v154 = vld [vmem:[#allocation2 + $0x8] sm:$0xff]
    %v155 = vld [vmem:[#allocation2 + $0x10] sm:$0xff]
    %v156 = vld [vmem:[#allocation2 + $0x18] sm:$0xff]
    %v157 = vld [vmem:[#allocation2 + $0x20] sm:$0xff]
    %v158 = vld [vmem:[#allocation4 + $0x3] sm:$0x1]
    %v159 = vlaneseq
    %v160 = vshrl.u32 %v159, 7
    %v161 = vsub.s32 0, %v160
    %v162 = vrot.slane %v158, %v161
    %v164 = vsel %vm129, %v153, 0
    %166 = vmatprep.subr.mxu0 0.0
    %167 = vmatpush1.msra.mxu0 %v154
    %168 = vmatprep.subr.mxu0 0.0
    %169 = vmatpush1.msra.mxu0 %v155
    %170 = vmatprep.subr.mxu0 0.0
    %171 = vmatpush1.msra.mxu0 %v156
    %172 = vmatprep.subr.mxu0 0.0
    %173 = vmatpush1.msra.mxu0 %v157
    %174 = vmatprep.subr.mxu0 0.0
    %175 = vmatpush1.msra.mxu0 0.0
    %176 = vmatprep.subr.mxu0 0.0
    %177 = vmatpush1.msra.mxu0 0.0
    %178 = vmatprep.subr.mxu0 0.0
    %179 = vmatpush1.msra.mxu0 0.0
    %180 = vmatprep.subr.mxu0 0.0
    %181 = vmatpush1.msra.mxu0 0.0
    %182 = vmatprep.subr.mxu0 0.0
    %183 = vmatpush1.msra.mxu0 0.0
    %184 = vmatprep.subr.mxu0 0.0
    %185 = vmatpush1.msra.mxu0 0.0
    %186 = vmatprep.subr.mxu0 0.0
    %187 = vmatpush1.msra.mxu0 0.0
    %188 = vmatprep.subr.mxu0 0.0
    %189 = vmatpush1.msra.mxu0 0.0
    %190 = vmatprep.subr.mxu0 0.0
    %191 = vmatpush1.msra.mxu0 0.0
    %192 = vmatprep.subr.mxu0 0.0
    %193 = vmatpush1.msra.mxu0 0.0
    %194 = vmatprep.subr.mxu0 0.0
    %195 = vmatpush1.msra.mxu0 0.0
    %196 = vmatprep.subr.mxu0 0.0
    %197 = vmatpush1.msra.mxu0 0.0
    %198 = vmatprep.subr.mxu0 0.0
    %199 = vmatpush1.msra.mxu0 0.0
    %200 = vmatprep.subr.mxu0 0.0
    %201 = vmatpush1.msra.mxu0 0.0
    %202 = vmatprep.subr.mxu0 0.0
    %203 = vmatpush1.msra.mxu0 0.0
    %204 = vmatprep.subr.mxu0 0.0
    %205 = vmatpush1.msra.mxu0 0.0
    %206 = vmatprep.subr.mxu0 0.0
    %207 = vmatpush1.msra.mxu0 0.0
    %208 = vmatprep.subr.mxu0 0.0
    %209 = vmatpush1.msra.mxu0 0.0
    %210 = vmatprep.subr.mxu0 0.0
    %211 = vmatpush1.msra.mxu0 0.0
    %212 = vmatprep.subr.mxu0 0.0
    %213 = vmatpush1.msra.mxu0 0.0
    %214 = vmatprep.subr.mxu0 0.0
    %215 = vmatpush1.msra.mxu0 0.0
    %216 = vmatprep.subr.mxu0 0.0
    %217 = vmatpush1.msra.mxu0 0.0
    %218 = vmatprep.subr.mxu0 0.0
    %219 = vmatpush1.msra.mxu0 0.0
    %220 = vmatprep.subr.mxu0 0.0
    %221 = vmatpush1.msra.mxu0 0.0
    %222 = vmatprep.subr.mxu0 0.0
    %223 = vmatpush1.msra.mxu0 0.0
    %224 = vmatprep.subr.mxu0 0.0
    %225 = vmatpush1.msra.mxu0 0.0
    %226 = vmatprep.subr.mxu0 0.0
    %227 = vmatpush1.msra.mxu0 0.0
    %228 = vmatprep.subr.mxu0 0.0
    %229 = vmatpush1.msra.mxu0 0.0
    %230 = vmatprep.mubr.f32.mxu0 0.0
    %231 = vmatmul.mubr.f32.gmra.mrb[0].mxu0 %v164
    %v232 = vpop.f32.mrb[0].mxu0
    %v233 = vadd.f32 %v162, %v232
    %v234 = vpop.f32.mrb[0].mxu0
    %235 = vdwg.mxu0
    %237 = vrot.lane.b32.xlu0 %v233, 96
    %v238 = vpop.permute.xlu0 %237
    %vm239 = vcmask 64512
    %v240 = vsel %vm239, %v233, 0
    %v242 = vsel %vm239, %v238, 0
    %244 = vmatprep.subr.mxu0 0.0
    %245 = vmatpush1.xpose.msra.mxu0 %v242
    %246 = vmatprep.subr.mxu0 0.0
    %247 = vmatpush1.xpose.msra.mxu0 0.0
    %248 = vmatprep.subr.mxu0 0.0
    %249 = vmatpush1.xpose.msra.mxu0 0.0
    %250 = vmatprep.subr.mxu0 0.0
    %251 = vmatpush1.xpose.msra.mxu0 0.0
    %252 = vmatprep.subr.mxu0 0.0
    %253 = vmatpush1.xpose.msra.mxu0 0.0
    %254 = vmatprep.subr.mxu0 0.0
    %255 = vmatpush1.xpose.msra.mxu0 0.0
    %256 = vmatprep.subr.mxu0 0.0
    %257 = vmatpush1.xpose.msra.mxu0 0.0
    %258 = vmatprep.subr.mxu0 0.0
    %259 = vmatpush1.xpose.msra.mxu0 0.0
    %260 = vmatprep.subr.mxu0 0.0
    %261 = vmatpush1.xpose.msra.mxu0 0.0
    %262 = vmatprep.subr.mxu0 0.0
    %263 = vmatpush1.xpose.msra.mxu0 0.0
    %264 = vmatprep.subr.mxu0 0.0
    %265 = vmatpush1.xpose.msra.mxu0 0.0
    %266 = vmatprep.subr.mxu0 0.0
    %267 = vmatpush1.xpose.msra.mxu0 0.0
    %268 = vmatprep.subr.mxu0 0.0
    %269 = vmatpush1.xpose.msra.mxu0 0.0
    %270 = vmatprep.subr.mxu0 0.0
    %271 = vmatpush1.xpose.msra.mxu0 0.0
    %272 = vmatprep.subr.mxu0 0.0
    %273 = vmatpush1.xpose.msra.mxu0 0.0
    %274 = vmatprep.subr.mxu0 0.0
    %275 = vmatpush1.xpose.msra.mxu0 0.0
    %276 = vmatprep.subr.mxu0 0.0
    %277 = vmatpush1.xpose.msra.mxu0 0.0
    %278 = vmatprep.subr.mxu0 0.0
    %279 = vmatpush1.xpose.msra.mxu0 0.0
    %280 = vmatprep.subr.mxu0 0.0
    %281 = vmatpush1.xpose.msra.mxu0 0.0
    %282 = vmatprep.subr.mxu0 0.0
    %283 = vmatpush1.xpose.msra.mxu0 0.0
    %284 = vmatprep.subr.mxu0 0.0
    %285 = vmatpush1.xpose.msra.mxu0 0.0
    %286 = vmatprep.subr.mxu0 0.0
    %287 = vmatpush1.xpose.msra.mxu0 0.0
    %288 = vmatprep.subr.mxu0 0.0
    %289 = vmatpush1.xpose.msra.mxu0 0.0
    %290 = vmatprep.subr.mxu0 0.0
    %291 = vmatpush1.xpose.msra.mxu0 0.0
    %292 = vmatprep.subr.mxu0 0.0
    %293 = vmatpush1.xpose.msra.mxu0 0.0
    %294 = vmatprep.subr.mxu0 0.0
    %295 = vmatpush1.xpose.msra.mxu0 0.0
    %296 = vmatprep.subr.mxu0 0.0
    %297 = vmatpush1.xpose.msra.mxu0 0.0
    %298 = vmatprep.subr.mxu0 0.0
    %299 = vmatpush1.xpose.msra.mxu0 0.0
    %300 = vmatprep.subr.mxu0 0.0
    %301 = vmatpush1.xpose.msra.mxu0 0.0
    %302 = vmatprep.subr.mxu0 0.0
    %303 = vmatpush1.xpose.msra.mxu0 0.0
    %304 = vmatprep.subr.mxu0 0.0
    %305 = vmatpush1.xpose.msra.mxu0 0.0
    %306 = vmatprep.subr.mxu0 0.0
    %307 = vmatpush1.xpose.msra.mxu0 0.0
    %308 = vmatprep.mubr.f32.mxu0 0.0
    %309 = vmatmul.mubr.f32.gmra.mrb[0].mxu0 %v240
    %v310 = vpop.f32.mrb[0].mxu0
    %v311 = vadd.f32 0.0, %v310
    %v312 = vpop.f32.mrb[0].mxu0
    %313 = vdwg.mxu0
    %v314 = vmul.f32 %v311, 0.35355338
    %v315 = vsel %vm239, %v314, -inf
    %316 = vmax.xlane.f32.xlu0 %v315
    %v317 = vpop.xlane.xlu0 %316
    %v318 = vsub.f32 %v314, %v317
    %v319 = vmul.f32 %v318, 1.442695
    %v320 = vpow.pop %v319
    %v321 = vsel %vm239, %v320, 0.0
    %322 = vadd.xlane.f32.xlu0 %v321
    %v323 = vpop.xlane.xlu0 %322
    %v324 = vrcp.pop %v323
    %v325 = vmul.f32 %v320, %v324
    %326 = vrot.lane.b32.xlu0 %v233, 64
    %v327 = vpop.permute.xlu0 %326
    %v330 = vsel %vm239, %v325, 0
    %332 = vmatprep.subr.mxu0 0.0
    %333 = vmatpush1.msra.mxu0 %v327
    %334 = vmatprep.subr.mxu0 0.0
    %335 = vmatpush1.msra.mxu0 0.0
    %336 = vmatprep.subr.mxu0 0.0
    %337 = vmatpush1.msra.mxu0 0.0
    %338 = vmatprep.subr.mxu0 0.0
    %339 = vmatpush1.msra.mxu0 0.0
    %340 = vmatprep.subr.mxu0 0.0
    %341 = vmatpush1.msra.mxu0 0.0
    %342 = vmatprep.subr.mxu0 0.0
    %343 = vmatpush1.msra.mxu0 0.0
    %344 = vmatprep.subr.mxu0 0.0
    %345 = vmatpush1.msra.mxu0 0.0
    %346 = vmatprep.subr.mxu0 0.0
    %347 = vmatpush1.msra.mxu0 0.0
    %348 = vmatprep.subr.mxu0 0.0
    %349 = vmatpush1.msra.mxu0 0.0
    %350 = vmatprep.subr.mxu0 0.0
    %351 = vmatpush1.msra.mxu0 0.0
    %352 = vmatprep.subr.mxu0 0.0
    %353 = vmatpush1.msra.mxu0 0.0
    %354 = vmatprep.subr.mxu0 0.0
    %355 = vmatpush1.msra.mxu0 0.0
    %356 = vmatprep.subr.mxu0 0.0
    %357 = vmatpush1.msra.mxu0 0.0
    %358 = vmatprep.subr.mxu0 0.0
    %359 = vmatpush1.msra.mxu0 0.0
    %360 = vmatprep.subr.mxu0 0.0
    %361 = vmatpush1.msra.mxu0 0.0
    %362 = vmatprep.subr.mxu0 0.0
    %363 = vmatpush1.msra.mxu0 0.0
    %364 = vmatprep.subr.mxu0 0.0
    %365 = vmatpush1.msra.mxu0 0.0
    %366 = vmatprep.subr.mxu0 0.0
    %367 = vmatpush1.msra.mxu0 0.0
    %368 = vmatprep.subr.mxu0 0.0
    %369 = vmatpush1.msra.mxu0 0.0
    %370 = vmatprep.subr.mxu0 0.0
    %371 = vmatpush1.msra.mxu0 0.0
    %372 = vmatprep.subr.mxu0 0.0
    %373 = vmatpush1.msra.mxu0 0.0
    %374 = vmatprep.subr.mxu0 0.0
    %375 = vmatpush1.msra.mxu0 0.0
    %376 = vmatprep.subr.mxu0 0.0
    %377 = vmatpush1.msra.mxu0 0.0
    %378 = vmatprep.subr.mxu0 0.0
    %379 = vmatpush1.msra.mxu0 0.0
    %380 = vmatprep.subr.mxu0 0.0
    %381 = vmatpush1.msra.mxu0 0.0
    %382 = vmatprep.subr.mxu0 0.0
    %383 = vmatpush1.msra.mxu0 0.0
    %384 = vmatprep.subr.mxu0 0.0
    %385 = vmatpush1.msra.mxu0 0.0
    %386 = vmatprep.subr.mxu0 0.0
    %387 = vmatpush1.msra.mxu0 0.0
    %388 = vmatprep.subr.mxu0 0.0
    %389 = vmatpush1.msra.mxu0 0.0
    %390 = vmatprep.subr.mxu0 0.0
    %391 = vmatpush1.msra.mxu0 0.0
    %392 = vmatprep.subr.mxu0 0.0
    %393 = vmatpush1.msra.mxu0 0.0
    %394 = vmatprep.subr.mxu0 0.0
    %395 = vmatpush1.msra.mxu0 0.0
    %396 = vmatprep.mubr.f32.mxu0 0.0
    %397 = vmatmul.mubr.f32.gmra.mrb[0].mxu0 %v330
    %v398 = vpop.f32.mrb[0].mxu0
    %v399 = vadd.f32 0.0, %v398
    %v400 = vpop.f32.mrb[0].mxu0
    %401 = vdwg.mxu0
    %402 = vrot.lane.b32.xlu0 %v233, 120
    %v403 = vpop.permute.xlu0 %402
    %404 = vrot.lane.b32.xlu0 %v233, 88
    %v405 = vpop.permute.xlu0 %404
    %v406 = vsel %vm239, %v403, 0
    %v408 = vsel %vm239, %v405, 0
    %410 = vmatprep.subr.mxu0 0.0
    %411 = vmatpush1.xpose.msra.mxu0 %v408
    %412 = vmatprep.subr.mxu0 0.0
    %413 = vmatpush1.xpose.msra.mxu0 0.0
    %414 = vmatprep.subr.mxu0 0.0
    %415 = vmatpush1.xpose.msra.mxu0 0.0
    %416 = vmatprep.subr.mxu0 0.0
    %417 = vmatpush1.xpose.msra.mxu0 0.0
    %418 = vmatprep.subr.mxu0 0.0
    %419 = vmatpush1.xpose.msra.mxu0 0.0
    %420 = vmatprep.subr.mxu0 0.0
    %421 = vmatpush1.xpose.msra.mxu0 0.0
    %422 = vmatprep.subr.mxu0 0.0
    %423 = vmatpush1.xpose.msra.mxu0 0.0
    %424 = vmatprep.subr.mxu0 0.0
    %425 = vmatpush1.xpose.msra.mxu0 0.0
    %426 = vmatprep.subr.mxu0 0.0
    %427 = vmatpush1.xpose.msra.mxu0 0.0
    %428 = vmatprep.subr.mxu0 0.0
    %429 = vmatpush1.xpose.msra.mxu0 0.0
    %430 = vmatprep.subr.mxu0 0.0
    %431 = vmatpush1.xpose.msra.mxu0 0.0
    %432 = vmatprep.subr.mxu0 0.0
    %433 = vmatpush1.xpose.msra.mxu0 0.0
    %434 = vmatprep.subr.mxu0 0.0
    %435 = vmatpush1.xpose.msra.mxu0 0.0
    %436 = vmatprep.subr.mxu0 0.0
    %437 = vmatpush1.xpose.msra.mxu0 0.0
    %438 = vmatprep.subr.mxu0 0.0
    %439 = vmatpush1.xpose.msra.mxu0 0.0
    %440 = vmatprep.subr.mxu0 0.0
    %441 = vmatpush1.xpose.msra.mxu0 0.0
    %442 = vmatprep.subr.mxu0 0.0
    %443 = vmatpush1.xpose.msra.mxu0 0.0
    %444 = vmatprep.subr.mxu0 0.0
    %445 = vmatpush1.xpose.msra.mxu0 0.0
    %446 = vmatprep.subr.mxu0 0.0
    %447 = vmatpush1.xpose.msra.mxu0 0.0
    %448 = vmatprep.subr.mxu0 0.0
    %449 = vmatpush1.xpose.msra.mxu0 0.0
    %450 = vmatprep.subr.mxu0 0.0
    %451 = vmatpush1.xpose.msra.mxu0 0.0
    %452 = vmatprep.subr.mxu0 0.0
    %453 = vmatpush1.xpose.msra.mxu0 0.0
    %454 = vmatprep.subr.mxu0 0.0
    %455 = vmatpush1.xpose.msra.mxu0 0.0
    %456 = vmatprep.subr.mxu0 0.0
    %457 = vmatpush1.xpose.msra.mxu0 0.0
    %458 = vmatprep.subr.mxu0 0.0
    %459 = vmatpush1.xpose.msra.mxu0 0.0
    %460 = vmatprep.subr.mxu0 0.0
    %461 = vmatpush1.xpose.msra.mxu0 0.0
    %462 = vmatprep.subr.mxu0 0.0
    %463 = vmatpush1.xpose.msra.mxu0 0.0
    %464 = vmatprep.subr.mxu0 0.0
    %465 = vmatpush1.xpose.msra.mxu0 0.0
    %466 = vmatprep.subr.mxu0 0.0
    %467 = vmatpush1.xpose.msra.mxu0 0.0
    %468 = vmatprep.subr.mxu0 0.0
    %469 = vmatpush1.xpose.msra.mxu0 0.0
    %470 = vmatprep.subr.mxu0 0.0
    %471 = vmatpush1.xpose.msra.mxu0 0.0
    %472 = vmatprep.subr.mxu0 0.0
    %473 = vmatpush1.xpose.msra.mxu0 0.0
    %474 = vmatprep.mubr.f32.mxu0 0.0
    %475 = vmatmul.mubr.f32.gmra.mrb[0].mxu0 %v406
    %v476 = vpop.f32.mrb[0].mxu0
    %v477 = vadd.f32 0.0, %v476
    %v478 = vpop.f32.mrb[0].mxu0
    %479 = vdwg.mxu0
    %v480 = vmul.f32 %v477, 0.35355338
    %v481 = vsel %vm239, %v480, -inf
    %482 = vmax.xlane.f32.xlu0 %v481
    %v483 = vpop.xlane.xlu0 %482
    %v484 = vsub.f32 %v480, %v483
    %v485 = vmul.f32 %v484, 1.442695
    %v486 = vpow.pop %v485
    %v487 = vsel %vm239, %v486, 0.0
    %488 = vadd.xlane.f32.xlu0 %v487
    %v489 = vpop.xlane.xlu0 %488
    %v490 = vrcp.pop %v489
    %v491 = vmul.f32 %v486, %v490
    %492 = vrot.lane.b32.xlu0 %v233, 56
    %v493 = vpop.permute.xlu0 %492
    %v496 = vsel %vm239, %v491, 0
    %498 = vmatprep.subr.mxu0 0.0
    %499 = vmatpush1.msra.mxu0 %v493
    %500 = vmatprep.subr.mxu0 0.0
    %501 = vmatpush1.msra.mxu0 0.0
    %502 = vmatprep.subr.mxu0 0.0
    %503 = vmatpush1.msra.mxu0 0.0
    %504 = vmatprep.subr.mxu0 0.0
    %505 = vmatpush1.msra.mxu0 0.0
    %506 = vmatprep.subr.mxu0 0.0
    %507 = vmatpush1.msra.mxu0 0.0
    %508 = vmatprep.subr.mxu0 0.0
    %509 = vmatpush1.msra.mxu0 0.0
    %510 = vmatprep.subr.mxu0 0.0
    %511 = vmatpush1.msra.mxu0 0.0
    %512 = vmatprep.subr.mxu0 0.0
    %513 = vmatpush1.msra.mxu0 0.0
    %514 = vmatprep.subr.mxu0 0.0
    %515 = vmatpush1.msra.mxu0 0.0
    %516 = vmatprep.subr.mxu0 0.0
    %517 = vmatpush1.msra.mxu0 0.0
    %518 = vmatprep.subr.mxu0 0.0
    %519 = vmatpush1.msra.mxu0 0.0
    %520 = vmatprep.subr.mxu0 0.0
    %521 = vmatpush1.msra.mxu0 0.0
    %522 = vmatprep.subr.mxu0 0.0
    %523 = vmatpush1.msra.mxu0 0.0
    %524 = vmatprep.subr.mxu0 0.0
    %525 = vmatpush1.msra.mxu0 0.0
    %526 = vmatprep.subr.mxu0 0.0
    %527 = vmatpush1.msra.mxu0 0.0
    %528 = vmatprep.subr.mxu0 0.0
    %529 = vmatpush1.msra.mxu0 0.0
    %530 = vmatprep.subr.mxu0 0.0
    %531 = vmatpush1.msra.mxu0 0.0
    %532 = vmatprep.subr.mxu0 0.0
    %533 = vmatpush1.msra.mxu0 0.0
    %534 = vmatprep.subr.mxu0 0.0
    %535 = vmatpush1.msra.mxu0 0.0
    %536 = vmatprep.subr.mxu0 0.0
    %537 = vmatpush1.msra.mxu0 0.0
    %538 = vmatprep.subr.mxu0 0.0
    %539 = vmatpush1.msra.mxu0 0.0
    %540 = vmatprep.subr.mxu0 0.0
    %541 = vmatpush1.msra.mxu0 0.0
    %542 = vmatprep.subr.mxu0 0.0
    %543 = vmatpush1.msra.mxu0 0.0
    %544 = vmatprep.subr.mxu0 0.0
    %545 = vmatpush1.msra.mxu0 0.0
    %546 = vmatprep.subr.mxu0 0.0
    %547 = vmatpush1.msra.mxu0 0.0
    %548 = vmatprep.subr.mxu0 0.0
    %549 = vmatpush1.msra.mxu0 0.0
    %550 = vmatprep.subr.mxu0 0.0
    %551 = vmatpush1.msra.mxu0 0.0
    %552 = vmatprep.subr.mxu0 0.0
    %553 = vmatpush1.msra.mxu0 0.0
    %554 = vmatprep.subr.mxu0 0.0
    %555 = vmatpush1.msra.mxu0 0.0
    %556 = vmatprep.subr.mxu0 0.0
    %557 = vmatpush1.msra.mxu0 0.0
    %558 = vmatprep.subr.mxu0 0.0
    %559 = vmatpush1.msra.mxu0 0.0
    %560 = vmatprep.subr.mxu0 0.0
    %561 = vmatpush1.msra.mxu0 0.0
    %562 = vmatprep.mubr.f32.mxu0 0.0
    %563 = vmatmul.mubr.f32.gmra.mrb[0].mxu0 %v496
    %v564 = vpop.f32.mrb[0].mxu0
    %v565 = vadd.f32 0.0, %v564
    %v566 = vpop.f32.mrb[0].mxu0
    %567 = vdwg.mxu0
    %568 = vrot.lane.b32.xlu0 %v233, 112
    %v569 = vpop.permute.xlu0 %568
    %570 = vrot.lane.b32.xlu0 %v233, 80
    %v571 = vpop.permute.xlu0 %570
    %v572 = vsel %vm239, %v569, 0
    %v574 = vsel %vm239, %v571, 0
    %576 = vmatprep.subr.mxu0 0.0
    %577 = vmatpush1.xpose.msra.mxu0 %v574
    %578 = vmatprep.subr.mxu0 0.0
    %579 = vmatpush1.xpose.msra.mxu0 0.0
    %580 = vmatprep.subr.mxu0 0.0
    %581 = vmatpush1.xpose.msra.mxu0 0.0
    %582 = vmatprep.subr.mxu0 0.0
    %583 = vmatpush1.xpose.msra.mxu0 0.0
    %584 = vmatprep.subr.mxu0 0.0
    %585 = vmatpush1.xpose.msra.mxu0 0.0
    %586 = vmatprep.subr.mxu0 0.0
    %587 = vmatpush1.xpose.msra.mxu0 0.0
    %588 = vmatprep.subr.mxu0 0.0
    %589 = vmatpush1.xpose.msra.mxu0 0.0
    %590 = vmatprep.subr.mxu0 0.0
    %591 = vmatpush1.xpose.msra.mxu0 0.0
    %592 = vmatprep.subr.mxu0 0.0
    %593 = vmatpush1.xpose.msra.mxu0 0.0
    %594 = vmatprep.subr.mxu0 0.0
    %595 = vmatpush1.xpose.msra.mxu0 0.0
    %596 = vmatprep.subr.mxu0 0.0
    %597 = vmatpush1.xpose.msra.mxu0 0.0
    %598 = vmatprep.subr.mxu0 0.0
    %599 = vmatpush1.xpose.msra.mxu0 0.0
    %600 = vmatprep.subr.mxu0 0.0
    %601 = vmatpush1.xpose.msra.mxu0 0.0
    %602 = vmatprep.subr.mxu0 0.0
    %603 = vmatpush1.xpose.msra.mxu0 0.0
    %604 = vmatprep.subr.mxu0 0.0
    %605 = vmatpush1.xpose.msra.mxu0 0.0
    %606 = vmatprep.subr.mxu0 0.0
    %607 = vmatpush1.xpose.msra.mxu0 0.0
    %608 = vmatprep.subr.mxu0 0.0
    %609 = vmatpush1.xpose.msra.mxu0 0.0
    %610 = vmatprep.subr.mxu0 0.0
    %611 = vmatpush1.xpose.msra.mxu0 0.0
    %612 = vmatprep.subr.mxu0 0.0
    %613 = vmatpush1.xpose.msra.mxu0 0.0
    %614 = vmatprep.subr.mxu0 0.0
    %615 = vmatpush1.xpose.msra.mxu0 0.0
    %616 = vmatprep.subr.mxu0 0.0
    %617 = vmatpush1.xpose.msra.mxu0 0.0
    %618 = vmatprep.subr.mxu0 0.0
    %619 = vmatpush1.xpose.msra.mxu0 0.0
    %620 = vmatprep.subr.mxu0 0.0
    %621 = vmatpush1.xpose.msra.mxu0 0.0
    %622 = vmatprep.subr.mxu0 0.0
    %623 = vmatpush1.xpose.msra.mxu0 0.0
    %624 = vmatprep.subr.mxu0 0.0
    %625 = vmatpush1.xpose.msra.mxu0 0.0
    %626 = vmatprep.subr.mxu0 0.0
    %627 = vmatpush1.xpose.msra.mxu0 0.0
    %628 = vmatprep.subr.mxu0 0.0
    %629 = vmatpush1.xpose.msra.mxu0 0.0
    %630 = vmatprep.subr.mxu0 0.0
    %631 = vmatpush1.xpose.msra.mxu0 0.0
    %632 = vmatprep.subr.mxu0 0.0
    %633 = vmatpush1.xpose.msra.mxu0 0.0
    %634 = vmatprep.subr.mxu0 0.0
    %635 = vmatpush1.xpose.msra.mxu0 0.0
    %636 = vmatprep.subr.mxu0 0.0
    %637 = vmatpush1.xpose.msra.mxu0 0.0
    %638 = vmatprep.subr.mxu0 0.0
    %639 = vmatpush1.xpose.msra.mxu0 0.0
    %640 = vmatprep.mubr.f32.mxu0 0.0
    %641 = vmatmul.mubr.f32.gmra.mrb[0].mxu0 %v572
    %v642 = vpop.f32.mrb[0].mxu0
    %v643 = vadd.f32 0.0, %v642
    %v644 = vpop.f32.mrb[0].mxu0
    %645 = vdwg.mxu0
    %v646 = vmul.f32 %v643, 0.35355338
    %v647 = vsel %vm239, %v646, -inf
    %648 = vmax.xlane.f32.xlu0 %v647
    %v649 = vpop.xlane.xlu0 %648
    %v650 = vsub.f32 %v646, %v649
    %v651 = vmul.f32 %v650, 1.442695
    %v652 = vpow.pop %v651
    %v653 = vsel %vm239, %v652, 0.0
    %654 = vadd.xlane.f32.xlu0 %v653
    %v655 = vpop.xlane.xlu0 %654
    %v656 = vrcp.pop %v655
    %v657 = vmul.f32 %v652, %v656
    %658 = vrot.lane.b32.xlu0 %v233, 48
    %v659 = vpop.permute.xlu0 %658
    %v662 = vsel %vm239, %v657, 0
    %664 = vmatprep.subr.mxu0 0.0
    %665 = vmatpush1.msra.mxu0 %v659
    %666 = vmatprep.subr.mxu0 0.0
    %667 = vmatpush1.msra.mxu0 0.0
    %668 = vmatprep.subr.mxu0 0.0
    %669 = vmatpush1.msra.mxu0 0.0
    %670 = vmatprep.subr.mxu0 0.0
    %671 = vmatpush1.msra.mxu0 0.0
    %672 = vmatprep.subr.mxu0 0.0
    %673 = vmatpush1.msra.mxu0 0.0
    %674 = vmatprep.subr.mxu0 0.0
    %675 = vmatpush1.msra.mxu0 0.0
    %676 = vmatprep.subr.mxu0 0.0
    %677 = vmatpush1.msra.mxu0 0.0
    %678 = vmatprep.subr.mxu0 0.0
    %679 = vmatpush1.msra.mxu0 0.0
    %680 = vmatprep.subr.mxu0 0.0
    %681 = vmatpush1.msra.mxu0 0.0
    %682 = vmatprep.subr.mxu0 0.0
    %683 = vmatpush1.msra.mxu0 0.0
    %684 = vmatprep.subr.mxu0 0.0
    %685 = vmatpush1.msra.mxu0 0.0
    %686 = vmatprep.subr.mxu0 0.0
    %687 = vmatpush1.msra.mxu0 0.0
    %688 = vmatprep.subr.mxu0 0.0
    %689 = vmatpush1.msra.mxu0 0.0
    %690 = vmatprep.subr.mxu0 0.0
    %691 = vmatpush1.msra.mxu0 0.0
    %692 = vmatprep.subr.mxu0 0.0
    %693 = vmatpush1.msra.mxu0 0.0
    %694 = vmatprep.subr.mxu0 0.0
    %695 = vmatpush1.msra.mxu0 0.0
    %696 = vmatprep.subr.mxu0 0.0
    %697 = vmatpush1.msra.mxu0 0.0
    %698 = vmatprep.subr.mxu0 0.0
    %699 = vmatpush1.msra.mxu0 0.0
    %700 = vmatprep.subr.mxu0 0.0
    %701 = vmatpush1.msra.mxu0 0.0
    %702 = vmatprep.subr.mxu0 0.0
    %703 = vmatpush1.msra.mxu0 0.0
    %704 = vmatprep.subr.mxu0 0.0
    %705 = vmatpush1.msra.mxu0 0.0
    %706 = vmatprep.subr.mxu0 0.0
    %707 = vmatpush1.msra.mxu0 0.0
    %708 = vmatprep.subr.mxu0 0.0
    %709 = vmatpush1.msra.mxu0 0.0
    %710 = vmatprep.subr.mxu0 0.0
    %711 = vmatpush1.msra.mxu0 0.0
    %712 = vmatprep.subr.mxu0 0.0
    %713 = vmatpush1.msra.mxu0 0.0
    %714 = vmatprep.subr.mxu0 0.0
    %715 = vmatpush1.msra.mxu0 0.0
    %716 = vmatprep.subr.mxu0 0.0
    %717 = vmatpush1.msra.mxu0 0.0
    %718 = vmatprep.subr.mxu0 0.0
    %719 = vmatpush1.msra.mxu0 0.0
    %720 = vmatprep.subr.mxu0 0.0
    %721 = vmatpush1.msra.mxu0 0.0
    %722 = vmatprep.subr.mxu0 0.0
    %723 = vmatpush1.msra.mxu0 0.0
    %724 = vmatprep.subr.mxu0 0.0
    %725 = vmatpush1.msra.mxu0 0.0
    %726 = vmatprep.subr.mxu0 0.0
    %727 = vmatpush1.msra.mxu0 0.0
    %728 = vmatprep.mubr.f32.mxu0 0.0
    %729 = vmatmul.mubr.f32.gmra.mrb[0].mxu0 %v662
    %v730 = vpop.f32.mrb[0].mxu0
    %v731 = vadd.f32 0.0, %v730
    %v732 = vpop.f32.mrb[0].mxu0
    %733 = vdwg.mxu0
    %734 = vrot.lane.b32.xlu0 %v233, 104
    %v735 = vpop.permute.xlu0 %734
    %736 = vrot.lane.b32.xlu0 %v233, 72
    %v737 = vpop.permute.xlu0 %736
    %v738 = vsel %vm239, %v735, 0
    %v740 = vsel %vm239, %v737, 0
    %742 = vmatprep.subr.mxu0 0.0
    %743 = vmatpush1.xpose.msra.mxu0 %v740
    %744 = vmatprep.subr.mxu0 0.0
    %745 = vmatpush1.xpose.msra.mxu0 0.0
    %746 = vmatprep.subr.mxu0 0.0
    %747 = vmatpush1.xpose.msra.mxu0 0.0
    %748 = vmatprep.subr.mxu0 0.0
    %749 = vmatpush1.xpose.msra.mxu0 0.0
    %750 = vmatprep.subr.mxu0 0.0
    %751 = vmatpush1.xpose.msra.mxu0 0.0
    %752 = vmatprep.subr.mxu0 0.0
    %753 = vmatpush1.xpose.msra.mxu0 0.0
    %754 = vmatprep.subr.mxu0 0.0
    %755 = vmatpush1.xpose.msra.mxu0 0.0
    %756 = vmatprep.subr.mxu0 0.0
    %757 = vmatpush1.xpose.msra.mxu0 0.0
    %758 = vmatprep.subr.mxu0 0.0
    %759 = vmatpush1.xpose.msra.mxu0 0.0
    %760 = vmatprep.subr.mxu0 0.0
    %761 = vmatpush1.xpose.msra.mxu0 0.0
    %762 = vmatprep.subr.mxu0 0.0
    %763 = vmatpush1.xpose.msra.mxu0 0.0
    %764 = vmatprep.subr.mxu0 0.0
    %765 = vmatpush1.xpose.msra.mxu0 0.0
    %766 = vmatprep.subr.mxu0 0.0
    %767 = vmatpush1.xpose.msra.mxu0 0.0
    %768 = vmatprep.subr.mxu0 0.0
    %769 = vmatpush1.xpose.msra.mxu0 0.0
    %770 = vmatprep.subr.mxu0 0.0
    %771 = vmatpush1.xpose.msra.mxu0 0.0
    %772 = vmatprep.subr.mxu0 0.0
    %773 = vmatpush1.xpose.msra.mxu0 0.0
    %774 = vmatprep.subr.mxu0 0.0
    %775 = vmatpush1.xpose.msra.mxu0 0.0
    %776 = vmatprep.subr.mxu0 0.0
    %777 = vmatpush1.xpose.msra.mxu0 0.0
    %778 = vmatprep.subr.mxu0 0.0
    %779 = vmatpush1.xpose.msra.mxu0 0.0
    %780 = vmatprep.subr.mxu0 0.0
    %781 = vmatpush1.xpose.msra.mxu0 0.0
    %782 = vmatprep.subr.mxu0 0.0
    %783 = vmatpush1.xpose.msra.mxu0 0.0
    %784 = vmatprep.subr.mxu0 0.0
    %785 = vmatpush1.xpose.msra.mxu0 0.0
    %786 = vmatprep.subr.mxu0 0.0
    %787 = vmatpush1.xpose.msra.mxu0 0.0
    %788 = vmatprep.subr.mxu0 0.0
    %789 = vmatpush1.xpose.msra.mxu0 0.0
    %790 = vmatprep.subr.mxu0 0.0
    %791 = vmatpush1.xpose.msra.mxu0 0.0
    %792 = vmatprep.subr.mxu0 0.0
    %793 = vmatpush1.xpose.msra.mxu0 0.0
    %794 = vmatprep.subr.mxu0 0.0
    %795 = vmatpush1.xpose.msra.mxu0 0.0
    %796 = vmatprep.subr.mxu0 0.0
    %797 = vmatpush1.xpose.msra.mxu0 0.0
    %798 = vmatprep.subr.mxu0 0.0
    %799 = vmatpush1.xpose.msra.mxu0 0.0
    %800 = vmatprep.subr.mxu0 0.0
    %801 = vmatpush1.xpose.msra.mxu0 0.0
    %802 = vmatprep.subr.mxu0 0.0
    %803 = vmatpush1.xpose.msra.mxu0 0.0
    %804 = vmatprep.subr.mxu0 0.0
    %805 = vmatpush1.xpose.msra.mxu0 0.0
    %806 = vmatprep.mubr.f32.mxu0 0.0
    %807 = vmatmul.mubr.f32.gmra.mrb[0].mxu0 %v738
    %v808 = vpop.f32.mrb[0].mxu0
    %v809 = vadd.f32 0.0, %v808
    %v810 = vpop.f32.mrb[0].mxu0
    %811 = vdwg.mxu0
    %v812 = vmul.f32 %v809, 0.35355338
    %v813 = vsel %vm239, %v812, -inf
    %814 = vmax.xlane.f32.xlu0 %v813
    %v815 = vpop.xlane.xlu0 %814
    %v816 = vsub.f32 %v812, %v815
    %v817 = vmul.f32 %v816, 1.442695
    %v818 = vpow.pop %v817
    %v819 = vsel %vm239, %v818, 0.0
    %820 = vadd.xlane.f32.xlu0 %v819
    %v821 = vpop.xlane.xlu0 %820
    %v822 = vrcp.pop %v821
    %v823 = vmul.f32 %v818, %v822
    %824 = vrot.lane.b32.xlu0 %v233, 40
    %v825 = vpop.permute.xlu0 %824
    %v828 = vsel %vm239, %v823, 0
    %830 = vmatprep.subr.mxu0 0.0
    %831 = vmatpush1.msra.mxu0 %v825
    %832 = vmatprep.subr.mxu0 0.0
    %833 = vmatpush1.msra.mxu0 0.0
    %834 = vmatprep.subr.mxu0 0.0
    %835 = vmatpush1.msra.mxu0 0.0
    %836 = vmatprep.subr.mxu0 0.0
    %837 = vmatpush1.msra.mxu0 0.0
    %838 = vmatprep.subr.mxu0 0.0
    %839 = vmatpush1.msra.mxu0 0.0
    %840 = vmatprep.subr.mxu0 0.0
    %841 = vmatpush1.msra.mxu0 0.0
    %842 = vmatprep.subr.mxu0 0.0
    %843 = vmatpush1.msra.mxu0 0.0
    %844 = vmatprep.subr.mxu0 0.0
    %845 = vmatpush1.msra.mxu0 0.0
    %846 = vmatprep.subr.mxu0 0.0
    %847 = vmatpush1.msra.mxu0 0.0
    %848 = vmatprep.subr.mxu0 0.0
    %849 = vmatpush1.msra.mxu0 0.0
    %850 = vmatprep.subr.mxu0 0.0
    %851 = vmatpush1.msra.mxu0 0.0
    %852 = vmatprep.subr.mxu0 0.0
    %853 = vmatpush1.msra.mxu0 0.0
    %854 = vmatprep.subr.mxu0 0.0
    %855 = vmatpush1.msra.mxu0 0.0
    %856 = vmatprep.subr.mxu0 0.0
    %857 = vmatpush1.msra.mxu0 0.0
    %858 = vmatprep.subr.mxu0 0.0
    %859 = vmatpush1.msra.mxu0 0.0
    %860 = vmatprep.subr.mxu0 0.0
    %861 = vmatpush1.msra.mxu0 0.0
    %862 = vmatprep.subr.mxu0 0.0
    %863 = vmatpush1.msra.mxu0 0.0
    %864 = vmatprep.subr.mxu0 0.0
    %865 = vmatpush1.msra.mxu0 0.0
    %866 = vmatprep.subr.mxu0 0.0
    %867 = vmatpush1.msra.mxu0 0.0
    %868 = vmatprep.subr.mxu0 0.0
    %869 = vmatpush1.msra.mxu0 0.0
    %870 = vmatprep.subr.mxu0 0.0
    %871 = vmatpush1.msra.mxu0 0.0
    %872 = vmatprep.subr.mxu0 0.0
    %873 = vmatpush1.msra.mxu0 0.0
    %874 = vmatprep.subr.mxu0 0.0
    %875 = vmatpush1.msra.mxu0 0.0
    %876 = vmatprep.subr.mxu0 0.0
    %877 = vmatpush1.msra.mxu0 0.0
    %878 = vmatprep.subr.mxu0 0.0
    %879 = vmatpush1.msra.mxu0 0.0
    %880 = vmatprep.subr.mxu0 0.0
    %881 = vmatpush1.msra.mxu0 0.0
    %882 = vmatprep.subr.mxu0 0.0
    %883 = vmatpush1.msra.mxu0 0.0
    %884 = vmatprep.subr.mxu0 0.0
    %885 = vmatpush1.msra.mxu0 0.0
    %886 = vmatprep.subr.mxu0 0.0
    %887 = vmatpush1.msra.mxu0 0.0
    %888 = vmatprep.subr.mxu0 0.0
    %889 = vmatpush1.msra.mxu0 0.0
    %890 = vmatprep.subr.mxu0 0.0
    %891 = vmatpush1.msra.mxu0 0.0
    %892 = vmatprep.subr.mxu0 0.0
    %893 = vmatpush1.msra.mxu0 0.0
    %894 = vmatprep.mubr.f32.mxu0 0.0
    %895 = vmatmul.mubr.f32.gmra.mrb[0].mxu0 %v828
    %v896 = vpop.f32.mrb[0].mxu0
    %v897 = vadd.f32 0.0, %v896
    %v898 = vpop.f32.mrb[0].mxu0
    %899 = vdwg.mxu0
    %901 = vrot.lane.b32.xlu0 %v565, 8
    %v902 = vpop.permute.xlu0 %901
    %905 = vrot.lane.b32.xlu0 %v731, 16
    %v906 = vpop.permute.xlu0 %905
    %909 = vrot.lane.b32.xlu0 %v897, 24
    %v910 = vpop.permute.xlu0 %909
    %v912 = vsel %vm239, %v399, %v902
    %vm913 = vcmask 130048
    %v914 = vsel %vm913, %v912, %v906
    %vm915 = vcmask 195584
    %v916 = vsel %vm915, %v914, %v910
    %v917 = vld [vmem:[#allocation2 + $0x28] sm:$0xff]
    %v918 = vld [vmem:[#allocation2 + $0x30] sm:$0xff]
    %v919 = vld [vmem:[#allocation2 + $0x38] sm:$0xff]
    %v920 = vld [vmem:[#allocation2 + $0x40] sm:$0xff]
    %v922 = vsel %vm129, %v916, 0
    %924 = vmatprep.subr.mxu0 0.0
    %925 = vmatpush1.msra.mxu0 %v917
    %926 = vmatprep.subr.mxu0 0.0
    %927 = vmatpush1.msra.mxu0 %v918
    %928 = vmatprep.subr.mxu0 0.0
    %929 = vmatpush1.msra.mxu0 %v919
    %930 = vmatprep.subr.mxu0 0.0
    %931 = vmatpush1.msra.mxu0 %v920
    %932 = vmatprep.subr.mxu0 0.0
    %933 = vmatpush1.msra.mxu0 0.0
    %934 = vmatprep.subr.mxu0 0.0
    %935 = vmatpush1.msra.mxu0 0.0
    %936 = vmatprep.subr.mxu0 0.0
    %937 = vmatpush1.msra.mxu0 0.0
    %938 = vmatprep.subr.mxu0 0.0
    %939 = vmatpush1.msra.mxu0 0.0
    %940 = vmatprep.subr.mxu0 0.0
    %941 = vmatpush1.msra.mxu0 0.0
    %942 = vmatprep.subr.mxu0 0.0
    %943 = vmatpush1.msra.mxu0 0.0
    %944 = vmatprep.subr.mxu0 0.0
    %945 = vmatpush1.msra.mxu0 0.0
    %946 = vmatprep.subr.mxu0 0.0
    %947 = vmatpush1.msra.mxu0 0.0
    %948 = vmatprep.subr.mxu0 0.0
    %949 = vmatpush1.msra.mxu0 0.0
    %950 = vmatprep.subr.mxu0 0.0
    %951 = vmatpush1.msra.mxu0 0.0
    %952 = vmatprep.subr.mxu0 0.0
    %953 = vmatpush1.msra.mxu0 0.0
    %954 = vmatprep.subr.mxu0 0.0
    %955 = vmatpush1.msra.mxu0 0.0
    %956 = vmatprep.subr.mxu0 0.0
    %957 = vmatpush1.msra.mxu0 0.0
    %958 = vmatprep.subr.mxu0 0.0
    %959 = vmatpush1.msra.mxu0 0.0
    %960 = vmatprep.subr.mxu0 0.0
    %961 = vmatpush1.msra.mxu0 0.0
    %962 = vmatprep.subr.mxu0 0.0
    %963 = vmatpush1.msra.mxu0 0.0
    %964 = vmatprep.subr.mxu0 0.0
    %965 = vmatpush1.msra.mxu0 0.0
    %966 = vmatprep.subr.mxu0 0.0
    %967 = vmatpush1.msra.mxu0 0.0
    %968 = vmatprep.subr.mxu0 0.0
    %969 = vmatpush1.msra.mxu0 0.0
    %970 = vmatprep.subr.mxu0 0.0
    %971 = vmatpush1.msra.mxu0 0.0
    %972 = vmatprep.subr.mxu0 0.0
    %973 = vmatpush1.msra.mxu0 0.0
    %974 = vmatprep.subr.mxu0 0.0
    %975 = vmatpush1.msra.mxu0 0.0
    %976 = vmatprep.subr.mxu0 0.0
    %977 = vmatpush1.msra.mxu0 0.0
    %978 = vmatprep.subr.mxu0 0.0
    %979 = vmatpush1.msra.mxu0 0.0
    %980 = vmatprep.subr.mxu0 0.0
    %981 = vmatpush1.msra.mxu0 0.0
    %982 = vmatprep.subr.mxu0 0.0
    %983 = vmatpush1.msra.mxu0 0.0
    %984 = vmatprep.subr.mxu0 0.0
    %985 = vmatpush1.msra.mxu0 0.0
    %986 = vmatprep.subr.mxu0 0.0
    %987 = vmatpush1.msra.mxu0 0.0
    %988 = vmatprep.mubr.f32.mxu0 0.0
    %989 = vmatmul.mubr.f32.gmra.mrb[0].mxu0 %v922
    %v990 = vpop.f32.mrb[0].mxu0
    %v991 = vadd.f32 0.0, %v990
    %v992 = vpop.f32.mrb[0].mxu0
    %993 = vdwg.mxu0
    %v994 = vadd.f32 %v124, %v991
    %v995 = vld [vmem:[#allocation4 + $0x4] sm:$0x1]
    %v996 = vlaneseq
    %v997 = vshrl.u32 %v996, 7
    %v998 = vsub.s32 0, %v997
    %v999 = vrot.slane %v995, %v998
    %v1000 = vadd.f32 %v994, %v999
    %v1001 = vld [vmem:[#allocation4 + $0x5] sm:$0x1]
    %v1002 = vld [vmem:[#allocation4 + $0x6] sm:$0x1]
    %v1003 = vsel %vm129, %v1000, 0.0
    %1004 = vadd.xlane.f32.xlu0 %v1003
    %v1005 = vpop.xlane.xlu0 %1004
    %v1006 = vmul.f32 %v1005, %v133
    %v1007 = vsub.f32 %v1000, %v1006
    %v1008 = vmul.f32 %v1007, %v1007
    %v1009 = vsel %vm129, %v1008, 0.0
    %1010 = vadd.xlane.f32.xlu0 %v1009
    %v1011 = vpop.xlane.xlu0 %1010
    %v1012 = vmul.f32 %v1011, %v133
    %v1013 = vadd.f32 %v1012, 1e-05
    %v1014 = vrsqrt.pop %v1013
    %v1015 = vmul.f32 %v1007, %v1014
    %v1016 = vlaneseq
    %v1017 = vshrl.u32 %v1016, 7
    %v1018 = vsub.s32 0, %v1017
    %v1019 = vrot.slane %v1001, %v1018
    %v1020 = vmul.f32 %v1015, %v1019
    %v1021 = vlaneseq
    %v1022 = vshrl.u32 %v1021, 7
    %v1023 = vsub.s32 0, %v1022
    %v1024 = vrot.slane %v1002, %v1023
    %v1025 = vadd.f32 %v1020, %v1024
    %v1026 = vld [vmem:[#allocation2 + $0x48] sm:$0xff]
    %v1027 = vld [vmem:[#allocation2 + $0x50] sm:$0xff]
    %v1028 = vld [vmem:[#allocation2 + $0x58] sm:$0xff]
    %v1029 = vld [vmem:[#allocation2 + $0x60] sm:$0xff]
    %v1030 = vld [vmem:[#allocation4 + $0x7] sm:$0x1]
    %v1031 = vlaneseq
    %v1032 = vshrl.u32 %v1031, 7
    %v1033 = vsub.s32 0, %v1032
    %v1034 = vrot.slane %v1030, %v1033
    %v1036 = vsel %vm129, %v1025, 0
    %1038 = vmatprep.subr.mxu0 0.0
    %1039 = vmatpush1.msra.mxu0 %v1026
    %1040 = vmatprep.subr.mxu0 0.0
    %1041 = vmatpush1.msra.mxu0 %v1027
    %1042 = vmatprep.subr.mxu0 0.0
    %1043 = vmatpush1.msra.mxu0 %v1028
    %1044 = vmatprep.subr.mxu0 0.0
    %1045 = vmatpush1.msra.mxu0 %v1029
    %1046 = vmatprep.subr.mxu0 0.0
    %1047 = vmatpush1.msra.mxu0 0.0
    %1048 = vmatprep.subr.mxu0 0.0
    %1049 = vmatpush1.msra.mxu0 0.0
    %1050 = vmatprep.subr.mxu0 0.0
    %1051 = vmatpush1.msra.mxu0 0.0
    %1052 = vmatprep.subr.mxu0 0.0
    %1053 = vmatpush1.msra.mxu0 0.0
    %1054 = vmatprep.subr.mxu0 0.0
    %1055 = vmatpush1.msra.mxu0 0.0
    %1056 = vmatprep.subr.mxu0 0.0
    %1057 = vmatpush1.msra.mxu0 0.0
    %1058 = vmatprep.subr.mxu0 0.0
    %1059 = vmatpush1.msra.mxu0 0.0
    %1060 = vmatprep.subr.mxu0 0.0
    %1061 = vmatpush1.msra.mxu0 0.0
    %1062 = vmatprep.subr.mxu0 0.0
    %1063 = vmatpush1.msra.mxu0 0.0
    %1064 = vmatprep.subr.mxu0 0.0
    %1065 = vmatpush1.msra.mxu0 0.0
    %1066 = vmatprep.subr.mxu0 0.0
    %1067 = vmatpush1.msra.mxu0 0.0
    %1068 = vmatprep.subr.mxu0 0.0
    %1069 = vmatpush1.msra.mxu0 0.0
    %1070 = vmatprep.subr.mxu0 0.0
    %1071 = vmatpush1.msra.mxu0 0.0
    %1072 = vmatprep.subr.mxu0 0.0
    %1073 = vmatpush1.msra.mxu0 0.0
    %1074 = vmatprep.subr.mxu0 0.0
    %1075 = vmatpush1.msra.mxu0 0.0
    %1076 = vmatprep.subr.mxu0 0.0
    %1077 = vmatpush1.msra.mxu0 0.0
    %1078 = vmatprep.subr.mxu0 0.0
    %1079 = vmatpush1.msra.mxu0 0.0
    %1080 = vmatprep.subr.mxu0 0.0
    %1081 = vmatpush1.msra.mxu0 0.0
    %1082 = vmatprep.subr.mxu0 0.0
    %1083 = vmatpush1.msra.mxu0 0.0
    %1084 = vmatprep.subr.mxu0 0.0
    %1085 = vmatpush1.msra.mxu0 0.0
    %1086 = vmatprep.subr.mxu0 0.0
    %1087 = vmatpush1.msra.mxu0 0.0
    %1088 = vmatprep.subr.mxu0 0.0
    %1089 = vmatpush1.msra.mxu0 0.0
    %1090 = vmatprep.subr.mxu0 0.0
    %1091 = vmatpush1.msra.mxu0 0.0
    %1092 = vmatprep.subr.mxu0 0.0
    %1093 = vmatpush1.msra.mxu0 0.0
    %1094 = vmatprep.subr.mxu0 0.0
    %1095 = vmatpush1.msra.mxu0 0.0
    %1096 = vmatprep.subr.mxu0 0.0
    %1097 = vmatpush1.msra.mxu0 0.0
    %1098 = vmatprep.subr.mxu0 0.0
    %1099 = vmatpush1.msra.mxu0 0.0
    %1100 = vmatprep.subr.mxu0 0.0
    %1101 = vmatpush1.msra.mxu0 0.0
    %1102 = vmatprep.mubr.f32.mxu0 0.0
    %1103 = vmatmul.mubr.f32.gmra.mrb[0].mxu0 %v1036
    %v1104 = vpop.f32.mrb[0].mxu0
    %v1105 = vadd.f32 %v1034, %v1104
    %v1106 = vpop.f32.mrb[0].mxu0
    %1107 = vdwg.mxu0
    %v1108 = vmul.f32 %v1105, 0.5
    %v1109 = vmul.f32 %v1105, 0.044715
    %v1110 = vmul.f32 %v1109, %v1105
    %v1111 = vmul.f32 %v1110, %v1105
    %v1112 = vadd.f32 %v1105, %v1111
    %v1113 = vmul.f32 %v1112, 0.7978846
    %v1114 = vtanh.pop %v1113
    %v1115 = vadd.f32 %v1114, 1.0
    %v1116 = vmul.f32 %v1108, %v1115
    %v1117 = vld [vmem:[#allocation2 + $0x68] sm:$0xff]
    %v1118 = vld [vmem:[#allocation2 + $0x70] sm:$0xff]
    %v1119 = vld [vmem:[#allocation2 + $0x78] sm:$0xff]
    %v1120 = vld [vmem:[#allocation2 + $0x80] sm:$0xff]
    %v1121 = vld [vmem:[#allocation2 + $0x88] sm:$0xff]
    %v1122 = vld [vmem:[#allocation2 + $0x90] sm:$0xff]
    %v1123 = vld [vmem:[#allocation2 + $0x98] sm:$0xff]
    %v1124 = vld [vmem:[#allocation2 + $0xa0] sm:$0xff]
    %vm1125 = vcmask 523264
    %v1127 = vsel %vm1125, %v1116, 0
    %1129 = vmatprep.subr.mxu0 0.0
    %1130 = vmatpush1.msra.mxu0 %v1117
    %1131 = vmatprep.subr.mxu0 0.0
    %1132 = vmatpush1.msra.mxu0 %v1118
    %1133 = vmatprep.subr.mxu0 0.0
    %1134 = vmatpush1.msra.mxu0 %v1119
    %1135 = vmatprep.subr.mxu0 0.0
    %1136 = vmatpush1.msra.mxu0 %v1120
    %1137 = vmatprep.subr.mxu0 0.0
    %1138 = vmatpush1.msra.mxu0 %v1121
    %1139 = vmatprep.subr.mxu0 0.0
    %1140 = vmatpush1.msra.mxu0 %v1122
    %1141 = vmatprep.subr.mxu0 0.0
    %1142 = vmatpush1.msra.mxu0 %v1123
    %1143 = vmatprep.subr.mxu0 0.0
    %1144 = vmatpush1.msra.mxu0 %v1124
    %1145 = vmatprep.subr.mxu0 0.0
    %1146 = vmatpush1.msra.mxu0 0.0
    %1147 = vmatprep.subr.mxu0 0.0
    %1148 = vmatpush1.msra.mxu0 0.0
    %1149 = vmatprep.subr.mxu0 0.0
    %1150 = vmatpush1.msra.mxu0 0.0
    %1151 = vmatprep.subr.mxu0 0.0
    %1152 = vmatpush1.msra.mxu0 0.0
    %1153 = vmatprep.subr.mxu0 0.0
    %1154 = vmatpush1.msra.mxu0 0.0
    %1155 = vmatprep.subr.mxu0 0.0
    %1156 = vmatpush1.msra.mxu0 0.0
    %1157 = vmatprep.subr.mxu0 0.0
    %1158 = vmatpush1.msra.mxu0 0.0
    %1159 = vmatprep.subr.mxu0 0.0
    %1160 = vmatpush1.msra.mxu0 0.0
    %1161 = vmatprep.subr.mxu0 0.0
    %1162 = vmatpush1.msra.mxu0 0.0
    %1163 = vmatprep.subr.mxu0 0.0
    %1164 = vmatpush1.msra.mxu0 0.0
    %1165 = vmatprep.subr.mxu0 0.0
    %1166 = vmatpush1.msra.mxu0 0.0
    %1167 = vmatprep.subr.mxu0 0.0
    %1168 = vmatpush1.msra.mxu0 0.0
    %1169 = vmatprep.subr.mxu0 0.0
    %1170 = vmatpush1.msra.mxu0 0.0
    %1171 = vmatprep.subr.mxu0 0.0
    %1172 = vmatpush1.msra.mxu0 0.0
    %1173 = vmatprep.subr.mxu0 0.0
    %1174 = vmatpush1.msra.mxu0 0.0
    %1175 = vmatprep.subr.mxu0 0.0
    %1176 = vmatpush1.msra.mxu0 0.0
    %1177 = vmatprep.subr.mxu0 0.0
    %1178 = vmatpush1.msra.mxu0 0.0
    %1179 = vmatprep.subr.mxu0 0.0
    %1180 = vmatpush1.msra.mxu0 0.0
    %1181 = vmatprep.subr.mxu0 0.0
    %1182 = vmatpush1.msra.mxu0 0.0
    %1183 = vmatprep.subr.mxu0 0.0
    %1184 = vmatpush1.msra.mxu0 0.0
    %1185 = vmatprep.subr.mxu0 0.0
    %1186 = vmatpush1.msra.mxu0 0.0
    %1187 = vmatprep.subr.mxu0 0.0
    %1188 = vmatpush1.msra.mxu0 0.0
    %1189 = vmatprep.subr.mxu0 0.0
    %1190 = vmatpush1.msra.mxu0 0.0
    %1191 = vmatprep.subr.mxu0 0.0
    %1192 = vmatpush1.msra.mxu0 0.0
    %1193 = vmatprep.mubr.f32.mxu0 0.0
    %1194 = vmatmul.mubr.f32.gmra.mrb[0].mxu0 %v1127
    %v1195 = vpop.f32.mrb[0].mxu0
    %v1196 = vadd.f32 0.0, %v1195
    %v1197 = vpop.f32.mrb[0].mxu0
    %1198 = vdwg.mxu0
    %v1199 = vadd.f32 %v1000, %v1196
    %v1200 = vld [vmem:[#allocation4 + $0x8] sm:$0x1]
    %v1201 = vlaneseq
    %v1202 = vshrl.u32 %v1201, 7
    %v1203 = vsub.s32 0, %v1202
    %v1204 = vrot.slane %v1200, %v1203
    %v1205 = vadd.f32 %v1199, %v1204
    %v1206 = vld [vmem:[#allocation4 + $0x9] sm:$0x1]
    %v1207 = vld [vmem:[#allocation4 + $0xa] sm:$0x1]
    %v1208 = vsel %vm129, %v1205, 0.0
    %1209 = vadd.xlane.f32.xlu0 %v1208
    %v1210 = vpop.xlane.xlu0 %1209
    %v1211 = vmul.f32 %v1210, %v133
    %v1212 = vsub.f32 %v1205, %v1211
    %v1213 = vmul.f32 %v1212, %v1212
    %v1214 = vsel %vm129, %v1213, 0.0
    %1215 = vadd.xlane.f32.xlu0 %v1214
    %v1216 = vpop.xlane.xlu0 %1215
    %v1217 = vmul.f32 %v1216, %v133
    %v1218 = vadd.f32 %v1217, 1e-05
    %v1219 = vrsqrt.pop %v1218
    %v1220 = vmul.f32 %v1212, %v1219
    %v1221 = vlaneseq
    %v1222 = vshrl.u32 %v1221, 7
    %v1223 = vsub.s32 0, %v1222
    %v1224 = vrot.slane %v1206, %v1223
    %v1225 = vmul.f32 %v1220, %v1224
    %v1226 = vlaneseq
    %v1227 = vshrl.u32 %v1226, 7
    %v1228 = vsub.s32 0, %v1227
    %v1229 = vrot.slane %v1207, %v1228
    %v1230 = vadd.f32 %v1225, %v1229
    %v1231 = vld [vmem:[#allocation2 + $0xa8] sm:$0xff]
    %v1232 = vld [vmem:[#allocation2 + $0xb0] sm:$0xff]
    %v1233 = vld [vmem:[#allocation2 + $0xb8] sm:$0xff]
    %v1234 = vld [vmem:[#allocation2 + $0xc0] sm:$0xff]
    %v1235 = vld [vmem:[#allocation4 + $0xb] sm:$0x1]
    %v1236 = vlaneseq
    %v1237 = vshrl.u32 %v1236, 7
    %v1238 = vsub.s32 0, %v1237
    %v1239 = vrot.slane %v1235, %v1238
    %v1241 = vsel %vm129, %v1230, 0
    %1243 = vmatprep.subr.mxu0 0.0
    %1244 = vmatpush1.msra.mxu0 %v1231
    %1245 = vmatprep.subr.mxu0 0.0
    %1246 = vmatpush1.msra.mxu0 %v1232
    %1247 = vmatprep.subr.mxu0 0.0
    %1248 = vmatpush1.msra.mxu0 %v1233
    %1249 = vmatprep.subr.mxu0 0.0
    %1250 = vmatpush1.msra.mxu0 %v1234
    %1251 = vmatprep.subr.mxu0 0.0
    %1252 = vmatpush1.msra.mxu0 0.0
    %1253 = vmatprep.subr.mxu0 0.0
    %1254 = vmatpush1.msra.mxu0 0.0
    %1255 = vmatprep.subr.mxu0 0.0
    %1256 = vmatpush1.msra.mxu0 0.0
    %1257 = vmatprep.subr.mxu0 0.0
    %1258 = vmatpush1.msra.mxu0 0.0
    %1259 = vmatprep.subr.mxu0 0.0
    %1260 = vmatpush1.msra.mxu0 0.0
    %1261 = vmatprep.subr.mxu0 0.0
    %1262 = vmatpush1.msra.mxu0 0.0
    %1263 = vmatprep.subr.mxu0 0.0
    %1264 = vmatpush1.msra.mxu0 0.0
    %1265 = vmatprep.subr.mxu0 0.0
    %1266 = vmatpush1.msra.mxu0 0.0
    %1267 = vmatprep.subr.mxu0 0.0
    %1268 = vmatpush1.msra.mxu0 0.0
    %1269 = vmatprep.subr.mxu0 0.0
    %1270 = vmatpush1.msra.mxu0 0.0
    %1271 = vmatprep.subr.mxu0 0.0
    %1272 = vmatpush1.msra.mxu0 0.0
    %1273 = vmatprep.subr.mxu0 0.0
    %1274 = vmatpush1.msra.mxu0 0.0
    %1275 = vmatprep.subr.mxu0 0.0
    %1276 = vmatpush1.msra.mxu0 0.0
    %1277 = vmatprep.subr.mxu0 0.0
    %1278 = vmatpush1.msra.mxu0 0.0
    %1279 = vmatprep.subr.mxu0 0.0
    %1280 = vmatpush1.msra.mxu0 0.0
    %1281 = vmatprep.subr.mxu0 0.0
    %1282 = vmatpush1.msra.mxu0 0.0
    %1283 = vmatprep.subr.mxu0 0.0
    %1284 = vmatpush1.msra.mxu0 0.0
    %1285 = vmatprep.subr.mxu0 0.0
    %1286 = vmatpush1.msra.mxu0 0.0
    %1287 = vmatprep.subr.mxu0 0.0
    %1288 = vmatpush1.msra.mxu0 0.0
    %1289 = vmatprep.subr.mxu0 0.0
    %1290 = vmatpush1.msra.mxu0 0.0
    %1291 = vmatprep.subr.mxu0 0.0
    %1292 = vmatpush1.msra.mxu0 0.0
    %1293 = vmatprep.subr.mxu0 0.0
    %1294 = vmatpush1.msra.mxu0 0.0
    %1295 = vmatprep.subr.mxu0 0.0
    %1296 = vmatpush1.msra.mxu0 0.0
    %1297 = vmatprep.subr.mxu0 0.0
    %1298 = vmatpush1.msra.mxu0 0.0
    %1299 = vmatprep.subr.mxu0 0.0
    %1300 = vmatpush1.msra.mxu0 0.0
    %1301 = vmatprep.subr.mxu0 0.0
    %1302 = vmatpush1.msra.mxu0 0.0
    %1303 = vmatprep.subr.mxu0 0.0
    %1304 = vmatpush1.msra.mxu0 0.0
    %1305 = vmatprep.subr.mxu0 0.0
    %1306 = vmatpush1.msra.mxu0 0.0
    %1307 = vmatprep.mubr.f32.mxu0 0.0
    %1308 = vmatmul.mubr.f32.gmra.mrb[0].mxu0 %v1241
    %v1309 = vpop.f32.mrb[0].mxu0
    %v1310 = vadd.f32 %v1239, %v1309
    %v1311 = vpop.f32.mrb[0].mxu0
    %1312 = vdwg.mxu0
    %1314 = vrot.lane.b32.xlu0 %v1310, 96
    %v1315 = vpop.permute.xlu0 %1314
    %v1316 = vsel %vm239, %v1310, 0
    %v1318 = vsel %vm239, %v1315, 0
    %1320 = vmatprep.subr.mxu0 0.0
    %1321 = vmatpush1.xpose.msra.mxu0 %v1318
    %1322 = vmatprep.subr.mxu0 0.0
    %1323 = vmatpush1.xpose.msra.mxu0 0.0
    %1324 = vmatprep.subr.mxu0 0.0
    %1325 = vmatpush1.xpose.msra.mxu0 0.0
    %1326 = vmatprep.subr.mxu0 0.0
    %1327 = vmatpush1.xpose.msra.mxu0 0.0
    %1328 = vmatprep.subr.mxu0 0.0
    %1329 = vmatpush1.xpose.msra.mxu0 0.0
    %1330 = vmatprep.subr.mxu0 0.0
    %1331 = vmatpush1.xpose.msra.mxu0 0.0
    %1332 = vmatprep.subr.mxu0 0.0
    %1333 = vmatpush1.xpose.msra.mxu0 0.0
    %1334 = vmatprep.subr.mxu0 0.0
    %1335 = vmatpush1.xpose.msra.mxu0 0.0
    %1336 = vmatprep.subr.mxu0 0.0
    %1337 = vmatpush1.xpose.msra.mxu0 0.0
    %1338 = vmatprep.subr.mxu0 0.0
    %1339 = vmatpush1.xpose.msra.mxu0 0.0
    %1340 = vmatprep.subr.mxu0 0.0
    %1341 = vmatpush1.xpose.msra.mxu0 0.0
    %1342 = vmatprep.subr.mxu0 0.0
    %1343 = vmatpush1.xpose.msra.mxu0 0.0
    %1344 = vmatprep.subr.mxu0 0.0
    %1345 = vmatpush1.xpose.msra.mxu0 0.0
    %1346 = vmatprep.subr.mxu0 0.0
    %1347 = vmatpush1.xpose.msra.mxu0 0.0
    %1348 = vmatprep.subr.mxu0 0.0
    %1349 = vmatpush1.xpose.msra.mxu0 0.0
    %1350 = vmatprep.subr.mxu0 0.0
    %1351 = vmatpush1.xpose.msra.mxu0 0.0
    %1352 = vmatprep.subr.mxu0 0.0
    %1353 = vmatpush1.xpose.msra.mxu0 0.0
    %1354 = vmatprep.subr.mxu0 0.0
    %1355 = vmatpush1.xpose.msra.mxu0 0.0
    %1356 = vmatprep.subr.mxu0 0.0
    %1357 = vmatpush1.xpose.msra.mxu0 0.0
    %1358 = vmatprep.subr.mxu0 0.0
    %1359 = vmatpush1.xpose.msra.mxu0 0.0
    %1360 = vmatprep.subr.mxu0 0.0
    %1361 = vmatpush1.xpose.msra.mxu0 0.0
    %1362 = vmatprep.subr.mxu0 0.0
    %1363 = vmatpush1.xpose.msra.mxu0 0.0
    %1364 = vmatprep.subr.mxu0 0.0
    %1365 = vmatpush1.xpose.msra.mxu0 0.0
    %1366 = vmatprep.subr.mxu0 0.0
    %1367 = vmatpush1.xpose.msra.mxu0 0.0
    %1368 = vmatprep.subr.mxu0 0.0
    %1369 = vmatpush1.xpose.msra.mxu0 0.0
    %1370 = vmatprep.subr.mxu0 0.0
    %1371 = vmatpush1.xpose.msra.mxu0 0.0
    %1372 = vmatprep.subr.mxu0 0.0
    %1373 = vmatpush1.xpose.msra.mxu0 0.0
    %1374 = vmatprep.subr.mxu0 0.0
    %1375 = vmatpush1.xpose.msra.mxu0 0.0
    %1376 = vmatprep.subr.mxu0 0.0
    %1377 = vmatpush1.xpose.msra.mxu0 0.0
    %1378 = vmatprep.subr.mxu0 0.0
    %1379 = vmatpush1.xpose.msra.mxu0 0.0
    %1380 = vmatprep.subr.mxu0 0.0
    %1381 = vmatpush1.xpose.msra.mxu0 0.0
    %1382 = vmatprep.subr.mxu0 0.0
    %1383 = vmatpush1.xpose.msra.mxu0 0.0
    %1384 = vmatprep.mubr.f32.mxu0 0.0
    %1385 = vmatmul.mubr.f32.gmra.mrb[0].mxu0 %v1316
    %v1386 = vpop.f32.mrb[0].mxu0
    %v1387 = vadd.f32 0.0, %v1386
    %v1388 = vpop.f32.mrb[0].mxu0
    %1389 = vdwg.mxu0
    %v1390 = vmul.f32 %v1387, 0.35355338
    %v1391 = vsel %vm239, %v1390, -inf
    %1392 = vmax.xlane.f32.xlu0 %v1391
    %v1393 = vpop.xlane.xlu0 %1392
    %v1394 = vsub.f32 %v1390, %v1393
    %v1395 = vmul.f32 %v1394, 1.442695
    %v1396 = vpow.pop %v1395
    %v1397 = vsel %vm239, %v1396, 0.0
    %1398 = vadd.xlane.f32.xlu0 %v1397
    %v1399 = vpop.xlane.xlu0 %1398
    %v1400 = vrcp.pop %v1399
    %v1401 = vmul.f32 %v1396, %v1400
    %1402 = vrot.lane.b32.xlu0 %v1310, 64
    %v1403 = vpop.permute.xlu0 %1402
    %v1406 = vsel %vm239, %v1401, 0
    %1408 = vmatprep.subr.mxu0 0.0
    %1409 = vmatpush1.msra.mxu0 %v1403
    %1410 = vmatprep.subr.mxu0 0.0
    %1411 = vmatpush1.msra.mxu0 0.0
    %1412 = vmatprep.subr.mxu0 0.0
    %1413 = vmatpush1.msra.mxu0 0.0
    %1414 = vmatprep.subr.mxu0 0.0
    %1415 = vmatpush1.msra.mxu0 0.0
    %1416 = vmatprep.subr.mxu0 0.0
    %1417 = vmatpush1.msra.mxu0 0.0
    %1418 = vmatprep.subr.mxu0 0.0
    %1419 = vmatpush1.msra.mxu0 0.0
    %1420 = vmatprep.subr.mxu0 0.0
    %1421 = vmatpush1.msra.mxu0 0.0
    %1422 = vmatprep.subr.mxu0 0.0
    %1423 = vmatpush1.msra.mxu0 0.0
    %1424 = vmatprep.subr.mxu0 0.0
    %1425 = vmatpush1.msra.mxu0 0.0
    %1426 = vmatprep.subr.mxu0 0.0
    %1427 = vmatpush1.msra.mxu0 0.0
    %1428 = vmatprep.subr.mxu0 0.0
    %1429 = vmatpush1.msra.mxu0 0.0
    %1430 = vmatprep.subr.mxu0 0.0
    %1431 = vmatpush1.msra.mxu0 0.0
    %1432 = vmatprep.subr.mxu0 0.0
    %1433 = vmatpush1.msra.mxu0 0.0
    %1434 = vmatprep.subr.mxu0 0.0
    %1435 = vmatpush1.msra.mxu0 0.0
    %1436 = vmatprep.subr.mxu0 0.0
    %1437 = vmatpush1.msra.mxu0 0.0
    %1438 = vmatprep.subr.mxu0 0.0
    %1439 = vmatpush1.msra.mxu0 0.0
    %1440 = vmatprep.subr.mxu0 0.0
    %1441 = vmatpush1.msra.mxu0 0.0
    %1442 = vmatprep.subr.mxu0 0.0
    %1443 = vmatpush1.msra.mxu0 0.0
    %1444 = vmatprep.subr.mxu0 0.0
    %1445 = vmatpush1.msra.mxu0 0.0
    %1446 = vmatprep.subr.mxu0 0.0
    %1447 = vmatpush1.msra.mxu0 0.0
    %1448 = vmatprep.subr.mxu0 0.0
    %1449 = vmatpush1.msra.mxu0 0.0
    %1450 = vmatprep.subr.mxu0 0.0
    %1451 = vmatpush1.msra.mxu0 0.0
    %1452 = vmatprep.subr.mxu0 0.0
    %1453 = vmatpush1.msra.mxu0 0.0
    %1454 = vmatprep.subr.mxu0 0.0
    %1455 = vmatpush1.msra.mxu0 0.0
    %1456 = vmatprep.subr.mxu0 0.0
    %1457 = vmatpush1.msra.mxu0 0.0
    %1458 = vmatprep.subr.mxu0 0.0
    %1459 = vmatpush1.msra.mxu0 0.0
    %1460 = vmatprep.subr.mxu0 0.0
    %1461 = vmatpush1.msra.mxu0 0.0
    %1462 = vmatprep.subr.mxu0 0.0
    %1463 = vmatpush1.msra.mxu0 0.0
    %1464 = vmatprep.subr.mxu0 0.0
    %1465 = vmatpush1.msra.mxu0 0.0
    %1466 = vmatprep.subr.mxu0 0.0
    %1467 = vmatpush1.msra.mxu0 0.0
    %1468 = vmatprep.subr.mxu0 0.0
    %1469 = vmatpush1.msra.mxu0 0.0
    %1470 = vmatprep.subr.mxu0 0.0
    %1471 = vmatpush1.msra.mxu0 0.0
    %1472 = vmatprep.mubr.f32.mxu0 0.0
    %1473 = vmatmul.mubr.f32.gmra.mrb[0].mxu0 %v1406
    %v1474 = vpop.f32.mrb[0].mxu0
    %v1475 = vadd.f32 0.0, %v1474
    %v1476 = vpop.f32.mrb[0].mxu0
    %1477 = vdwg.mxu0
    %1478 = vrot.lane.b32.xlu0 %v1310, 120
    %v1479 = vpop.permute.xlu0 %1478
    %1480 = vrot.lane.b32.xlu0 %v1310, 88
    %v1481 = vpop.permute.xlu0 %1480
    %v1482 = vsel %vm239, %v1479, 0
    %v1484 = vsel %vm239, %v1481, 0
    %1486 = vmatprep.subr.mxu0 0.0
    %1487 = vmatpush1.xpose.msra.mxu0 %v1484
    %1488 = vmatprep.subr.mxu0 0.0
    %1489 = vmatpush1.xpose.msra.mxu0 0.0
    %1490 = vmatprep.subr.mxu0 0.0
    %1491 = vmatpush1.xpose.msra.mxu0 0.0
    %1492 = vmatprep.subr.mxu0 0.0
    %1493 = vmatpush1.xpose.msra.mxu0 0.0
    %1494 = vmatprep.subr.mxu0 0.0
    %1495 = vmatpush1.xpose.msra.mxu0 0.0
    %1496 = vmatprep.subr.mxu0 0.0
    %1497 = vmatpush1.xpose.msra.mxu0 0.0
    %1498 = vmatprep.subr.mxu0 0.0
    %1499 = vmatpush1.xpose.msra.mxu0 0.0
    %1500 = vmatprep.subr.mxu0 0.0
    %1501 = vmatpush1.xpose.msra.mxu0 0.0
    %1502 = vmatprep.subr.mxu0 0.0
    %1503 = vmatpush1.xpose.msra.mxu0 0.0
    %1504 = vmatprep.subr.mxu0 0.0
    %1505 = vmatpush1.xpose.msra.mxu0 0.0
    %1506 = vmatprep.subr.mxu0 0.0
    %1507 = vmatpush1.xpose.msra.mxu0 0.0
    %1508 = vmatprep.subr.mxu0 0.0
    %1509 = vmatpush1.xpose.msra.mxu0 0.0
    %1510 = vmatprep.subr.mxu0 0.0
    %1511 = vmatpush1.xpose.msra.mxu0 0.0
    %1512 = vmatprep.subr.mxu0 0.0
    %1513 = vmatpush1.xpose.msra.mxu0 0.0
    %1514 = vmatprep.subr.mxu0 0.0
    %1515 = vmatpush1.xpose.msra.mxu0 0.0
    %1516 = vmatprep.subr.mxu0 0.0
    %1517 = vmatpush1.xpose.msra.mxu0 0.0
    %1518 = vmatprep.subr.mxu0 0.0
    %1519 = vmatpush1.xpose.msra.mxu0 0.0
    %1520 = vmatprep.subr.mxu0 0.0
    %1521 = vmatpush1.xpose.msra.mxu0 0.0
    %1522 = vmatprep.subr.mxu0 0.0
    %1523 = vmatpush1.xpose.msra.mxu0 0.0
    %1524 = vmatprep.subr.mxu0 0.0
    %1525 = vmatpush1.xpose.msra.mxu0 0.0
    %1526 = vmatprep.subr.mxu0 0.0
    %1527 = vmatpush1.xpose.msra.mxu0 0.0
    %1528 = vmatprep.subr.mxu0 0.0
    %1529 = vmatpush1.xpose.msra.mxu0 0.0
    %1530 = vmatprep.subr.mxu0 0.0
    %1531 = vmatpush1.xpose.msra.mxu0 0.0
    %1532 = vmatprep.subr.mxu0 0.0
    %1533 = vmatpush1.xpose.msra.mxu0 0.0
    %1534 = vmatprep.subr.mxu0 0.0
    %1535 = vmatpush1.xpose.msra.mxu0 0.0
    %1536 = vmatprep.subr.mxu0 0.0
    %1537 = vmatpush1.xpose.msra.mxu0 0.0
    %1538 = vmatprep.subr.mxu0 0.0
    %1539 = vmatpush1.xpose.msra.mxu0 0.0
    %1540 = vmatprep.subr.mxu0 0.0
    %1541 = vmatpush1.xpose.msra.mxu0 0.0
    %1542 = vmatprep.subr.mxu0 0.0
    %1543 = vmatpush1.xpose.msra.mxu0 0.0
    %1544 = vmatprep.subr.mxu0 0.0
    %1545 = vmatpush1.xpose.msra.mxu0 0.0
    %1546 = vmatprep.subr.mxu0 0.0
    %1547 = vmatpush1.xpose.msra.mxu0 0.0
    %1548 = vmatprep.subr.mxu0 0.0
    %1549 = vmatpush1.xpose.msra.mxu0 0.0
    %1550 = vmatprep.mubr.f32.mxu0 0.0
    %1551 = vmatmul.mubr.f32.gmra.mrb[0].mxu0 %v1482
    %v1552 = vpop.f32.mrb[0].mxu0
    %v1553 = vadd.f32 0.0, %v1552
    %v1554 = vpop.f32.mrb[0].mxu0
    %1555 = vdwg.mxu0
    %v1556 = vmul.f32 %v1553, 0.35355338
    %v1557 = vsel %vm239, %v1556, -inf
    %1558 = vmax.xlane.f32.xlu0 %v1557
    %v1559 = vpop.xlane.xlu0 %1558
    %v1560 = vsub.f32 %v1556, %v1559
    %v1561 = vmul.f32 %v1560, 1.442695
    %v1562 = vpow.pop %v1561
    %v1563 = vsel %vm239, %v1562, 0.0
    %1564 = vadd.xlane.f32.xlu0 %v1563
    %v1565 = vpop.xlane.xlu0 %1564
    %v1566 = vrcp.pop %v1565
    %v1567 = vmul.f32 %v1562, %v1566
    %1568 = vrot.lane.b32.xlu0 %v1310, 56
    %v1569 = vpop.permute.xlu0 %1568
    %v1572 = vsel %vm239, %v1567, 0
    %1574 = vmatprep.subr.mxu0 0.0
    %1575 = vmatpush1.msra.mxu0 %v1569
    %1576 = vmatprep.subr.mxu0 0.0
    %1577 = vmatpush1.msra.mxu0 0.0
    %1578 = vmatprep.subr.mxu0 0.0
    %1579 = vmatpush1.msra.mxu0 0.0
    %1580 = vmatprep.subr.mxu0 0.0
    %1581 = vmatpush1.msra.mxu0 0.0
    %1582 = vmatprep.subr.mxu0 0.0
    %1583 = vmatpush1.msra.mxu0 0.0
    %1584 = vmatprep.subr.mxu0 0.0
    %1585 = vmatpush1.msra.mxu0 0.0
    %1586 = vmatprep.subr.mxu0 0.0
    %1587 = vmatpush1.msra.mxu0 0.0
    %1588 = vmatprep.subr.mxu0 0.0
    %1589 = vmatpush1.msra.mxu0 0.0
    %1590 = vmatprep.subr.mxu0 0.0
    %1591 = vmatpush1.msra.mxu0 0.0
    %1592 = vmatprep.subr.mxu0 0.0
    %1593 = vmatpush1.msra.mxu0 0.0
    %1594 = vmatprep.subr.mxu0 0.0
    %1595 = vmatpush1.msra.mxu0 0.0
    %1596 = vmatprep.subr.mxu0 0.0
    %1597 = vmatpush1.msra.mxu0 0.0
    %1598 = vmatprep.subr.mxu0 0.0
    %1599 = vmatpush1.msra.mxu0 0.0
    %1600 = vmatprep.subr.mxu0 0.0
    %1601 = vmatpush1.msra.mxu0 0.0
    %1602 = vmatprep.subr.mxu0 0.0
    %1603 = vmatpush1.msra.mxu0 0.0
    %1604 = vmatprep.subr.mxu0 0.0
    %1605 = vmatpush1.msra.mxu0 0.0
    %1606 = vmatprep.subr.mxu0 0.0
    %1607 = vmatpush1.msra.mxu0 0.0
    %1608 = vmatprep.subr.mxu0 0.0
    %1609 = vmatpush1.msra.mxu0 0.0
    %1610 = vmatprep.subr.mxu0 0.0
    %1611 = vmatpush1.msra.mxu0 0.0
    %1612 = vmatprep.subr.mxu0 0.0
    %1613 = vmatpush1.msra.mxu0 0.0
    %1614 = vmatprep.subr.mxu0 0.0
    %1615 = vmatpush1.msra.mxu0 0.0
    %1616 = vmatprep.subr.mxu0 0.0
    %1617 = vmatpush1.msra.mxu0 0.0
    %1618 = vmatprep.subr.mxu0 0.0
    %1619 = vmatpush1.msra.mxu0 0.0
    %1620 = vmatprep.subr.mxu0 0.0
    %1621 = vmatpush1.msra.mxu0 0.0
    %1622 = vmatprep.subr.mxu0 0.0
    %1623 = vmatpush1.msra.mxu0 0.0
    %1624 = vmatprep.subr.mxu0 0.0
    %1625 = vmatpush1.msra.mxu0 0.0
    %1626 = vmatprep.subr.mxu0 0.0
    %1627 = vmatpush1.msra.mxu0 0.0
    %1628 = vmatprep.subr.mxu0 0.0
    %1629 = vmatpush1.msra.mxu0 0.0
    %1630 = vmatprep.subr.mxu0 0.0
    %1631 = vmatpush1.msra.mxu0 0.0
    %1632 = vmatprep.subr.mxu0 0.0
    %1633 = vmatpush1.msra.mxu0 0.0
    %1634 = vmatprep.subr.mxu0 0.0
    %1635 = vmatpush1.msra.mxu0 0.0
    %1636 = vmatprep.subr.mxu0 0.0
    %1637 = vmatpush1.msra.mxu0 0.0
    %1638 = vmatprep.mubr.f32.mxu0 0.0
    %1639 = vmatmul.mubr.f32.gmra.mrb[0].mxu0 %v1572
    %v1640 = vpop.f32.mrb[0].mxu0
    %v1641 = vadd.f32 0.0, %v1640
    %v1642 = vpop.f32.mrb[0].mxu0
    %1643 = vdwg.mxu0
    %1644 = vrot.lane.b32.xlu0 %v1310, 112
    %v1645 = vpop.permute.xlu0 %1644
    %1646 = vrot.lane.b32.xlu0 %v1310, 80
    %v1647 = vpop.permute.xlu0 %1646
    %v1648 = vsel %vm239, %v1645, 0
    %v1650 = vsel %vm239, %v1647, 0
    %1652 = vmatprep.subr.mxu0 0.0
    %1653 = vmatpush1.xpose.msra.mxu0 %v1650
    %1654 = vmatprep.subr.mxu0 0.0
    %1655 = vmatpush1.xpose.msra.mxu0 0.0
    %1656 = vmatprep.subr.mxu0 0.0
    %1657 = vmatpush1.xpose.msra.mxu0 0.0
    %1658 = vmatprep.subr.mxu0 0.0
    %1659 = vmatpush1.xpose.msra.mxu0 0.0
    %1660 = vmatprep.subr.mxu0 0.0
    %1661 = vmatpush1.xpose.msra.mxu0 0.0
    %1662 = vmatprep.subr.mxu0 0.0
    %1663 = vmatpush1.xpose.msra.mxu0 0.0
    %1664 = vmatprep.subr.mxu0 0.0
    %1665 = vmatpush1.xpose.msra.mxu0 0.0
    %1666 = vmatprep.subr.mxu0 0.0
    %1667 = vmatpush1.xpose.msra.mxu0 0.0
    %1668 = vmatprep.subr.mxu0 0.0
    %1669 = vmatpush1.xpose.msra.mxu0 0.0
    %1670 = vmatprep.subr.mxu0 0.0
    %1671 = vmatpush1.xpose.msra.mxu0 0.0
    %1672 = vmatprep.subr.mxu0 0.0
    %1673 = vmatpush1.xpose.msra.mxu0 0.0
    %1674 = vmatprep.subr.mxu0 0.0
    %1675 = vmatpush1.xpose.msra.mxu0 0.0
    %1676 = vmatprep.subr.mxu0 0.0
    %1677 = vmatpush1.xpose.msra.mxu0 0.0
    %1678 = vmatprep.subr.mxu0 0.0
    %1679 = vmatpush1.xpose.msra.mxu0 0.0
    %1680 = vmatprep.subr.mxu0 0.0
    %1681 = vmatpush1.xpose.msra.mxu0 0.0
    %1682 = vmatprep.subr.mxu0 0.0
    %1683 = vmatpush1.xpose.msra.mxu0 0.0
    %1684 = vmatprep.subr.mxu0 0.0
    %1685 = vmatpush1.xpose.msra.mxu0 0.0
    %1686 = vmatprep.subr.mxu0 0.0
    %1687 = vmatpush1.xpose.msra.mxu0 0.0
    %1688 = vmatprep.subr.mxu0 0.0
    %1689 = vmatpush1.xpose.msra.mxu0 0.0
    %1690 = vmatprep.subr.mxu0 0.0
    %1691 = vmatpush1.xpose.msra.mxu0 0.0
    %1692 = vmatprep.subr.mxu0 0.0
    %1693 = vmatpush1.xpose.msra.mxu0 0.0
    %1694 = vmatprep.subr.mxu0 0.0
    %1695 = vmatpush1.xpose.msra.mxu0 0.0
    %1696 = vmatprep.subr.mxu0 0.0
    %1697 = vmatpush1.xpose.msra.mxu0 0.0
    %1698 = vmatprep.subr.mxu0 0.0
    %1699 = vmatpush1.xpose.msra.mxu0 0.0
    %1700 = vmatprep.subr.mxu0 0.0
    %1701 = vmatpush1.xpose.msra.mxu0 0.0
    %1702 = vmatprep.subr.mxu0 0.0
    %1703 = vmatpush1.xpose.msra.mxu0 0.0
    %1704 = vmatprep.subr.mxu0 0.0
    %1705 = vmatpush1.xpose.msra.mxu0 0.0
    %1706 = vmatprep.subr.mxu0 0.0
    %1707 = vmatpush1.xpose.msra.mxu0 0.0
    %1708 = vmatprep.subr.mxu0 0.0
    %1709 = vmatpush1.xpose.msra.mxu0 0.0
    %1710 = vmatprep.subr.mxu0 0.0
    %1711 = vmatpush1.xpose.msra.mxu0 0.0
    %1712 = vmatprep.subr.mxu0 0.0
    %1713 = vmatpush1.xpose.msra.mxu0 0.0
    %1714 = vmatprep.subr.mxu0 0.0
    %1715 = vmatpush1.xpose.msra.mxu0 0.0
    %1716 = vmatprep.mubr.f32.mxu0 0.0
    %1717 = vmatmul.mubr.f32.gmra.mrb[0].mxu0 %v1648
    %v1718 = vpop.f32.mrb[0].mxu0
    %v1719 = vadd.f32 0.0, %v1718
    %v1720 = vpop.f32.mrb[0].mxu0
    %1721 = vdwg.mxu0
    %v1722 = vmul.f32 %v1719, 0.35355338
    %v1723 = vsel %vm239, %v1722, -inf
    %1724 = vmax.xlane.f32.xlu0 %v1723
    %v1725 = vpop.xlane.xlu0 %1724
    %v1726 = vsub.f32 %v1722, %v1725
    %v1727 = vmul.f32 %v1726, 1.442695
    %v1728 = vpow.pop %v1727
    %v1729 = vsel %vm239, %v1728, 0.0
    %1730 = vadd.xlane.f32.xlu0 %v1729
    %v1731 = vpop.xlane.xlu0 %1730
    %v1732 = vrcp.pop %v1731
    %v1733 = vmul.f32 %v1728, %v1732
    %1734 = vrot.lane.b32.xlu0 %v1310, 48
    %v1735 = vpop.permute.xlu0 %1734
    %v1738 = vsel %vm239, %v1733, 0
    %1740 = vmatprep.subr.mxu0 0.0
    %1741 = vmatpush1.msra.mxu0 %v1735
    %1742 = vmatprep.subr.mxu0 0.0
    %1743 = vmatpush1.msra.mxu0 0.0
    %1744 = vmatprep.subr.mxu0 0.0
    %1745 = vmatpush1.msra.mxu0 0.0
    %1746 = vmatprep.subr.mxu0 0.0
    %1747 = vmatpush1.msra.mxu0 0.0
    %1748 = vmatprep.subr.mxu0 0.0
    %1749 = vmatpush1.msra.mxu0 0.0
    %1750 = vmatprep.subr.mxu0 0.0
    %1751 = vmatpush1.msra.mxu0 0.0
    %1752 = vmatprep.subr.mxu0 0.0
    %1753 = vmatpush1.msra.mxu0 0.0
    %1754 = vmatprep.subr.mxu0 0.0
    %1755 = vmatpush1.msra.mxu0 0.0
    %1756 = vmatprep.subr.mxu0 0.0
    %1757 = vmatpush1.msra.mxu0 0.0
    %1758 = vmatprep.subr.mxu0 0.0
    %1759 = vmatpush1.msra.mxu0 0.0
    %1760 = vmatprep.subr.mxu0 0.0
    %1761 = vmatpush1.msra.mxu0 0.0
    %1762 = vmatprep.subr.mxu0 0.0
    %1763 = vmatpush1.msra.mxu0 0.0
    %1764 = vmatprep.subr.mxu0 0.0
    %1765 = vmatpush1.msra.mxu0 0.0
    %1766 = vmatprep.subr.mxu0 0.0
    %1767 = vmatpush1.msra.mxu0 0.0
    %1768 = vmatprep.subr.mxu0 0.0
    %1769 = vmatpush1.msra.mxu0 0.0
    %1770 = vmatprep.subr.mxu0 0.0
    %1771 = vmatpush1.msra.mxu0 0.0
    %1772 = vmatprep.subr.mxu0 0.0
    %1773 = vmatpush1.msra.mxu0 0.0
    %1774 = vmatprep.subr.mxu0 0.0
    %1775 = vmatpush1.msra.mxu0 0.0
    %1776 = vmatprep.subr.mxu0 0.0
    %1777 = vmatpush1.msra.mxu0 0.0
    %1778 = vmatprep.subr.mxu0 0.0
    %1779 = vmatpush1.msra.mxu0 0.0
    %1780 = vmatprep.subr.mxu0 0.0
    %1781 = vmatpush1.msra.mxu0 0.0
    %1782 = vmatprep.subr.mxu0 0.0
    %1783 = vmatpush1.msra.mxu0 0.0
    %1784 = vmatprep.subr.mxu0 0.0
    %1785 = vmatpush1.msra.mxu0 0.0
    %1786 = vmatprep.subr.mxu0 0.0
    %1787 = vmatpush1.msra.mxu0 0.0
    %1788 = vmatprep.subr.mxu0 0.0
    %1789 = vmatpush1.msra.mxu0 0.0
    %1790 = vmatprep.subr.mxu0 0.0
    %1791 = vmatpush1.msra.mxu0 0.0
    %1792 = vmatprep.subr.mxu0 0.0
    %1793 = vmatpush1.msra.mxu0 0.0
    %1794 = vmatprep.subr.mxu0 0.0
    %1795 = vmatpush1.msra.mxu0 0.0
    %1796 = vmatprep.subr.mxu0 0.0
    %1797 = vmatpush1.msra.mxu0 0.0
    %1798 = vmatprep.subr.mxu0 0.0
    %1799 = vmatpush1.msra.mxu0 0.0
    %1800 = vmatprep.subr.mxu0 0.0
    %1801 = vmatpush1.msra.mxu0 0.0
    %1802 = vmatprep.subr.mxu0 0.0
    %1803 = vmatpush1.msra.mxu0 0.0
    %1804 = vmatprep.mubr.f32.mxu0 0.0
    %1805 = vmatmul.mubr.f32.gmra.mrb[0].mxu0 %v1738
    %v1806 = vpop.f32.mrb[0].mxu0
    %v1807 = vadd.f32 0.0, %v1806
    %v1808 = vpop.f32.mrb[0].mxu0
    %1809 = vdwg.mxu0
    %1810 = vrot.lane.b32.xlu0 %v1310, 104
    %v1811 = vpop.permute.xlu0 %1810
    %1812 = vrot.lane.b32.xlu0 %v1310, 72
    %v1813 = vpop.permute.xlu0 %1812
    %v1814 = vsel %vm239, %v1811, 0
    %v1816 = vsel %vm239, %v1813, 0
    %1818 = vmatprep.subr.mxu0 0.0
    %1819 = vmatpush1.xpose.msra.mxu0 %v1816
    %1820 = vmatprep.subr.mxu0 0.0
    %1821 = vmatpush1.xpose.msra.mxu0 0.0
    %1822 = vmatprep.subr.mxu0 0.0
    %1823 = vmatpush1.xpose.msra.mxu0 0.0
    %1824 = vmatprep.subr.mxu0 0.0
    %1825 = vmatpush1.xpose.msra.mxu0 0.0
    %1826 = vmatprep.subr.mxu0 0.0
    %1827 = vmatpush1.xpose.msra.mxu0 0.0
    %1828 = vmatprep.subr.mxu0 0.0
    %1829 = vmatpush1.xpose.msra.mxu0 0.0
    %1830 = vmatprep.subr.mxu0 0.0
    %1831 = vmatpush1.xpose.msra.mxu0 0.0
    %1832 = vmatprep.subr.mxu0 0.0
    %1833 = vmatpush1.xpose.msra.mxu0 0.0
    %1834 = vmatprep.subr.mxu0 0.0
    %1835 = vmatpush1.xpose.msra.mxu0 0.0
    %1836 = vmatprep.subr.mxu0 0.0
    %1837 = vmatpush1.xpose.msra.mxu0 0.0
    %1838 = vmatprep.subr.mxu0 0.0
    %1839 = vmatpush1.xpose.msra.mxu0 0.0
    %1840 = vmatprep.subr.mxu0 0.0
    %1841 = vmatpush1.xpose.msra.mxu0 0.0
    %1842 = vmatprep.subr.mxu0 0.0
    %1843 = vmatpush1.xpose.msra.mxu0 0.0
    %1844 = vmatprep.subr.mxu0 0.0
    %1845 = vmatpush1.xpose.msra.mxu0 0.0
    %1846 = vmatprep.subr.mxu0 0.0
    %1847 = vmatpush1.xpose.msra.mxu0 0.0
    %1848 = vmatprep.subr.mxu0 0.0
    %1849 = vmatpush1.xpose.msra.mxu0 0.0
    %1850 = vmatprep.subr.mxu0 0.0
    %1851 = vmatpush1.xpose.msra.mxu0 0.0
    %1852 = vmatprep.subr.mxu0 0.0
    %1853 = vmatpush1.xpose.msra.mxu0 0.0
    %1854 = vmatprep.subr.mxu0 0.0
    %1855 = vmatpush1.xpose.msra.mxu0 0.0
    %1856 = vmatprep.subr.mxu0 0.0
    %1857 = vmatpush1.xpose.msra.mxu0 0.0
    %1858 = vmatprep.subr.mxu0 0.0
    %1859 = vmatpush1.xpose.msra.mxu0 0.0
    %1860 = vmatprep.subr.mxu0 0.0
    %1861 = vmatpush1.xpose.msra.mxu0 0.0
    %1862 = vmatprep.subr.mxu0 0.0
    %1863 = vmatpush1.xpose.msra.mxu0 0.0
    %1864 = vmatprep.subr.mxu0 0.0
    %1865 = vmatpush1.xpose.msra.mxu0 0.0
    %1866 = vmatprep.subr.mxu0 0.0
    %1867 = vmatpush1.xpose.msra.mxu0 0.0
    %1868 = vmatprep.subr.mxu0 0.0
    %1869 = vmatpush1.xpose.msra.mxu0 0.0
    %1870 = vmatprep.subr.mxu0 0.0
    %1871 = vmatpush1.xpose.msra.mxu0 0.0
    %1872 = vmatprep.subr.mxu0 0.0
    %1873 = vmatpush1.xpose.msra.mxu0 0.0
    %1874 = vmatprep.subr.mxu0 0.0
    %1875 = vmatpush1.xpose.msra.mxu0 0.0
    %1876 = vmatprep.subr.mxu0 0.0
    %1877 = vmatpush1.xpose.msra.mxu0 0.0
    %1878 = vmatprep.subr.mxu0 0.0
    %1879 = vmatpush1.xpose.msra.mxu0 0.0
    %1880 = vmatprep.subr.mxu0 0.0
    %1881 = vmatpush1.xpose.msra.mxu0 0.0
    %1882 = vmatprep.mubr.f32.mxu0 0.0
    %1883 = vmatmul.mubr.f32.gmra.mrb[0].mxu0 %v1814
    %v1884 = vpop.f32.mrb[0].mxu0
    %v1885 = vadd.f32 0.0, %v1884
    %v1886 = vpop.f32.mrb[0].mxu0
    %1887 = vdwg.mxu0
    %v1888 = vmul.f32 %v1885, 0.35355338
    %v1889 = vsel %vm239, %v1888, -inf
    %1890 = vmax.xlane.f32.xlu0 %v1889
    %v1891 = vpop.xlane.xlu0 %1890
    %v1892 = vsub.f32 %v1888, %v1891
    %v1893 = vmul.f32 %v1892, 1.442695
    %v1894 = vpow.pop %v1893
    %v1895 = vsel %vm239, %v1894, 0.0
    %1896 = vadd.xlane.f32.xlu0 %v1895
    %v1897 = vpop.xlane.xlu0 %1896
    %v1898 = vrcp.pop %v1897
    %v1899 = vmul.f32 %v1894, %v1898
    %1900 = vrot.lane.b32.xlu0 %v1310, 40
    %v1901 = vpop.permute.xlu0 %1900
    %v1904 = vsel %vm239, %v1899, 0
    %1906 = vmatprep.subr.mxu0 0.0
    %1907 = vmatpush1.msra.mxu0 %v1901
    %1908 = vmatprep.subr.mxu0 0.0
    %1909 = vmatpush1.msra.mxu0 0.0
    %1910 = vmatprep.subr.mxu0 0.0
    %1911 = vmatpush1.msra.mxu0 0.0
    %1912 = vmatprep.subr.mxu0 0.0
    %1913 = vmatpush1.msra.mxu0 0.0
    %1914 = vmatprep.subr.mxu0 0.0
    %1915 = vmatpush1.msra.mxu0 0.0
    %1916 = vmatprep.subr.mxu0 0.0
    %1917 = vmatpush1.msra.mxu0 0.0
    %1918 = vmatprep.subr.mxu0 0.0
    %1919 = vmatpush1.msra.mxu0 0.0
    %1920 = vmatprep.subr.mxu0 0.0
    %1921 = vmatpush1.msra.mxu0 0.0
    %1922 = vmatprep.subr.mxu0 0.0
    %1923 = vmatpush1.msra.mxu0 0.0
    %1924 = vmatprep.subr.mxu0 0.0
    %1925 = vmatpush1.msra.mxu0 0.0
    %1926 = vmatprep.subr.mxu0 0.0
    %1927 = vmatpush1.msra.mxu0 0.0
    %1928 = vmatprep.subr.mxu0 0.0
    %1929 = vmatpush1.msra.mxu0 0.0
    %1930 = vmatprep.subr.mxu0 0.0
    %1931 = vmatpush1.msra.mxu0 0.0
    %1932 = vmatprep.subr.mxu0 0.0
    %1933 = vmatpush1.msra.mxu0 0.0
    %1934 = vmatprep.subr.mxu0 0.0
    %1935 = vmatpush1.msra.mxu0 0.0
    %1936 = vmatprep.subr.mxu0 0.0
    %1937 = vmatpush1.msra.mxu0 0.0
    %1938 = vmatprep.subr.mxu0 0.0
    %1939 = vmatpush1.msra.mxu0 0.0
    %1940 = vmatprep.subr.mxu0 0.0
    %1941 = vmatpush1.msra.mxu0 0.0
    %1942 = vmatprep.subr.mxu0 0.0
    %1943 = vmatpush1.msra.mxu0 0.0
    %1944 = vmatprep.subr.mxu0 0.0
    %1945 = vmatpush1.msra.mxu0 0.0
    %1946 = vmatprep.subr.mxu0 0.0
    %1947 = vmatpush1.msra.mxu0 0.0
    %1948 = vmatprep.subr.mxu0 0.0
    %1949 = vmatpush1.msra.mxu0 0.0
    %1950 = vmatprep.subr.mxu0 0.0
    %1951 = vmatpush1.msra.mxu0 0.0
    %1952 = vmatprep.subr.mxu0 0.0
    %1953 = vmatpush1.msra.mxu0 0.0
    %1954 = vmatprep.subr.mxu0 0.0
    %1955 = vmatpush1.msra.mxu0 0.0
    %1956 = vmatprep.subr.mxu0 0.0
    %1957 = vmatpush1.msra.mxu0 0.0
    %1958 = vmatprep.subr.mxu0 0.0
    %1959 = vmatpush1.msra.mxu0 0.0
    %1960 = vmatprep.subr.mxu0 0.0
    %1961 = vmatpush1.msra.mxu0 0.0
    %1962 = vmatprep.subr.mxu0 0.0
    %1963 = vmatpush1.msra.mxu0 0.0
    %1964 = vmatprep.subr.mxu0 0.0
    %1965 = vmatpush1.msra.mxu0 0.0
    %1966 = vmatprep.subr.mxu0 0.0
    %1967 = vmatpush1.msra.mxu0 0.0
    %1968 = vmatprep.subr.mxu0 0.0
    %1969 = vmatpush1.msra.mxu0 0.0
    %1970 = vmatprep.mubr.f32.mxu0 0.0
    %1971 = vmatmul.mubr.f32.gmra.mrb[0].mxu0 %v1904
    %v1972 = vpop.f32.mrb[0].mxu0
    %v1973 = vadd.f32 0.0, %v1972
    %v1974 = vpop.f32.mrb[0].mxu0
    %1975 = vdwg.mxu0
    %1977 = vrot.lane.b32.xlu0 %v1641, 8
    %v1978 = vpop.permute.xlu0 %1977
    %1981 = vrot.lane.b32.xlu0 %v1807, 16
    %v1982 = vpop.permute.xlu0 %1981
    %1985 = vrot.lane.b32.xlu0 %v1973, 24
    %v1986 = vpop.permute.xlu0 %1985
    %v1988 = vsel %vm239, %v1475, %v1978
    %v1989 = vsel %vm913, %v1988, %v1982
    %v1990 = vsel %vm915, %v1989, %v1986
    %v1991 = vld [vmem:[#allocation2 + $0xc8] sm:$0xff]
    %v1992 = vld [vmem:[#allocation2 + $0xd0] sm:$0xff]
    %v1993 = vld [vmem:[#allocation2 + $0xd8] sm:$0xff]
    %v1994 = vld [vmem:[#allocation2 + $0xe0] sm:$0xff]
    %v1996 = vsel %vm129, %v1990, 0
    %1998 = vmatprep.subr.mxu0 0.0
    %1999 = vmatpush1.msra.mxu0 %v1991
    %2000 = vmatprep.subr.mxu0 0.0
    %2001 = vmatpush1.msra.mxu0 %v1992
    %2002 = vmatprep.subr.mxu0 0.0
    %2003 = vmatpush1.msra.mxu0 %v1993
    %2004 = vmatprep.subr.mxu0 0.0
    %2005 = vmatpush1.msra.mxu0 %v1994
    %2006 = vmatprep.subr.mxu0 0.0
    %2007 = vmatpush1.msra.mxu0 0.0
    %2008 = vmatprep.subr.mxu0 0.0
    %2009 = vmatpush1.msra.mxu0 0.0
    %2010 = vmatprep.subr.mxu0 0.0
    %2011 = vmatpush1.msra.mxu0 0.0
    %2012 = vmatprep.subr.mxu0 0.0
    %2013 = vmatpush1.msra.mxu0 0.0
    %2014 = vmatprep.subr.mxu0 0.0
    %2015 = vmatpush1.msra.mxu0 0.0
    %2016 = vmatprep.subr.mxu0 0.0
    %2017 = vmatpush1.msra.mxu0 0.0
    %2018 = vmatprep.subr.mxu0 0.0
    %2019 = vmatpush1.msra.mxu0 0.0
    %2020 = vmatprep.subr.mxu0 0.0
    %2021 = vmatpush1.msra.mxu0 0.0
    %2022 = vmatprep.subr.mxu0 0.0
    %2023 = vmatpush1.msra.mxu0 0.0
    %2024 = vmatprep.subr.mxu0 0.0
    %2025 = vmatpush1.msra.mxu0 0.0
    %2026 = vmatprep.subr.mxu0 0.0
    %2027 = vmatpush1.msra.mxu0 0.0
    %2028 = vmatprep.subr.mxu0 0.0
    %2029 = vmatpush1.msra.mxu0 0.0
    %2030 = vmatprep.subr.mxu0 0.0
    %2031 = vmatpush1.msra.mxu0 0.0
    %2032 = vmatprep.subr.mxu0 0.0
    %2033 = vmatpush1.msra.mxu0 0.0
    %2034 = vmatprep.subr.mxu0 0.0
    %2035 = vmatpush1.msra.mxu0 0.0
    %2036 = vmatprep.subr.mxu0 0.0
    %2037 = vmatpush1.msra.mxu0 0.0
    %2038 = vmatprep.subr.mxu0 0.0
    %2039 = vmatpush1.msra.mxu0 0.0
    %2040 = vmatprep.subr.mxu0 0.0
    %2041 = vmatpush1.msra.mxu0 0.0
    %2042 = vmatprep.subr.mxu0 0.0
    %2043 = vmatpush1.msra.mxu0 0.0
    %2044 = vmatprep.subr.mxu0 0.0
    %2045 = vmatpush1.msra.mxu0 0.0
    %2046 = vmatprep.subr.mxu0 0.0
    %2047 = vmatpush1.msra.mxu0 0.0
    %2048 = vmatprep.subr.mxu0 0.0
    %2049 = vmatpush1.msra.mxu0 0.0
    %2050 = vmatprep.subr.mxu0 0.0
    %2051 = vmatpush1.msra.mxu0 0.0
    %2052 = vmatprep.subr.mxu0 0.0
    %2053 = vmatpush1.msra.mxu0 0.0
    %2054 = vmatprep.subr.mxu0 0.0
    %2055 = vmatpush1.msra.mxu0 0.0
    %2056 = vmatprep.subr.mxu0 0.0
    %2057 = vmatpush1.msra.mxu0 0.0
    %2058 = vmatprep.subr.mxu0 0.0
    %2059 = vmatpush1.msra.mxu0 0.0
    %2060 = vmatprep.subr.mxu0 0.0
    %2061 = vmatpush1.msra.mxu0 0.0
    %2062 = vmatprep.mubr.f32.mxu0 0.0
    %2063 = vmatmul.mubr.f32.gmra.mrb[0].mxu0 %v1996
    %v2064 = vpop.f32.mrb[0].mxu0
    %v2065 = vadd.f32 0.0, %v2064
    %v2066 = vpop.f32.mrb[0].mxu0
    %2067 = vdwg.mxu0
    %v2068 = vadd.f32 %v1205, %v2065
    %v2069 = vld [vmem:[#allocation4 + $0xc] sm:$0x1]
    %v2070 = vlaneseq
    %v2071 = vshrl.u32 %v2070, 7
    %v2072 = vsub.s32 0, %v2071
    %v2073 = vrot.slane %v2069, %v2072
    %v2074 = vadd.f32 %v2068, %v2073
    %v2075 = vld [vmem:[#allocation4 + $0xd] sm:$0x1]
    %v2076 = vld [vmem:[#allocation4 + $0xe] sm:$0x1]
    %v2077 = vsel %vm129, %v2074, 0.0
    %2078 = vadd.xlane.f32.xlu0 %v2077
    %v2079 = vpop.xlane.xlu0 %2078
    %v2080 = vmul.f32 %v2079, %v133
    %v2081 = vsub.f32 %v2074, %v2080
    %v2082 = vmul.f32 %v2081, %v2081
    %v2083 = vsel %vm129, %v2082, 0.0
    %2084 = vadd.xlane.f32.xlu0 %v2083
    %v2085 = vpop.xlane.xlu0 %2084
    %v2086 = vmul.f32 %v2085, %v133
    %v2087 = vadd.f32 %v2086, 1e-05
    %v2088 = vrsqrt.pop %v2087
    %v2089 = vmul.f32 %v2081, %v2088
    %v2090 = vlaneseq
    %v2091 = vshrl.u32 %v2090, 7
    %v2092 = vsub.s32 0, %v2091
    %v2093 = vrot.slane %v2075, %v2092
    %v2094 = vmul.f32 %v2089, %v2093
    %v2095 = vlaneseq
    %v2096 = vshrl.u32 %v2095, 7
    %v2097 = vsub.s32 0, %v2096
    %v2098 = vrot.slane %v2076, %v2097
    %v2099 = vadd.f32 %v2094, %v2098
    %v2100 = vld [vmem:[#allocation2 + $0xe8] sm:$0xff]
    %v2101 = vld [vmem:[#allocation2 + $0xf0] sm:$0xff]
    %v2102 = vld [vmem:[#allocation2 + $0xf8] sm:$0xff]
    %v2103 = vld [vmem:[#allocation2 + $0x100] sm:$0xff]
    %v2104 = vld [vmem:[#allocation4 + $0xf] sm:$0x1]
    %v2105 = vlaneseq
    %v2106 = vshrl.u32 %v2105, 7
    %v2107 = vsub.s32 0, %v2106
    %v2108 = vrot.slane %v2104, %v2107
    %v2110 = vsel %vm129, %v2099, 0
    %2112 = vmatprep.subr.mxu0 0.0
    %2113 = vmatpush1.msra.mxu0 %v2100
    %2114 = vmatprep.subr.mxu0 0.0
    %2115 = vmatpush1.msra.mxu0 %v2101
    %2116 = vmatprep.subr.mxu0 0.0
    %2117 = vmatpush1.msra.mxu0 %v2102
    %2118 = vmatprep.subr.mxu0 0.0
    %2119 = vmatpush1.msra.mxu0 %v2103
    %2120 = vmatprep.subr.mxu0 0.0
    %2121 = vmatpush1.msra.mxu0 0.0
    %2122 = vmatprep.subr.mxu0 0.0
    %2123 = vmatpush1.msra.mxu0 0.0
    %2124 = vmatprep.subr.mxu0 0.0
    %2125 = vmatpush1.msra.mxu0 0.0
    %2126 = vmatprep.subr.mxu0 0.0
    %2127 = vmatpush1.msra.mxu0 0.0
    %2128 = vmatprep.subr.mxu0 0.0
    %2129 = vmatpush1.msra.mxu0 0.0
    %2130 = vmatprep.subr.mxu0 0.0
    %2131 = vmatpush1.msra.mxu0 0.0
    %2132 = vmatprep.subr.mxu0 0.0
    %2133 = vmatpush1.msra.mxu0 0.0
    %2134 = vmatprep.subr.mxu0 0.0
    %2135 = vmatpush1.msra.mxu0 0.0
    %2136 = vmatprep.subr.mxu0 0.0
    %2137 = vmatpush1.msra.mxu0 0.0
    %2138 = vmatprep.subr.mxu0 0.0
    %2139 = vmatpush1.msra.mxu0 0.0
    %2140 = vmatprep.subr.mxu0 0.0
    %2141 = vmatpush1.msra.mxu0 0.0
    %2142 = vmatprep.subr.mxu0 0.0
    %2143 = vmatpush1.msra.mxu0 0.0
    %2144 = vmatprep.subr.mxu0 0.0
    %2145 = vmatpush1.msra.mxu0 0.0
    %2146 = vmatprep.subr.mxu0 0.0
    %2147 = vmatpush1.msra.mxu0 0.0
    %2148 = vmatprep.subr.mxu0 0.0
    %2149 = vmatpush1.msra.mxu0 0.0
    %2150 = vmatprep.subr.mxu0 0.0
    %2151 = vmatpush1.msra.mxu0 0.0
    %2152 = vmatprep.subr.mxu0 0.0
    %2153 = vmatpush1.msra.mxu0 0.0
    %2154 = vmatprep.subr.mxu0 0.0
    %2155 = vmatpush1.msra.mxu0 0.0
    %2156 = vmatprep.subr.mxu0 0.0
    %2157 = vmatpush1.msra.mxu0 0.0
    %2158 = vmatprep.subr.mxu0 0.0
    %2159 = vmatpush1.msra.mxu0 0.0
    %2160 = vmatprep.subr.mxu0 0.0
    %2161 = vmatpush1.msra.mxu0 0.0
    %2162 = vmatprep.subr.mxu0 0.0
    %2163 = vmatpush1.msra.mxu0 0.0
    %2164 = vmatprep.subr.mxu0 0.0
    %2165 = vmatpush1.msra.mxu0 0.0
    %2166 = vmatprep.subr.mxu0 0.0
    %2167 = vmatpush1.msra.mxu0 0.0
    %2168 = vmatprep.subr.mxu0 0.0
    %2169 = vmatpush1.msra.mxu0 0.0
    %2170 = vmatprep.subr.mxu0 0.0
    %2171 = vmatpush1.msra.mxu0 0.0
    %2172 = vmatprep.subr.mxu0 0.0
    %2173 = vmatpush1.msra.mxu0 0.0
    %2174 = vmatprep.subr.mxu0 0.0
    %2175 = vmatpush1.msra.mxu0 0.0
    %2176 = vmatprep.mubr.f32.mxu0 0.0
    %2177 = vmatmul.mubr.f32.gmra.mrb[0].mxu0 %v2110
    %v2178 = vpop.f32.mrb[0].mxu0
    %v2179 = vadd.f32 %v2108, %v2178
    %v2180 = vpop.f32.mrb[0].mxu0
    %2181 = vdwg.mxu0
    %v2182 = vmul.f32 %v2179, 0.5
    %v2183 = vmul.f32 %v2179, 0.044715
    %v2184 = vmul.f32 %v2183, %v2179
    %v2185 = vmul.f32 %v2184, %v2179
    %v2186 = vadd.f32 %v2179, %v2185
    %v2187 = vmul.f32 %v2186, 0.7978846
    %v2188 = vtanh.pop %v2187
    %v2189 = vadd.f32 %v2188, 1.0
    %v2190 = vmul.f32 %v2182, %v2189
    %v2191 = vld [vmem:[#allocation2 + $0x108] sm:$0xff]
    %v2192 = vld [vmem:[#allocation2 + $0x110] sm:$0xff]
    %v2193 = vld [vmem:[#allocation2 + $0x118] sm:$0xff]
    %v2194 = vld [vmem:[#allocation2 + $0x120] sm:$0xff]
    %v2195 = vld [vmem:[#allocation2 + $0x128] sm:$0xff]
    %v2196 = vld [vmem:[#allocation2 + $0x130] sm:$0xff]
    %v2197 = vld [vmem:[#allocation2 + $0x138] sm:$0xff]
    %v2198 = vld [vmem:[#allocation2 + $0x140] sm:$0xff]
    %v2200 = vsel %vm1125, %v2190, 0
    %2202 = vmatprep.subr.mxu0 0.0
    %2203 = vmatpush1.msra.mxu0 %v2191
    %2204 = vmatprep.subr.mxu0 0.0
    %2205 = vmatpush1.msra.mxu0 %v2192
    %2206 = vmatprep.subr.mxu0 0.0
    %2207 = vmatpush1.msra.mxu0 %v2193
    %2208 = vmatprep.subr.mxu0 0.0
    %2209 = vmatpush1.msra.mxu0 %v2194
    %2210 = vmatprep.subr.mxu0 0.0
    %2211 = vmatpush1.msra.mxu0 %v2195
    %2212 = vmatprep.subr.mxu0 0.0
    %2213 = vmatpush1.msra.mxu0 %v2196
    %2214 = vmatprep.subr.mxu0 0.0
    %2215 = vmatpush1.msra.mxu0 %v2197
    %2216 = vmatprep.subr.mxu0 0.0
    %2217 = vmatpush1.msra.mxu0 %v2198
    %2218 = vmatprep.subr.mxu0 0.0
    %2219 = vmatpush1.msra.mxu0 0.0
    %2220 = vmatprep.subr.mxu0 0.0
    %2221 = vmatpush1.msra.mxu0 0.0
    %2222 = vmatprep.subr.mxu0 0.0
    %2223 = vmatpush1.msra.mxu0 0.0
    %2224 = vmatprep.subr.mxu0 0.0
    %2225 = vmatpush1.msra.mxu0 0.0
    %2226 = vmatprep.subr.mxu0 0.0
    %2227 = vmatpush1.msra.mxu0 0.0
    %2228 = vmatprep.subr.mxu0 0.0
    %2229 = vmatpush1.msra.mxu0 0.0
    %2230 = vmatprep.subr.mxu0 0.0
    %2231 = vmatpush1.msra.mxu0 0.0
    %2232 = vmatprep.subr.mxu0 0.0
    %2233 = vmatpush1.msra.mxu0 0.0
    %2234 = vmatprep.subr.mxu0 0.0
    %2235 = vmatpush1.msra.mxu0 0.0
    %2236 = vmatprep.subr.mxu0 0.0
    %2237 = vmatpush1.msra.mxu0 0.0
    %2238 = vmatprep.subr.mxu0 0.0
    %2239 = vmatpush1.msra.mxu0 0.0
    %2240 = vmatprep.subr.mxu0 0.0
    %2241 = vmatpush1.msra.mxu0 0.0
    %2242 = vmatprep.subr.mxu0 0.0
    %2243 = vmatpush1.msra.mxu0 0.0
    %2244 = vmatprep.subr.mxu0 0.0
    %2245 = vmatpush1.msra.mxu0 0.0
    %2246 = vmatprep.subr.mxu0 0.0
    %2247 = vmatpush1.msra.mxu0 0.0
    %2248 = vmatprep.subr.mxu0 0.0
    %2249 = vmatpush1.msra.mxu0 0.0
    %2250 = vmatprep.subr.mxu0 0.0
    %2251 = vmatpush1.msra.mxu0 0.0
    %2252 = vmatprep.subr.mxu0 0.0
    %2253 = vmatpush1.msra.mxu0 0.0
    %2254 = vmatprep.subr.mxu0 0.0
    %2255 = vmatpush1.msra.mxu0 0.0
    %2256 = vmatprep.subr.mxu0 0.0
    %2257 = vmatpush1.msra.mxu0 0.0
    %2258 = vmatprep.subr.mxu0 0.0
    %2259 = vmatpush1.msra.mxu0 0.0
    %2260 = vmatprep.subr.mxu0 0.0
    %2261 = vmatpush1.msra.mxu0 0.0
    %2262 = vmatprep.subr.mxu0 0.0
    %2263 = vmatpush1.msra.mxu0 0.0
    %2264 = vmatprep.subr.mxu0 0.0
    %2265 = vmatpush1.msra.mxu0 0.0
    %2266 = vmatprep.mubr.f32.mxu0 0.0
    %2267 = vmatmul.mubr.f32.gmra.mrb[0].mxu0 %v2200
    %v2268 = vpop.f32.mrb[0].mxu0
    %v2269 = vadd.f32 0.0, %v2268
    %v2270 = vpop.f32.mrb[0].mxu0
    %2271 = vdwg.mxu0
    %v2272 = vadd.f32 %v2074, %v2269
    %v2273 = vld [vmem:[#allocation4 + $0x10] sm:$0x1]
    %v2274 = vlaneseq
    %v2275 = vshrl.u32 %v2274, 7
    %v2276 = vsub.s32 0, %v2275
    %v2277 = vrot.slane %v2273, %v2276
    %v2278 = vadd.f32 %v2272, %v2277
    %v2279 = vld [vmem:[#allocation4 + $0x11] sm:$0x1]
    %v2280 = vld [vmem:[#allocation4 + $0x12] sm:$0x1]
    %v2281 = vsel %vm129, %v2278, 0.0
    %2282 = vadd.xlane.f32.xlu0 %v2281
    %v2283 = vpop.xlane.xlu0 %2282
    %v2284 = vmul.f32 %v2283, %v133
    %v2285 = vsub.f32 %v2278, %v2284
    %v2286 = vmul.f32 %v2285, %v2285
    %v2287 = vsel %vm129, %v2286, 0.0
    %2288 = vadd.xlane.f32.xlu0 %v2287
    %v2289 = vpop.xlane.xlu0 %2288
    %v2290 = vmul.f32 %v2289, %v133
    %v2291 = vadd.f32 %v2290, 1e-05
    %v2292 = vrsqrt.pop %v2291
    %v2293 = vmul.f32 %v2285, %v2292
    %v2294 = vlaneseq
    %v2295 = vshrl.u32 %v2294, 7
    %v2296 = vsub.s32 0, %v2295
    %v2297 = vrot.slane %v2279, %v2296
    %v2298 = vmul.f32 %v2293, %v2297
    %v2299 = vlaneseq
    %v2300 = vshrl.u32 %v2299, 7
    %v2301 = vsub.s32 0, %v2300
    %v2302 = vrot.slane %v2280, %v2301
    %v2303 = vadd.f32 %v2298, %v2302
    %v2304 = vld [vmem:[#allocation2 + $0x148] sm:$0xff]
    %v2305 = vld [vmem:[#allocation2 + $0x150] sm:$0xff]
    %v2306 = vld [vmem:[#allocation2 + $0x158] sm:$0xff]
    %v2307 = vld [vmem:[#allocation2 + $0x160] sm:$0xff]
    %v2308 = vld [vmem:[#allocation4 + $0x13] sm:$0x1]
    %v2309 = vlaneseq
    %v2310 = vshrl.u32 %v2309, 7
    %v2311 = vsub.s32 0, %v2310
    %v2312 = vrot.slane %v2308, %v2311
    %v2314 = vsel %vm129, %v2303, 0
    %2316 = vmatprep.subr.mxu0 0.0
    %2317 = vmatpush1.msra.mxu0 %v2304
    %2318 = vmatprep.subr.mxu0 0.0
    %2319 = vmatpush1.msra.mxu0 %v2305
    %2320 = vmatprep.subr.mxu0 0.0
    %2321 = vmatpush1.msra.mxu0 %v2306
    %2322 = vmatprep.subr.mxu0 0.0
    %2323 = vmatpush1.msra.mxu0 %v2307
    %2324 = vmatprep.subr.mxu0 0.0
    %2325 = vmatpush1.msra.mxu0 0.0
    %2326 = vmatprep.subr.mxu0 0.0
    %2327 = vmatpush1.msra.mxu0 0.0
    %2328 = vmatprep.subr.mxu0 0.0
    %2329 = vmatpush1.msra.mxu0 0.0
    %2330 = vmatprep.subr.mxu0 0.0
    %2331 = vmatpush1.msra.mxu0 0.0
    %2332 = vmatprep.subr.mxu0 0.0
    %2333 = vmatpush1.msra.mxu0 0.0
    %2334 = vmatprep.subr.mxu0 0.0
    %2335 = vmatpush1.msra.mxu0 0.0
    %2336 = vmatprep.subr.mxu0 0.0
    %2337 = vmatpush1.msra.mxu0 0.0
    %2338 = vmatprep.subr.mxu0 0.0
    %2339 = vmatpush1.msra.mxu0 0.0
    %2340 = vmatprep.subr.mxu0 0.0
    %2341 = vmatpush1.msra.mxu0 0.0
    %2342 = vmatprep.subr.mxu0 0.0
    %2343 = vmatpush1.msra.mxu0 0.0
    %2344 = vmatprep.subr.mxu0 0.0
    %2345 = vmatpush1.msra.mxu0 0.0
    %2346 = vmatprep.subr.mxu0 0.0
    %2347 = vmatpush1.msra.mxu0 0.0
    %2348 = vmatprep.subr.mxu0 0.0
    %2349 = vmatpush1.msra.mxu0 0.0
    %2350 = vmatprep.subr.mxu0 0.0
    %2351 = vmatpush1.msra.mxu0 0.0
    %2352 = vmatprep.subr.mxu0 0.0
    %2353 = vmatpush1.msra.mxu0 0.0
    %2354 = vmatprep.subr.mxu0 0.0
    %2355 = vmatpush1.msra.mxu0 0.0
    %2356 = vmatprep.subr.mxu0 0.0
    %2357 = vmatpush1.msra.mxu0 0.0
    %2358 = vmatprep.subr.mxu0 0.0
    %2359 = vmatpush1.msra.mxu0 0.0
    %2360 = vmatprep.subr.mxu0 0.0
    %2361 = vmatpush1.msra.mxu0 0.0
    %2362 = vmatprep.subr.mxu0 0.0
    %2363 = vmatpush1.msra.mxu0 0.0
    %2364 = vmatprep.subr.mxu0 0.0
    %2365 = vmatpush1.msra.mxu0 0.0
    %2366 = vmatprep.subr.mxu0 0.0
    %2367 = vmatpush1.msra.mxu0 0.0
    %2368 = vmatprep.subr.mxu0 0.0
    %2369 = vmatpush1.msra.mxu0 0.0
    %2370 = vmatprep.subr.mxu0 0.0
    %2371 = vmatpush1.msra.mxu0 0.0
    %2372 = vmatprep.subr.mxu0 0.0
    %2373 = vmatpush1.msra.mxu0 0.0
    %2374 = vmatprep.subr.mxu0 0.0
    %2375 = vmatpush1.msra.mxu0 0.0
    %2376 = vmatprep.subr.mxu0 0.0
    %2377 = vmatpush1.msra.mxu0 0.0
    %2378 = vmatprep.subr.mxu0 0.0
    %2379 = vmatpush1.msra.mxu0 0.0
    %2380 = vmatprep.mubr.f32.mxu0 0.0
    %2381 = vmatmul.mubr.f32.gmra.mrb[0].mxu0 %v2314
    %v2382 = vpop.f32.mrb[0].mxu0
    %v2383 = vadd.f32 %v2312, %v2382
    %v2384 = vpop.f32.mrb[0].mxu0
    %2385 = vdwg.mxu0
    %v2386 = vmul.f32 %v2383, 0.5
    %v2387 = vmul.f32 %v2383, 0.044715
    %v2388 = vmul.f32 %v2387, %v2383
    %v2389 = vmul.f32 %v2388, %v2383
    %v2390 = vadd.f32 %v2383, %v2389
    %v2391 = vmul.f32 %v2390, 0.7978846
    %v2392 = vtanh.pop %v2391
    %v2393 = vadd.f32 %v2392, 1.0
    %v2394 = vmul.f32 %v2386, %v2393
    %v2395 = vld [vmem:[#allocation2 + $0x168] sm:$0xff]
    %v2396 = vld [vmem:[#allocation2 + $0x170] sm:$0xff]
    %v2397 = vld [vmem:[#allocation2 + $0x178] sm:$0xff]
    %v2398 = vld [vmem:[#allocation2 + $0x180] sm:$0xff]
    %v2399 = vld [vmem:[#allocation2 + $0x188] sm:$0xff]
    %v2400 = vld [vmem:[#allocation2 + $0x190] sm:$0xff]
    %v2401 = vld [vmem:[#allocation2 + $0x198] sm:$0xff]
    %v2402 = vld [vmem:[#allocation2 + $0x1a0] sm:$0xff]
    %v2403 = vld [vmem:[#allocation4 + $0x14] sm:$0x1]
    %v2404 = vlaneseq
    %v2405 = vshrl.u32 %v2404, 7
    %v2406 = vsub.s32 0, %v2405
    %v2407 = vrot.slane %v2403, %v2406
    %v2409 = vsel %vm1125, %v2394, 0
    %2411 = vmatprep.subr.mxu0 0.0
    %2412 = vmatpush1.msra.mxu0 %v2395
    %2413 = vmatprep.subr.mxu0 0.0
    %2414 = vmatpush1.msra.mxu0 %v2396
    %2415 = vmatprep.subr.mxu0 0.0
    %2416 = vmatpush1.msra.mxu0 %v2397
    %2417 = vmatprep.subr.mxu0 0.0
    %2418 = vmatpush1.msra.mxu0 %v2398
    %2419 = vmatprep.subr.mxu0 0.0
    %2420 = vmatpush1.msra.mxu0 %v2399
    %2421 = vmatprep.subr.mxu0 0.0
    %2422 = vmatpush1.msra.mxu0 %v2400
    %2423 = vmatprep.subr.mxu0 0.0
    %2424 = vmatpush1.msra.mxu0 %v2401
    %2425 = vmatprep.subr.mxu0 0.0
    %2426 = vmatpush1.msra.mxu0 %v2402
    %2427 = vmatprep.subr.mxu0 0.0
    %2428 = vmatpush1.msra.mxu0 0.0
    %2429 = vmatprep.subr.mxu0 0.0
    %2430 = vmatpush1.msra.mxu0 0.0
    %2431 = vmatprep.subr.mxu0 0.0
    %2432 = vmatpush1.msra.mxu0 0.0
    %2433 = vmatprep.subr.mxu0 0.0
    %2434 = vmatpush1.msra.mxu0 0.0
    %2435 = vmatprep.subr.mxu0 0.0
    %2436 = vmatpush1.msra.mxu0 0.0
    %2437 = vmatprep.subr.mxu0 0.0
    %2438 = vmatpush1.msra.mxu0 0.0
    %2439 = vmatprep.subr.mxu0 0.0
    %2440 = vmatpush1.msra.mxu0 0.0
    %2441 = vmatprep.subr.mxu0 0.0
    %2442 = vmatpush1.msra.mxu0 0.0
    %2443 = vmatprep.subr.mxu0 0.0
    %2444 = vmatpush1.msra.mxu0 0.0
    %2445 = vmatprep.subr.mxu0 0.0
    %2446 = vmatpush1.msra.mxu0 0.0
    %2447 = vmatprep.subr.mxu0 0.0
    %2448 = vmatpush1.msra.mxu0 0.0
    %2449 = vmatprep.subr.mxu0 0.0
    %2450 = vmatpush1.msra.mxu0 0.0
    %2451 = vmatprep.subr.mxu0 0.0
    %2452 = vmatpush1.msra.mxu0 0.0
    %2453 = vmatprep.subr.mxu0 0.0
    %2454 = vmatpush1.msra.mxu0 0.0
    %2455 = vmatprep.subr.mxu0 0.0
    %2456 = vmatpush1.msra.mxu0 0.0
    %2457 = vmatprep.subr.mxu0 0.0
    %2458 = vmatpush1.msra.mxu0 0.0
    %2459 = vmatprep.subr.mxu0 0.0
    %2460 = vmatpush1.msra.mxu0 0.0
    %2461 = vmatprep.subr.mxu0 0.0
    %2462 = vmatpush1.msra.mxu0 0.0
    %2463 = vmatprep.subr.mxu0 0.0
    %2464 = vmatpush1.msra.mxu0 0.0
    %2465 = vmatprep.subr.mxu0 0.0
    %2466 = vmatpush1.msra.mxu0 0.0
    %2467 = vmatprep.subr.mxu0 0.0
    %2468 = vmatpush1.msra.mxu0 0.0
    %2469 = vmatprep.subr.mxu0 0.0
    %2470 = vmatpush1.msra.mxu0 0.0
    %2471 = vmatprep.subr.mxu0 0.0
    %2472 = vmatpush1.msra.mxu0 0.0
    %2473 = vmatprep.subr.mxu0 0.0
    %2474 = vmatpush1.msra.mxu0 0.0
    %2475 = vmatprep.mubr.f32.mxu0 0.0
    %2476 = vmatmul.mubr.f32.gmra.mrb[0].mxu0 %v2409
    %v2477 = vpop.f32.mrb[0].mxu0
    %v2478 = vadd.f32 %v2407, %v2477
    %v2479 = vpop.f32.mrb[0].mxu0
    %2480 = vdwg.mxu0
    %v2481 = vmul.f32 %v2478, 0.5
    %v2482 = vmul.f32 %v2478, 0.044715
    %v2483 = vmul.f32 %v2482, %v2478
    %v2484 = vmul.f32 %v2483, %v2478
    %v2485 = vadd.f32 %v2478, %v2484
    %v2486 = vmul.f32 %v2485, 0.7978846
    %v2487 = vtanh.pop %v2486
    %v2488 = vadd.f32 %v2487, 1.0
    %v2489 = vmul.f32 %v2481, %v2488
    %v2490 = vld [vmem:[#allocation2 + $0x1a8] sm:$0xff]
    %v2491 = vld [vmem:[#allocation2 + $0x1b0] sm:$0xff]
    %v2492 = vld [vmem:[#allocation2 + $0x1b8] sm:$0xff]
    %v2493 = vld [vmem:[#allocation2 + $0x1c0] sm:$0xff]
    %v2494 = vld [vmem:[#allocation2 + $0x1c8] sm:$0xff]
    %v2495 = vld [vmem:[#allocation2 + $0x1d0] sm:$0xff]
    %v2496 = vld [vmem:[#allocation2 + $0x1d8] sm:$0xff]
    %v2497 = vld [vmem:[#allocation2 + $0x1e0] sm:$0xff]
    %v2498 = vld [vmem:[#allocation4 + $0x15] sm:$0x1]
    %v2499 = vlaneseq
    %v2500 = vshrl.u32 %v2499, 7
    %v2501 = vsub.s32 0, %v2500
    %v2502 = vrot.slane %v2498, %v2501
    %v2504 = vsel %vm1125, %v2489, 0
    %2506 = vmatprep.subr.mxu0 0.0
    %2507 = vmatpush1.msra.mxu0 %v2490
    %2508 = vmatprep.subr.mxu0 0.0
    %2509 = vmatpush1.msra.mxu0 %v2491
    %2510 = vmatprep.subr.mxu0 0.0
    %2511 = vmatpush1.msra.mxu0 %v2492
    %2512 = vmatprep.subr.mxu0 0.0
    %2513 = vmatpush1.msra.mxu0 %v2493
    %2514 = vmatprep.subr.mxu0 0.0
    %2515 = vmatpush1.msra.mxu0 %v2494
    %2516 = vmatprep.subr.mxu0 0.0
    %2517 = vmatpush1.msra.mxu0 %v2495
    %2518 = vmatprep.subr.mxu0 0.0
    %2519 = vmatpush1.msra.mxu0 %v2496
    %2520 = vmatprep.subr.mxu0 0.0
    %2521 = vmatpush1.msra.mxu0 %v2497
    %2522 = vmatprep.subr.mxu0 0.0
    %2523 = vmatpush1.msra.mxu0 0.0
    %2524 = vmatprep.subr.mxu0 0.0
    %2525 = vmatpush1.msra.mxu0 0.0
    %2526 = vmatprep.subr.mxu0 0.0
    %2527 = vmatpush1.msra.mxu0 0.0
    %2528 = vmatprep.subr.mxu0 0.0
    %2529 = vmatpush1.msra.mxu0 0.0
    %2530 = vmatprep.subr.mxu0 0.0
    %2531 = vmatpush1.msra.mxu0 0.0
    %2532 = vmatprep.subr.mxu0 0.0
    %2533 = vmatpush1.msra.mxu0 0.0
    %2534 = vmatprep.subr.mxu0 0.0
    %2535 = vmatpush1.msra.mxu0 0.0
    %2536 = vmatprep.subr.mxu0 0.0
    %2537 = vmatpush1.msra.mxu0 0.0
    %2538 = vmatprep.subr.mxu0 0.0
    %2539 = vmatpush1.msra.mxu0 0.0
    %2540 = vmatprep.subr.mxu0 0.0
    %2541 = vmatpush1.msra.mxu0 0.0
    %2542 = vmatprep.subr.mxu0 0.0
    %2543 = vmatpush1.msra.mxu0 0.0
    %2544 = vmatprep.subr.mxu0 0.0
    %2545 = vmatpush1.msra.mxu0 0.0
    %2546 = vmatprep.subr.mxu0 0.0
    %2547 = vmatpush1.msra.mxu0 0.0
    %2548 = vmatprep.subr.mxu0 0.0
    %2549 = vmatpush1.msra.mxu0 0.0
    %2550 = vmatprep.subr.mxu0 0.0
    %2551 = vmatpush1.msra.mxu0 0.0
    %2552 = vmatprep.subr.mxu0 0.0
    %2553 = vmatpush1.msra.mxu0 0.0
    %2554 = vmatprep.subr.mxu0 0.0
    %2555 = vmatpush1.msra.mxu0 0.0
    %2556 = vmatprep.subr.mxu0 0.0
    %2557 = vmatpush1.msra.mxu0 0.0
    %2558 = vmatprep.subr.mxu0 0.0
    %2559 = vmatpush1.msra.mxu0 0.0
    %2560 = vmatprep.subr.mxu0 0.0
    %2561 = vmatpush1.msra.mxu0 0.0
    %2562 = vmatprep.subr.mxu0 0.0
    %2563 = vmatpush1.msra.mxu0 0.0
    %2564 = vmatprep.subr.mxu0 0.0
    %2565 = vmatpush1.msra.mxu0 0.0
    %2566 = vmatprep.subr.mxu0 0.0
    %2567 = vmatpush1.msra.mxu0 0.0
    %2568 = vmatprep.subr.mxu0 0.0
    %2569 = vmatpush1.msra.mxu0 0.0
    %2570 = vmatprep.mubr.f32.mxu0 0.0
    %2571 = vmatmul.mubr.f32.gmra.mrb[0].mxu0 %v2504
    %v2572 = vpop.f32.mrb[0].mxu0
    %v2573 = vadd.f32 %v2502, %v2572
    %v2574 = vpop.f32.mrb[0].mxu0
    %2575 = vdwg.mxu0
    %v2576 = vmul.f32 %v2573, %v2573
    %v2577 = vsel %vm913, %v2576, 0.0
    %2578 = vadd.xlane.f32.xlu0 %v2577
    %v2579 = vpop.xlane.xlu0 %2578
    %v2580 = vadd.f32 %v2579, 1e-12
    %v2581 = vrsqrt.pop %v2580
    %v2582 = vmul.f32 %v2573, %v2581
    %v2583 = vld [vmem:[#allocation2 + $0x1e8] sm:$0xff]
    %v2584 = vld [vmem:[#allocation2 + $0x1f0] sm:$0xff]
    %v2586 = vsel %vm913, %v2582, 0
    %2588 = vmatprep.subr.mxu0 0.0
    %2589 = vmatpush1.msra.mxu0 %v2583
    %2590 = vmatprep.subr.mxu0 0.0
    %2591 = vmatpush1.msra.mxu0 %v2584
    %2592 = vmatprep.subr.mxu0 0.0
    %2593 = vmatpush1.msra.mxu0 0.0
    %2594 = vmatprep.subr.mxu0 0.0
    %2595 = vmatpush1.msra.mxu0 0.0
    %2596 = vmatprep.subr.mxu0 0.0
    %2597 = vmatpush1.msra.mxu0 0.0
    %2598 = vmatprep.subr.mxu0 0.0
    %2599 = vmatpush1.msra.mxu0 0.0
    %2600 = vmatprep.subr.mxu0 0.0
    %2601 = vmatpush1.msra.mxu0 0.0
    %2602 = vmatprep.subr.mxu0 0.0
    %2603 = vmatpush1.msra.mxu0 0.0
    %2604 = vmatprep.subr.mxu0 0.0
    %2605 = vmatpush1.msra.mxu0 0.0
    %2606 = vmatprep.subr.mxu0 0.0
    %2607 = vmatpush1.msra.mxu0 0.0
    %2608 = vmatprep.subr.mxu0 0.0
    %2609 = vmatpush1.msra.mxu0 0.0
    %2610 = vmatprep.subr.mxu0 0.0
    %2611 = vmatpush1.msra.mxu0 0.0
    %2612 = vmatprep.subr.mxu0 0.0
    %2613 = vmatpush1.msra.mxu0 0.0
    %2614 = vmatprep.subr.mxu0 0.0
    %2615 = vmatpush1.msra.mxu0 0.0
    %2616 = vmatprep.subr.mxu0 0.0
    %2617 = vmatpush1.msra.mxu0 0.0
    %2618 = vmatprep.subr.mxu0 0.0
    %2619 = vmatpush1.msra.mxu0 0.0
    %2620 = vmatprep.subr.mxu0 0.0
    %2621 = vmatpush1.msra.mxu0 0.0
    %2622 = vmatprep.subr.mxu0 0.0
    %2623 = vmatpush1.msra.mxu0 0.0
    %2624 = vmatprep.subr.mxu0 0.0
    %2625 = vmatpush1.msra.mxu0 0.0
    %2626 = vmatprep.subr.mxu0 0.0
    %2627 = vmatpush1.msra.mxu0 0.0
    %2628 = vmatprep.subr.mxu0 0.0
    %2629 = vmatpush1.msra.mxu0 0.0
    %2630 = vmatprep.subr.mxu0 0.0
    %2631 = vmatpush1.msra.mxu0 0.0
    %2632 = vmatprep.subr.mxu0 0.0
    %2633 = vmatpush1.msra.mxu0 0.0
    %2634 = vmatprep.subr.mxu0 0.0
    %2635 = vmatpush1.msra.mxu0 0.0
    %2636 = vmatprep.subr.mxu0 0.0
    %2637 = vmatpush1.msra.mxu0 0.0
    %2638 = vmatprep.subr.mxu0 0.0
    %2639 = vmatpush1.msra.mxu0 0.0
    %2640 = vmatprep.subr.mxu0 0.0
    %2641 = vmatpush1.msra.mxu0 0.0
    %2642 = vmatprep.subr.mxu0 0.0
    %2643 = vmatpush1.msra.mxu0 0.0
    %2644 = vmatprep.subr.mxu0 0.0
    %2645 = vmatpush1.msra.mxu0 0.0
    %2646 = vmatprep.subr.mxu0 0.0
    %2647 = vmatpush1.msra.mxu0 0.0
    %2648 = vmatprep.subr.mxu0 0.0
    %2649 = vmatpush1.msra.mxu0 0.0
    %2650 = vmatprep.subr.mxu0 0.0
    %2651 = vmatpush1.msra.mxu0 0.0
    %2652 = vmatprep.mubr.f32.mxu0 0.0
    %2653 = vmatmul.mubr.f32.gmra.mrb[0].mxu0 %v2586
    %v2654 = vpop.f32.mrb[0].mxu0
    %v2655 = vadd.f32 0.0, %v2654
    %v2656 = vpop.f32.mrb[0].mxu0
    %2657 = vdwg.mxu0
    %2658 = vst [vmem:[%s3] sm:$0xff] %v2655
    // Predicated region
    $region22: #{fwd_single.1} parent=1 // pred_check
      _
    $region23: #{fwd_single.1} parent=1 // pred_check_branch
      %2660 = sbr.rel (0) target = $region25
    $region24: #{fwd_single.1} parent=1 // pred_region
      _
    $region25: #{fwd_single.1} parent=1 // pred_fallthru
      _
    // Predicated region
    $region26: #{fwd_single.1} parent=1 // pred_check
      _
    $region27: #{fwd_single.1} parent=1 // pred_check_branch
      %2662 = sbr.rel (0) target = $region29
    $region28: #{fwd_single.1} parent=1 // pred_region
      _
    $region29: #{fwd_single.1} parent=1 // pred_fallthru
      _
    %2663 = vsyncpa [#allocation3], 1
    %2664 = vsyncpa [#allocation5], 1

</llo_original>
